<compile_context>
chip_gen: v7x
topology: tpu7x:2x2x1
jax: 0.10.0
libtpu: 0.0.40
codegen_flags: <defaults>
</compile_context>

<pallas_src>
import jax
import jax.numpy as jnp
from jax.experimental import pallas as pl
from jax.experimental.pallas import tpu as pltpu


S_DIM = 23      # state features
H_DIM = 512     # hidden width
O_DIM = 2       # action outputs (tanh)


def _round_up(x, m):
    return (x + m - 1) // m * m


def _cdiv(a, b):
    return (a + b - 1) // b


def _tile_cap():
    """Per-generation cap on the batch tile (batch lives on the lane dim)."""
    try:
        kind = jax.devices()[0].device_kind.lower()
    except Exception:
        kind = ""
    # v5-class chips have a 16 MiB scoped-VMEM default -> keep tiles at 512.
    if "v5" in kind:
        return 512
    return 1024


def _pick_tile_b(B):
    cap = _tile_cap()
    B_lanes = _round_up(max(B, 1), 128)   # batch is the lane dim -> 128-aligned
    if B_lanes <= 128:
        return 128
    # Aim for >=2 grid steps so dimension_semantics=("parallel",) can shard the
    # batch tiles across v7x's two TensorCores, while still amortizing the
    # ~0.35 us fixed per-step pipeline overhead with large tiles.
    half = _round_up(_cdiv(B_lanes, 2), 128)
    return max(128, min(cap, half))


def policy_kernel(st_ref,
                  w1_ref, b1_ref,
                  w2_ref, b2_ref,
                  w3_ref, b3_ref,
                  w4_ref, b4_ref,
                  o_ref):
    # Batch-on-lanes: st is [23, tile_b]; every matmul is W[out,in] @ h[in,tile_b].
    # bf16 MXU matmuls with f32 accumulation; bias/ReLU/tanh in f32 (VPU/EUP
    # slack under the MXU, so these are free filler).
    st = st_ref[...].astype(jnp.bfloat16)                      # [23, tile_b]

    h1 = jnp.dot(w1_ref[...], st, preferred_element_type=jnp.float32) + b1_ref[...]
    h1 = jnp.maximum(h1, 0.0).astype(jnp.bfloat16)             # [512, tile_b]

    h2 = jnp.dot(w2_ref[...], h1, preferred_element_type=jnp.float32) + b2_ref[...]
    h2 = jnp.maximum(h2, 0.0).astype(jnp.bfloat16)             # [512, tile_b]

    h3 = jnp.dot(w3_ref[...], h2, preferred_element_type=jnp.float32) + b3_ref[...]
    h3 = jnp.maximum(h3, 0.0).astype(jnp.bfloat16)             # [512, tile_b]

    o = jnp.dot(w4_ref[...], h3, preferred_element_type=jnp.float32) + b4_ref[...]
    o_ref[...] = jnp.tanh(o)                                   # [2, tile_b]


def policy_forward(s, params, *, tile_b=None):
    """s: [B, 23] f32  ->  [B, 2] f32 (tanh-bounded actions)."""
    B = s.shape[0]
    if tile_b is None:
        tile_b = _pick_tile_b(B)
    assert tile_b % 128 == 0, "tile_b must be a multiple of 128 (batch on lanes)"

    B_pad = _round_up(B, tile_b)
    st = s.T                                   # [23, B]  (tiny XLA transpose)
    if B_pad != B:
        st = jnp.pad(st, ((0, 0), (0, B_pad - B)))

    (w1, b1), (w2, b2), (w3, b3), (w4, b4) = params

    # Constant index_map -> fetched once, VMEM-resident across the grid.
    # Buffered(1): no second buffer / second prologue DMA for never-changing blocks.
    def const(shape):
        return pl.BlockSpec(shape, lambda i: (0, 0), pipeline_mode=pl.Buffered(1))

    out = pl.pallas_call(
        policy_kernel,
        out_shape=jax.ShapeDtypeStruct((O_DIM, B_pad), jnp.float32),
        grid_spec=pltpu.PrefetchScalarGridSpec(
            num_scalar_prefetch=0,
            grid=(B_pad // tile_b,),
            in_specs=[
                pl.BlockSpec((S_DIM, tile_b), lambda i: (0, i)),   # s^T tile (streamed)
                const((H_DIM, S_DIM)), const((H_DIM, 1)),          # W1, b1
                const((H_DIM, H_DIM)), const((H_DIM, 1)),          # W2, b2
                const((H_DIM, H_DIM)), const((H_DIM, 1)),          # W3, b3
                const((O_DIM, H_DIM)), const((O_DIM, 1)),          # W4, b4 (no padding)
            ],
            out_specs=pl.BlockSpec((O_DIM, tile_b), lambda i: (0, i)),
        ),
        compiler_params=pltpu.CompilerParams(
            dimension_semantics=("parallel",)),   # batch tiles shard across TCs (v7x)
    )(st, w1, b1, w2, b2, w3, b3, w4, b4)

    return out[:, :B].T                        # [B, 2]


def init_params(key):
    """Deterministic init mimicking PyTorch nn.Linear default (U[-1/sqrt(fan_in), +])."""
    def linear(key, fan_in, fan_out):
        kw, kb = jax.random.split(key)
        bound = 1.0 / jnp.sqrt(float(fan_in))
        w = jax.random.uniform(kw, (fan_out, fan_in), jnp.float32, -bound, bound)
        b = jax.random.uniform(kb, (fan_out,), jnp.float32, -bound, bound)
        return w, b

    k1, k2, k3, k4 = jax.random.split(key, 4)
    w1, b1 = linear(k1, S_DIM, H_DIM)   # (512, 23)
    w2, b2 = linear(k2, H_DIM, H_DIM)   # (512, 512)
    w3, b3 = linear(k3, H_DIM, H_DIM)   # (512, 512)
    w4, b4 = linear(k4, H_DIM, O_DIM)   # (2, 512)

    # Kernel layout: weights kept as [out, in] (batch-on-lanes matmul), bf16 for
    # MXU rate (f32 accumulation); biases as [out, 1] f32 (broadcast over lanes).
    params = (
        (w1.astype(jnp.bfloat16), b1.reshape(H_DIM, 1)),
        (w2.astype(jnp.bfloat16), b2.reshape(H_DIM, 1)),
        (w3.astype(jnp.bfloat16), b3.reshape(H_DIM, 1)),
        (w4.astype(jnp.bfloat16), b4.reshape(O_DIM, 1)),
    )
    raw = ((w1, b1), (w2, b2), (w3, b3), (w4, b4))
    return params, raw


def reference_forward(s, raw):
    """Pure-JAX f32 reference reproducing the PyTorch forward exactly."""
    (w1, b1), (w2, b2), (w3, b3), (w4, b4) = raw
    h1 = jax.nn.relu(s @ w1.T + b1)
    h2 = jax.nn.relu(h1 @ w2.T + b2)
    h3 = jax.nn.relu(h2 @ w3.T + b3)
    return jnp.tanh(h3 @ w4.T + b4)


if __name__ == "__main__":
    key = jax.random.PRNGKey(0)
    kp, ks1, ks2 = jax.random.split(key, 3)

    params, raw = init_params(kp)

    # Small test batch (single grid step, tile_b=128).
    B1 = 8
    s1 = jax.random.normal(ks1, (B1, S_DIM), jnp.float32)
    out1 = jax.block_until_ready(policy_forward(s1, params))
    ref1 = reference_forward(s1, raw)
    assert out1.shape == (B1, O_DIM)
    # bf16 matmuls (f32 accumulation) vs f32 reference; tanh-bounded outputs.
    assert jnp.allclose(out1, ref1, atol=2e-2, rtol=2e-2), (out1, ref1)

    # Ragged batch exercising padding + multi-step grid (tile_b=256 -> grid=(2,)).
    B2 = 300
    s2 = jax.random.normal(ks2, (B2, S_DIM), jnp.float32)
    out2 = jax.block_until_ready(policy_forward(s2, params))
    ref2 = reference_forward(s2, raw)
    assert out2.shape == (B2, O_DIM)
    assert jnp.allclose(out2, ref2, atol=2e-2, rtol=2e-2)

    print("KERNEL_OK")
</pallas_src>

<mosaic_0001>
module attributes {stable_mosaic.version = 11 : i64} {
  func.func @policy_kernel(%arg0: i32, %arg1: memref<23x128xf32, #tpu.memory_space<vmem>>, %arg2: memref<512x23xbf16, #tpu.memory_space<vmem>>, %arg3: memref<512x1xf32, #tpu.memory_space<vmem>>, %arg4: memref<512x512xbf16, #tpu.memory_space<vmem>>, %arg5: memref<512x1xf32, #tpu.memory_space<vmem>>, %arg6: memref<512x512xbf16, #tpu.memory_space<vmem>>, %arg7: memref<512x1xf32, #tpu.memory_space<vmem>>, %arg8: memref<2x512xbf16, #tpu.memory_space<vmem>>, %arg9: memref<2x1xf32, #tpu.memory_space<vmem>>, %arg10: memref<2x128xf32, #tpu.memory_space<vmem>>) attributes {dimension_semantics = [#tpu.dimension_semantics<parallel>], iteration_bounds = array<i64: 1>, scalar_prefetch = 0 : i64, scratch_operands = 0 : i64, tpu.core_type = #tpu.core_type<tc>, window_params = [{transform_indices = @transform_0, window_bounds = array<i64: 23, 128>}, {pipeline_mode = #tpu.pipeline_mode<synchronous>, transform_indices = @transform_1, window_bounds = array<i64: 512, 23>}, {pipeline_mode = #tpu.pipeline_mode<synchronous>, transform_indices = @transform_2, window_bounds = array<i64: 512, 1>}, {pipeline_mode = #tpu.pipeline_mode<synchronous>, transform_indices = @transform_3, window_bounds = array<i64: 512, 512>}, {pipeline_mode = #tpu.pipeline_mode<synchronous>, transform_indices = @transform_4, window_bounds = array<i64: 512, 1>}, {pipeline_mode = #tpu.pipeline_mode<synchronous>, transform_indices = @transform_5, window_bounds = array<i64: 512, 512>}, {pipeline_mode = #tpu.pipeline_mode<synchronous>, transform_indices = @transform_6, window_bounds = array<i64: 512, 1>}, {pipeline_mode = #tpu.pipeline_mode<synchronous>, transform_indices = @transform_7, window_bounds = array<i64: 2, 512>}, {pipeline_mode = #tpu.pipeline_mode<synchronous>, transform_indices = @transform_8, window_bounds = array<i64: 2, 1>}, {transform_indices = @transform_9, window_bounds = array<i64: 2, 128>}]} {
    %c0 = arith.constant 0 : index
    %c0_0 = arith.constant 0 : index
    %0 = vector.load %arg1[%c0, %c0_0] : memref<23x128xf32, #tpu.memory_space<vmem>>, vector<23x128xf32>
    %1 = arith.truncf %0 : vector<23x128xf32> to vector<23x128xbf16>
    %c0_1 = arith.constant 0 : index
    %c0_2 = arith.constant 0 : index
    %2 = vector.load %arg2[%c0_1, %c0_2] : memref<512x23xbf16, #tpu.memory_space<vmem>>, vector<512x23xbf16>
    %cst = arith.constant dense<0.000000e+00> : vector<512x128xf32>
    %3 = tpu.matmul %2, %1, %cst {dimension_numbers = #tpu.dot_dimension_numbers<[1], [0], [0], [1], [0, 0, 1, 1], [], []>} : vector<512x23xbf16>, vector<23x128xbf16>, vector<512x128xf32> -> vector<512x128xf32>
    %c0_3 = arith.constant 0 : index
    %c0_4 = arith.constant 0 : index
    %4 = vector.load %arg3[%c0_3, %c0_4] : memref<512x1xf32, #tpu.memory_space<vmem>>, vector<512x1xf32>
    %5 = vector.broadcast %4 : vector<512x1xf32> to vector<512x128xf32>
    %6 = arith.addf %3, %5 : vector<512x128xf32>
    %cst_5 = arith.constant 0.000000e+00 : f32
    %7 = vector.broadcast %cst_5 : f32 to vector<512x128xf32>
    %8 = arith.maximumf %6, %7 : vector<512x128xf32>
    %9 = arith.truncf %8 : vector<512x128xf32> to vector<512x128xbf16>
    %c0_6 = arith.constant 0 : index
    %c0_7 = arith.constant 0 : index
    %10 = vector.load %arg4[%c0_6, %c0_7] : memref<512x512xbf16, #tpu.memory_space<vmem>>, vector<512x512xbf16>
    %cst_8 = arith.constant dense<0.000000e+00> : vector<512x128xf32>
    %11 = tpu.matmul %10, %9, %cst_8 {dimension_numbers = #tpu.dot_dimension_numbers<[1], [0], [0], [1], [0, 0, 1, 1], [], []>} : vector<512x512xbf16>, vector<512x128xbf16>, vector<512x128xf32> -> vector<512x128xf32>
    %c0_9 = arith.constant 0 : index
    %c0_10 = arith.constant 0 : index
    %12 = vector.load %arg5[%c0_9, %c0_10] : memref<512x1xf32, #tpu.memory_space<vmem>>, vector<512x1xf32>
    %13 = vector.broadcast %12 : vector<512x1xf32> to vector<512x128xf32>
    %14 = arith.addf %11, %13 : vector<512x128xf32>
    %cst_11 = arith.constant 0.000000e+00 : f32
    %15 = vector.broadcast %cst_11 : f32 to vector<512x128xf32>
    %16 = arith.maximumf %14, %15 : vector<512x128xf32>
    %17 = arith.truncf %16 : vector<512x128xf32> to vector<512x128xbf16>
    %c0_12 = arith.constant 0 : index
    %c0_13 = arith.constant 0 : index
    %18 = vector.load %arg6[%c0_12, %c0_13] : memref<512x512xbf16, #tpu.memory_space<vmem>>, vector<512x512xbf16>
    %cst_14 = arith.constant dense<0.000000e+00> : vector<512x128xf32>
    %19 = tpu.matmul %18, %17, %cst_14 {dimension_numbers = #tpu.dot_dimension_numbers<[1], [0], [0], [1], [0, 0, 1, 1], [], []>} : vector<512x512xbf16>, vector<512x128xbf16>, vector<512x128xf32> -> vector<512x128xf32>
    %c0_15 = arith.constant 0 : index
    %c0_16 = arith.constant 0 : index
    %20 = vector.load %arg7[%c0_15, %c0_16] : memref<512x1xf32, #tpu.memory_space<vmem>>, vector<512x1xf32>
    %21 = vector.broadcast %20 : vector<512x1xf32> to vector<512x128xf32>
    %22 = arith.addf %19, %21 : vector<512x128xf32>
    %cst_17 = arith.constant 0.000000e+00 : f32
    %23 = vector.broadcast %cst_17 : f32 to vector<512x128xf32>
    %24 = arith.maximumf %22, %23 : vector<512x128xf32>
    %25 = arith.truncf %24 : vector<512x128xf32> to vector<512x128xbf16>
    %c0_18 = arith.constant 0 : index
    %c0_19 = arith.constant 0 : index
    %26 = vector.load %arg8[%c0_18, %c0_19] : memref<2x512xbf16, #tpu.memory_space<vmem>>, vector<2x512xbf16>
    %cst_20 = arith.constant dense<0.000000e+00> : vector<2x128xf32>
    %27 = tpu.matmul %26, %25, %cst_20 {dimension_numbers = #tpu.dot_dimension_numbers<[1], [0], [0], [1], [0, 0, 1, 1], [], []>} : vector<2x512xbf16>, vector<512x128xbf16>, vector<2x128xf32> -> vector<2x128xf32>
    %c0_21 = arith.constant 0 : index
    %c0_22 = arith.constant 0 : index
    %28 = vector.load %arg9[%c0_21, %c0_22] : memref<2x1xf32, #tpu.memory_space<vmem>>, vector<2x1xf32>
    %29 = vector.broadcast %28 : vector<2x1xf32> to vector<2x128xf32>
    %30 = arith.addf %27, %29 : vector<2x128xf32>
    %31 = math.tanh %30 : vector<2x128xf32>
    %c0_23 = arith.constant 0 : index
    %c0_24 = arith.constant 0 : index
    %32 = vector.load %arg10[%c0_23, %c0_24] : memref<2x128xf32, #tpu.memory_space<vmem>>, vector<2x128xf32>
    tpu.vector_store %arg10[%c0_23, %c0_24], %31 {strides = array<i32>} : memref<2x128xf32, #tpu.memory_space<vmem>>, vector<2x128xf32>,
    return
  }
  func.func @transform_0(%arg0: i32) -> (i32, i32) {
    %c0_i32 = arith.constant 0 : i32
    %c0_i32_0 = arith.constant 0 : i32
    return %c0_i32, %arg0 : i32, i32
  }
  func.func @transform_1(%arg0: i32) -> (i32, i32) {
    %c0_i32 = arith.constant 0 : i32
    %c0_i32_0 = arith.constant 0 : i32
    %c0_i32_1 = arith.constant 0 : i32
    return %c0_i32, %c0_i32_0 : i32, i32
  }
  func.func @transform_2(%arg0: i32) -> (i32, i32) {
    %c0_i32 = arith.constant 0 : i32
    %c0_i32_0 = arith.constant 0 : i32
    %c0_i32_1 = arith.constant 0 : i32
    return %c0_i32, %c0_i32_0 : i32, i32
  }
  func.func @transform_3(%arg0: i32) -> (i32, i32) {
    %c0_i32 = arith.constant 0 : i32
    %c0_i32_0 = arith.constant 0 : i32
    %c0_i32_1 = arith.constant 0 : i32
    return %c0_i32, %c0_i32_0 : i32, i32
  }
  func.func @transform_4(%arg0: i32) -> (i32, i32) {
    %c0_i32 = arith.constant 0 : i32
    %c0_i32_0 = arith.constant 0 : i32
    %c0_i32_1 = arith.constant 0 : i32
    return %c0_i32, %c0_i32_0 : i32, i32
  }
  func.func @transform_5(%arg0: i32) -> (i32, i32) {
    %c0_i32 = arith.constant 0 : i32
    %c0_i32_0 = arith.constant 0 : i32
    %c0_i32_1 = arith.constant 0 : i32
    return %c0_i32, %c0_i32_0 : i32, i32
  }
  func.func @transform_6(%arg0: i32) -> (i32, i32) {
    %c0_i32 = arith.constant 0 : i32
    %c0_i32_0 = arith.constant 0 : i32
    %c0_i32_1 = arith.constant 0 : i32
    return %c0_i32, %c0_i32_0 : i32, i32
  }
  func.func @transform_7(%arg0: i32) -> (i32, i32) {
    %c0_i32 = arith.constant 0 : i32
    %c0_i32_0 = arith.constant 0 : i32
    %c0_i32_1 = arith.constant 0 : i32
    return %c0_i32, %c0_i32_0 : i32, i32
  }
  func.func @transform_8(%arg0: i32) -> (i32, i32) {
    %c0_i32 = arith.constant 0 : i32
    %c0_i32_0 = arith.constant 0 : i32
    %c0_i32_1 = arith.constant 0 : i32
    return %c0_i32, %c0_i32_0 : i32, i32
  }
  func.func @transform_9(%arg0: i32) -> (i32, i32) {
    %c0_i32 = arith.constant 0 : i32
    %c0_i32_0 = arith.constant 0 : i32
    return %c0_i32, %arg0 : i32, i32
  }
}

</mosaic_0001>

<llo_original>
// kernel: tpu_custom_call.1
$region0: #{tpu_custom_call.1}
  #allocation0 [shape = 'u32[]', space=smem, size = 0x4, offset = 0x4, fixed_abs, tag = 'smem constant byte address 0x4 - core index']
  #allocation1 [shape = 'u32[144,128]{1,0:T(1,128)}', space=vmem, size = 0x12000, scoped, tag = 'internal scratch']
  %s0 = inlined_call_operand.vmem [shape: f32[23,128], index: 0, kind: input, shape index: {}]
  %s1 = inlined_call_operand.vmem [shape: bf16[512,23], index: 1, kind: input, shape index: {}]
  %s2 = inlined_call_operand.vmem [shape: f32[512,1], index: 2, kind: input, shape index: {}]
  %s3 = inlined_call_operand.vmem [shape: bf16[512,512], index: 3, kind: input, shape index: {}]
  %s4 = inlined_call_operand.vmem [shape: f32[512,1], index: 4, kind: input, shape index: {}]
  %s5 = inlined_call_operand.hbm [shape: bf16[512,512], index: 5, kind: input, shape index: {}]
  %s6 = inlined_call_operand.vmem [shape: f32[512,1], index: 6, kind: input, shape index: {}]
  %s7 = inlined_call_operand.vmem [shape: bf16[2,512], index: 7, kind: input, shape index: {}]
  %s8 = inlined_call_operand.vmem [shape: f32[2,1], index: 8, kind: input, shape index: {}]
  %s9 = inlined_call_operand.hbm [shape: f32[2,128], index: 9, kind: output, shape index: {}]
  %s10 = sld [smem:[#allocation0]]
  $region50: #{tpu_custom_call.1} parent=0
    _
  %s12 = ssub.s32 1, %s10
  %s13 = scalar_select 0, %s12, %s10
  $region1: #{tpu_custom_call.1} parent=0
    #allocation2 [shape = 'u8[524288]{0}', space=vmem, size = 0x80000, scoped, tag = 'input window, operand 5, single buffered']
    #allocation3 [shape = 's32[1]{0}', space=sflag, size = 0x4, scoped, tag = 'scoped memory for tpu_custom_call.1']
    #allocation4 [shape = 's32[1]{0}', space=sflag, size = 0x4, scoped, tag = 'scoped memory for tpu_custom_call.1']
    #allocation5 [shape = 'u8[1024]{0}', space=vmem, size = 0x400, scoped, tag = 'output window, operand 0, single buffered']
    %14 = vsyncpa [#allocation3], 0
    %15 = vsyncpa [#allocation4], 0
    // Predicated region
    $region2: #{tpu_custom_call.1} parent=1 // pred_check
      _
    $region3: #{tpu_custom_call.1} parent=1 // pred_check_branch
      %17 = sbr.rel (0) target = $region5
    $region4: #{tpu_custom_call.1} parent=1 // pred_region
      _
    $region5: #{tpu_custom_call.1} parent=1 // pred_fallthru
      _
    // Predicated region
    $region6: #{tpu_custom_call.1} parent=1 // pred_check
      _
    $region7: #{tpu_custom_call.1} parent=1 // pred_check_branch
      %19 = sbr.rel (0) target = $region9
    $region8: #{tpu_custom_call.1} parent=1 // pred_region
      _
    $region9: #{tpu_custom_call.1} parent=1 // pred_fallthru
      _
    // Predicated region
    $region10: #{tpu_custom_call.1} parent=1 // pred_check
      _
    $region11: #{tpu_custom_call.1} parent=1 // pred_check_branch
      %21 = sbr.rel (0) target = $region13
    $region12: #{tpu_custom_call.1} parent=1 // pred_region
      _
    $region13: #{tpu_custom_call.1} parent=1 // pred_fallthru
      _
    // Predicated region
    $region14: #{tpu_custom_call.1} parent=1 // pred_check
      _
    $region15: #{tpu_custom_call.1} parent=1 // pred_check_branch
      %23 = sbr.rel (0) target = $region17
    $region16: #{tpu_custom_call.1} parent=1 // pred_region
      _
    $region17: #{tpu_custom_call.1} parent=1 // pred_fallthru
      _
    // Predicated region
    $region18: #{tpu_custom_call.1} parent=1 // pred_check
      _
    $region19: #{tpu_custom_call.1} parent=1 // pred_check_branch
      %25 = sbr.rel (0) target = $region21
    $region20: #{tpu_custom_call.1} parent=1 // pred_region
      _
    $region21: #{tpu_custom_call.1} parent=1 // pred_fallthru
      _
    // Predicated region
    $region22: #{tpu_custom_call.1} parent=1 // pred_check
      _
    $region23: #{tpu_custom_call.1} parent=1 // pred_check_branch
      %27 = sbr.rel (0) target = $region25
    $region24: #{tpu_custom_call.1} parent=1 // pred_region
      %s29 = ssub.s32 16384, 16384
      %30 = vsyncadd [#allocation3], %s29
      %s31 = sshll.u32 [#allocation2], 4
      %s32 = int_to_ptr.vmem [resolvable:$true] %s31
      %37 = dma.hbm_to_vmem [thread:$0]  %s5, 16384, %s32, [#allocation3], 256, 256, 16
    $region25: #{tpu_custom_call.1} parent=1 // pred_fallthru
      _
    // Predicated region
    $region26: #{tpu_custom_call.1} parent=1 // pred_check
      _
    $region27: #{tpu_custom_call.1} parent=1 // pred_check_branch
      %39 = sbr.rel (0) target = $region29
    $region28: #{tpu_custom_call.1} parent=1 // pred_region
      _
    $region29: #{tpu_custom_call.1} parent=1 // pred_fallthru
      _
    // Predicated region
    $region30: #{tpu_custom_call.1} parent=1 // pred_check
      _
    $region31: #{tpu_custom_call.1} parent=1 // pred_check_branch
      %41 = sbr.rel (0) target = $region33
    $region32: #{tpu_custom_call.1} parent=1 // pred_region
      _
    $region33: #{tpu_custom_call.1} parent=1 // pred_fallthru
      _
    // Predicated region
    $region34: #{tpu_custom_call.1} parent=1 // pred_check
      _
    $region35: #{tpu_custom_call.1} parent=1 // pred_check_branch
      %43 = sbr.rel (0) target = $region37
    $region36: #{tpu_custom_call.1} parent=1 // pred_region
      _
    $region37: #{tpu_custom_call.1} parent=1 // pred_fallthru
      _
    // Predicated region
    $region38: #{tpu_custom_call.1} parent=1 // pred_check
      _
    $region39: #{tpu_custom_call.1} parent=1 // pred_check_branch
      %45 = sbr.rel (0) target = $region41
    $region40: #{tpu_custom_call.1} parent=1 // pred_region
      %46 = dma.done [#allocation3], 16384
    $region41: #{tpu_custom_call.1} parent=1 // pred_fallthru
      _
    %v48 = vld [vmem:[%s0] sm:$0xff]
    %v49 = vld [vmem:[%s0 + $0x8] sm:$0xff]
    %v50 = vld [vmem:[%s0 + $0x10] sm:$0x7f]
    %v51 = vpack.c.bf16 %v49, %v48
    %v52 = vpack.c.bf16 %v50, %v50
    %v53 = vld [vmem:[%s1] sm:$0xf]
    %v54 = vld [vmem:[%s1 + $0x4] sm:$0xf]
    %v55 = vld [vmem:[%s1 + $0x8] sm:$0xf]
    %v56 = vld [vmem:[%s1 + $0xc] sm:$0xf]
    %v57 = vld [vmem:[%s1 + $0x10] sm:$0xf]
    %v58 = vld [vmem:[%s1 + $0x14] sm:$0xf]
    %v59 = vld [vmem:[%s1 + $0x18] sm:$0xf]
    %v60 = vld [vmem:[%s1 + $0x1c] sm:$0xf]
    %v61 = vld [vmem:[%s1 + $0x20] sm:$0xf]
    %v62 = vld [vmem:[%s1 + $0x24] sm:$0xf]
    %v63 = vld [vmem:[%s1 + $0x28] sm:$0xf]
    %v64 = vld [vmem:[%s1 + $0x2c] sm:$0xf]
    %v65 = vld [vmem:[%s1 + $0x30] sm:$0xf]
    %v66 = vld [vmem:[%s1 + $0x34] sm:$0xf]
    %v67 = vld [vmem:[%s1 + $0x38] sm:$0xf]
    %v68 = vld [vmem:[%s1 + $0x3c] sm:$0xf]
    %v69 = vld [vmem:[%s1 + $0x40] sm:$0xf]
    %v70 = vld [vmem:[%s1 + $0x44] sm:$0xf]
    %v71 = vld [vmem:[%s1 + $0x48] sm:$0xf]
    %v72 = vld [vmem:[%s1 + $0x4c] sm:$0xf]
    %v73 = vld [vmem:[%s1 + $0x50] sm:$0xf]
    %v74 = vld [vmem:[%s1 + $0x54] sm:$0xf]
    %v75 = vld [vmem:[%s1 + $0x58] sm:$0xf]
    %v76 = vld [vmem:[%s1 + $0x5c] sm:$0xf]
    %v77 = vld [vmem:[%s1 + $0x60] sm:$0xf]
    %v78 = vld [vmem:[%s1 + $0x64] sm:$0xf]
    %v79 = vld [vmem:[%s1 + $0x68] sm:$0xf]
    %v80 = vld [vmem:[%s1 + $0x6c] sm:$0xf]
    %v81 = vld [vmem:[%s1 + $0x70] sm:$0xf]
    %v82 = vld [vmem:[%s1 + $0x74] sm:$0xf]
    %v83 = vld [vmem:[%s1 + $0x78] sm:$0xf]
    %v84 = vld [vmem:[%s1 + $0x7c] sm:$0xf]
    %v85 = vld [vmem:[%s1 + $0x80] sm:$0xf]
    %v86 = vld [vmem:[%s1 + $0x84] sm:$0xf]
    %v87 = vld [vmem:[%s1 + $0x88] sm:$0xf]
    %v88 = vld [vmem:[%s1 + $0x8c] sm:$0xf]
    %v89 = vld [vmem:[%s1 + $0x90] sm:$0xf]
    %v90 = vld [vmem:[%s1 + $0x94] sm:$0xf]
    %v91 = vld [vmem:[%s1 + $0x98] sm:$0xf]
    %v92 = vld [vmem:[%s1 + $0x9c] sm:$0xf]
    %v93 = vld [vmem:[%s1 + $0xa0] sm:$0xf]
    %v94 = vld [vmem:[%s1 + $0xa4] sm:$0xf]
    %v95 = vld [vmem:[%s1 + $0xa8] sm:$0xf]
    %v96 = vld [vmem:[%s1 + $0xac] sm:$0xf]
    %v97 = vld [vmem:[%s1 + $0xb0] sm:$0xf]
    %v98 = vld [vmem:[%s1 + $0xb4] sm:$0xf]
    %v99 = vld [vmem:[%s1 + $0xb8] sm:$0xf]
    %v100 = vld [vmem:[%s1 + $0xbc] sm:$0xf]
    %v101 = vld [vmem:[%s1 + $0xc0] sm:$0xf]
    %v102 = vld [vmem:[%s1 + $0xc4] sm:$0xf]
    %v103 = vld [vmem:[%s1 + $0xc8] sm:$0xf]
    %v104 = vld [vmem:[%s1 + $0xcc] sm:$0xf]
    %v105 = vld [vmem:[%s1 + $0xd0] sm:$0xf]
    %v106 = vld [vmem:[%s1 + $0xd4] sm:$0xf]
    %v107 = vld [vmem:[%s1 + $0xd8] sm:$0xf]
    %v108 = vld [vmem:[%s1 + $0xdc] sm:$0xf]
    %v109 = vld [vmem:[%s1 + $0xe0] sm:$0xf]
    %v110 = vld [vmem:[%s1 + $0xe4] sm:$0xf]
    %v111 = vld [vmem:[%s1 + $0xe8] sm:$0xf]
    %v112 = vld [vmem:[%s1 + $0xec] sm:$0xf]
    %v113 = vld [vmem:[%s1 + $0xf0] sm:$0xf]
    %v114 = vld [vmem:[%s1 + $0xf4] sm:$0xf]
    %v115 = vld [vmem:[%s1 + $0xf8] sm:$0xf]
    %v116 = vld [vmem:[%s1 + $0xfc] sm:$0xf]
    %v117 = vld [vmem:[%s2] sm:$0xff]
    %v118 = vld [vmem:[%s2 + $0x8] sm:$0xff]
    %v119 = vld [vmem:[%s2 + $0x10] sm:$0xff]
    %v120 = vld [vmem:[%s2 + $0x18] sm:$0xff]
    %v121 = vld [vmem:[%s2 + $0x20] sm:$0xff]
    %v122 = vld [vmem:[%s2 + $0x28] sm:$0xff]
    %v123 = vld [vmem:[%s2 + $0x30] sm:$0xff]
    %v124 = vld [vmem:[%s2 + $0x38] sm:$0xff]
    %v125 = vld [vmem:[%s2 + $0x40] sm:$0xff]
    %v126 = vld [vmem:[%s2 + $0x48] sm:$0xff]
    %v127 = vld [vmem:[%s2 + $0x50] sm:$0xff]
    %v128 = vld [vmem:[%s2 + $0x58] sm:$0xff]
    %v129 = vld [vmem:[%s2 + $0x60] sm:$0xff]
    %v130 = vld [vmem:[%s2 + $0x68] sm:$0xff]
    %v131 = vld [vmem:[%s2 + $0x70] sm:$0xff]
    %v132 = vld [vmem:[%s2 + $0x78] sm:$0xff]
    %v133 = vld [vmem:[%s2 + $0x80] sm:$0xff]
    %v134 = vld [vmem:[%s2 + $0x88] sm:$0xff]
    %v135 = vld [vmem:[%s2 + $0x90] sm:$0xff]
    %v136 = vld [vmem:[%s2 + $0x98] sm:$0xff]
    %v137 = vld [vmem:[%s2 + $0xa0] sm:$0xff]
    %v138 = vld [vmem:[%s2 + $0xa8] sm:$0xff]
    %v139 = vld [vmem:[%s2 + $0xb0] sm:$0xff]
    %v140 = vld [vmem:[%s2 + $0xb8] sm:$0xff]
    %v141 = vld [vmem:[%s2 + $0xc0] sm:$0xff]
    %v142 = vld [vmem:[%s2 + $0xc8] sm:$0xff]
    %v143 = vld [vmem:[%s2 + $0xd0] sm:$0xff]
    %v144 = vld [vmem:[%s2 + $0xd8] sm:$0xff]
    %v145 = vld [vmem:[%s2 + $0xe0] sm:$0xff]
    %v146 = vld [vmem:[%s2 + $0xe8] sm:$0xff]
    %v147 = vld [vmem:[%s2 + $0xf0] sm:$0xff]
    %v148 = vld [vmem:[%s2 + $0xf8] sm:$0xff]
    %v149 = vld [vmem:[%s2 + $0x100] sm:$0xff]
    %v150 = vld [vmem:[%s2 + $0x108] sm:$0xff]
    %v151 = vld [vmem:[%s2 + $0x110] sm:$0xff]
    %v152 = vld [vmem:[%s2 + $0x118] sm:$0xff]
    %v153 = vld [vmem:[%s2 + $0x120] sm:$0xff]
    %v154 = vld [vmem:[%s2 + $0x128] sm:$0xff]
    %v155 = vld [vmem:[%s2 + $0x130] sm:$0xff]
    %v156 = vld [vmem:[%s2 + $0x138] sm:$0xff]
    %v157 = vld [vmem:[%s2 + $0x140] sm:$0xff]
    %v158 = vld [vmem:[%s2 + $0x148] sm:$0xff]
    %v159 = vld [vmem:[%s2 + $0x150] sm:$0xff]
    %v160 = vld [vmem:[%s2 + $0x158] sm:$0xff]
    %v161 = vld [vmem:[%s2 + $0x160] sm:$0xff]
    %v162 = vld [vmem:[%s2 + $0x168] sm:$0xff]
    %v163 = vld [vmem:[%s2 + $0x170] sm:$0xff]
    %v164 = vld [vmem:[%s2 + $0x178] sm:$0xff]
    %v165 = vld [vmem:[%s2 + $0x180] sm:$0xff]
    %v166 = vld [vmem:[%s2 + $0x188] sm:$0xff]
    %v167 = vld [vmem:[%s2 + $0x190] sm:$0xff]
    %v168 = vld [vmem:[%s2 + $0x198] sm:$0xff]
    %v169 = vld [vmem:[%s2 + $0x1a0] sm:$0xff]
    %v170 = vld [vmem:[%s2 + $0x1a8] sm:$0xff]
    %v171 = vld [vmem:[%s2 + $0x1b0] sm:$0xff]
    %v172 = vld [vmem:[%s2 + $0x1b8] sm:$0xff]
    %v173 = vld [vmem:[%s2 + $0x1c0] sm:$0xff]
    %v174 = vld [vmem:[%s2 + $0x1c8] sm:$0xff]
    %v175 = vld [vmem:[%s2 + $0x1d0] sm:$0xff]
    %v176 = vld [vmem:[%s2 + $0x1d8] sm:$0xff]
    %v177 = vld [vmem:[%s2 + $0x1e0] sm:$0xff]
    %v178 = vld [vmem:[%s2 + $0x1e8] sm:$0xff]
    %v179 = vld [vmem:[%s2 + $0x1f0] sm:$0xff]
    %v180 = vld [vmem:[%s2 + $0x1f8] sm:$0xff]
    %182 = vset.pattern.permute.xlu0 0
    %183 = vperm.xlu0 %182, %v117
    %v184 = vpop.permute.xlu0 %183
    %187 = vset.pattern.permute.xlu0 0
    %188 = vperm.xlu0 %187, %v118
    %v189 = vpop.permute.xlu0 %188
    %192 = vset.pattern.permute.xlu0 0
    %193 = vperm.xlu0 %192, %v119
    %v194 = vpop.permute.xlu0 %193
    %197 = vset.pattern.permute.xlu0 0
    %198 = vperm.xlu0 %197, %v120
    %v199 = vpop.permute.xlu0 %198
    %202 = vset.pattern.permute.xlu0 0
    %203 = vperm.xlu0 %202, %v121
    %v204 = vpop.permute.xlu0 %203
    %207 = vset.pattern.permute.xlu0 0
    %208 = vperm.xlu0 %207, %v122
    %v209 = vpop.permute.xlu0 %208
    %212 = vset.pattern.permute.xlu0 0
    %213 = vperm.xlu0 %212, %v123
    %v214 = vpop.permute.xlu0 %213
    %217 = vset.pattern.permute.xlu0 0
    %218 = vperm.xlu0 %217, %v124
    %v219 = vpop.permute.xlu0 %218
    %222 = vset.pattern.permute.xlu0 0
    %223 = vperm.xlu0 %222, %v125
    %v224 = vpop.permute.xlu0 %223
    %227 = vset.pattern.permute.xlu0 0
    %228 = vperm.xlu0 %227, %v126
    %v229 = vpop.permute.xlu0 %228
    %232 = vset.pattern.permute.xlu0 0
    %233 = vperm.xlu0 %232, %v127
    %v234 = vpop.permute.xlu0 %233
    %237 = vset.pattern.permute.xlu0 0
    %238 = vperm.xlu0 %237, %v128
    %v239 = vpop.permute.xlu0 %238
    %242 = vset.pattern.permute.xlu0 0
    %243 = vperm.xlu0 %242, %v129
    %v244 = vpop.permute.xlu0 %243
    %247 = vset.pattern.permute.xlu0 0
    %248 = vperm.xlu0 %247, %v130
    %v249 = vpop.permute.xlu0 %248
    %252 = vset.pattern.permute.xlu0 0
    %253 = vperm.xlu0 %252, %v131
    %v254 = vpop.permute.xlu0 %253
    %257 = vset.pattern.permute.xlu0 0
    %258 = vperm.xlu0 %257, %v132
    %v259 = vpop.permute.xlu0 %258
    %262 = vset.pattern.permute.xlu0 0
    %263 = vperm.xlu0 %262, %v133
    %v264 = vpop.permute.xlu0 %263
    %267 = vset.pattern.permute.xlu0 0
    %268 = vperm.xlu0 %267, %v134
    %v269 = vpop.permute.xlu0 %268
    %272 = vset.pattern.permute.xlu0 0
    %273 = vperm.xlu0 %272, %v135
    %v274 = vpop.permute.xlu0 %273
    %277 = vset.pattern.permute.xlu0 0
    %278 = vperm.xlu0 %277, %v136
    %v279 = vpop.permute.xlu0 %278
    %282 = vset.pattern.permute.xlu0 0
    %283 = vperm.xlu0 %282, %v137
    %v284 = vpop.permute.xlu0 %283
    %287 = vset.pattern.permute.xlu0 0
    %288 = vperm.xlu0 %287, %v138
    %v289 = vpop.permute.xlu0 %288
    %292 = vset.pattern.permute.xlu0 0
    %293 = vperm.xlu0 %292, %v139
    %v294 = vpop.permute.xlu0 %293
    %297 = vset.pattern.permute.xlu0 0
    %298 = vperm.xlu0 %297, %v140
    %v299 = vpop.permute.xlu0 %298
    %302 = vset.pattern.permute.xlu0 0
    %303 = vperm.xlu0 %302, %v141
    %v304 = vpop.permute.xlu0 %303
    %307 = vset.pattern.permute.xlu0 0
    %308 = vperm.xlu0 %307, %v142
    %v309 = vpop.permute.xlu0 %308
    %312 = vset.pattern.permute.xlu0 0
    %313 = vperm.xlu0 %312, %v143
    %v314 = vpop.permute.xlu0 %313
    %317 = vset.pattern.permute.xlu0 0
    %318 = vperm.xlu0 %317, %v144
    %v319 = vpop.permute.xlu0 %318
    %322 = vset.pattern.permute.xlu0 0
    %323 = vperm.xlu0 %322, %v145
    %v324 = vpop.permute.xlu0 %323
    %327 = vset.pattern.permute.xlu0 0
    %328 = vperm.xlu0 %327, %v146
    %v329 = vpop.permute.xlu0 %328
    %332 = vset.pattern.permute.xlu0 0
    %333 = vperm.xlu0 %332, %v147
    %v334 = vpop.permute.xlu0 %333
    %337 = vset.pattern.permute.xlu0 0
    %338 = vperm.xlu0 %337, %v148
    %v339 = vpop.permute.xlu0 %338
    %342 = vset.pattern.permute.xlu0 0
    %343 = vperm.xlu0 %342, %v149
    %v344 = vpop.permute.xlu0 %343
    %347 = vset.pattern.permute.xlu0 0
    %348 = vperm.xlu0 %347, %v150
    %v349 = vpop.permute.xlu0 %348
    %352 = vset.pattern.permute.xlu0 0
    %353 = vperm.xlu0 %352, %v151
    %v354 = vpop.permute.xlu0 %353
    %357 = vset.pattern.permute.xlu0 0
    %358 = vperm.xlu0 %357, %v152
    %v359 = vpop.permute.xlu0 %358
    %362 = vset.pattern.permute.xlu0 0
    %363 = vperm.xlu0 %362, %v153
    %v364 = vpop.permute.xlu0 %363
    %367 = vset.pattern.permute.xlu0 0
    %368 = vperm.xlu0 %367, %v154
    %v369 = vpop.permute.xlu0 %368
    %372 = vset.pattern.permute.xlu0 0
    %373 = vperm.xlu0 %372, %v155
    %v374 = vpop.permute.xlu0 %373
    %377 = vset.pattern.permute.xlu0 0
    %378 = vperm.xlu0 %377, %v156
    %v379 = vpop.permute.xlu0 %378
    %382 = vset.pattern.permute.xlu0 0
    %383 = vperm.xlu0 %382, %v157
    %v384 = vpop.permute.xlu0 %383
    %387 = vset.pattern.permute.xlu0 0
    %388 = vperm.xlu0 %387, %v158
    %v389 = vpop.permute.xlu0 %388
    %392 = vset.pattern.permute.xlu0 0
    %393 = vperm.xlu0 %392, %v159
    %v394 = vpop.permute.xlu0 %393
    %397 = vset.pattern.permute.xlu0 0
    %398 = vperm.xlu0 %397, %v160
    %v399 = vpop.permute.xlu0 %398
    %402 = vset.pattern.permute.xlu0 0
    %403 = vperm.xlu0 %402, %v161
    %v404 = vpop.permute.xlu0 %403
    %407 = vset.pattern.permute.xlu0 0
    %408 = vperm.xlu0 %407, %v162
    %v409 = vpop.permute.xlu0 %408
    %412 = vset.pattern.permute.xlu0 0
    %413 = vperm.xlu0 %412, %v163
    %v414 = vpop.permute.xlu0 %413
    %417 = vset.pattern.permute.xlu0 0
    %418 = vperm.xlu0 %417, %v164
    %v419 = vpop.permute.xlu0 %418
    %422 = vset.pattern.permute.xlu0 0
    %423 = vperm.xlu0 %422, %v165
    %v424 = vpop.permute.xlu0 %423
    %427 = vset.pattern.permute.xlu0 0
    %428 = vperm.xlu0 %427, %v166
    %v429 = vpop.permute.xlu0 %428
    %432 = vset.pattern.permute.xlu0 0
    %433 = vperm.xlu0 %432, %v167
    %v434 = vpop.permute.xlu0 %433
    %437 = vset.pattern.permute.xlu0 0
    %438 = vperm.xlu0 %437, %v168
    %v439 = vpop.permute.xlu0 %438
    %442 = vset.pattern.permute.xlu0 0
    %443 = vperm.xlu0 %442, %v169
    %v444 = vpop.permute.xlu0 %443
    %447 = vset.pattern.permute.xlu0 0
    %448 = vperm.xlu0 %447, %v170
    %v449 = vpop.permute.xlu0 %448
    %452 = vset.pattern.permute.xlu0 0
    %453 = vperm.xlu0 %452, %v171
    %v454 = vpop.permute.xlu0 %453
    %457 = vset.pattern.permute.xlu0 0
    %458 = vperm.xlu0 %457, %v172
    %v459 = vpop.permute.xlu0 %458
    %462 = vset.pattern.permute.xlu0 0
    %463 = vperm.xlu0 %462, %v173
    %v464 = vpop.permute.xlu0 %463
    %467 = vset.pattern.permute.xlu0 0
    %468 = vperm.xlu0 %467, %v174
    %v469 = vpop.permute.xlu0 %468
    %472 = vset.pattern.permute.xlu0 0
    %473 = vperm.xlu0 %472, %v175
    %v474 = vpop.permute.xlu0 %473
    %477 = vset.pattern.permute.xlu0 0
    %478 = vperm.xlu0 %477, %v176
    %v479 = vpop.permute.xlu0 %478
    %482 = vset.pattern.permute.xlu0 0
    %483 = vperm.xlu0 %482, %v177
    %v484 = vpop.permute.xlu0 %483
    %487 = vset.pattern.permute.xlu0 0
    %488 = vperm.xlu0 %487, %v178
    %v489 = vpop.permute.xlu0 %488
    %492 = vset.pattern.permute.xlu0 0
    %493 = vperm.xlu0 %492, %v179
    %v494 = vpop.permute.xlu0 %493
    %497 = vset.pattern.permute.xlu0 0
    %498 = vperm.xlu0 %497, %v180
    %v499 = vpop.permute.xlu0 %498
    %v565 = vunpack.c.l.b16 %v53
    %v566 = vunpack.c.l.b16 %v54
    %v567 = vunpack.c.l.b16 %v55
    %v568 = vunpack.c.l.b16 %v56
    %v569 = vunpack.c.l.b16 %v57
    %v570 = vunpack.c.l.b16 %v58
    %v571 = vunpack.c.l.b16 %v59
    %v572 = vunpack.c.l.b16 %v60
    %v573 = vunpack.c.l.b16 %v61
    %v574 = vunpack.c.l.b16 %v62
    %v575 = vunpack.c.l.b16 %v63
    %v576 = vunpack.c.l.b16 %v64
    %v577 = vunpack.c.l.b16 %v65
    %v578 = vunpack.c.l.b16 %v66
    %v579 = vunpack.c.l.b16 %v67
    %v580 = vunpack.c.l.b16 %v68
    %v581 = vunpack.c.l.b16 %v69
    %v582 = vunpack.c.l.b16 %v70
    %v583 = vunpack.c.l.b16 %v71
    %v584 = vunpack.c.l.b16 %v72
    %v585 = vunpack.c.l.b16 %v73
    %v586 = vunpack.c.l.b16 %v74
    %v587 = vunpack.c.l.b16 %v75
    %v588 = vunpack.c.l.b16 %v76
    %v589 = vunpack.c.l.b16 %v77
    %v590 = vunpack.c.l.b16 %v78
    %v591 = vunpack.c.l.b16 %v79
    %v592 = vunpack.c.l.b16 %v80
    %v593 = vunpack.c.l.b16 %v81
    %v594 = vunpack.c.l.b16 %v82
    %v595 = vunpack.c.l.b16 %v83
    %v596 = vunpack.c.l.b16 %v84
    %v597 = vunpack.c.l.b16 %v85
    %v598 = vunpack.c.l.b16 %v86
    %v599 = vunpack.c.l.b16 %v87
    %v600 = vunpack.c.l.b16 %v88
    %v601 = vunpack.c.l.b16 %v89
    %v602 = vunpack.c.l.b16 %v90
    %v603 = vunpack.c.l.b16 %v91
    %v604 = vunpack.c.l.b16 %v92
    %v605 = vunpack.c.l.b16 %v93
    %v606 = vunpack.c.l.b16 %v94
    %v607 = vunpack.c.l.b16 %v95
    %v608 = vunpack.c.l.b16 %v96
    %v609 = vunpack.c.l.b16 %v97
    %v610 = vunpack.c.l.b16 %v98
    %v611 = vunpack.c.l.b16 %v99
    %v612 = vunpack.c.l.b16 %v100
    %v613 = vunpack.c.l.b16 %v101
    %v614 = vunpack.c.l.b16 %v102
    %v615 = vunpack.c.l.b16 %v103
    %v616 = vunpack.c.l.b16 %v104
    %v617 = vunpack.c.l.b16 %v105
    %v618 = vunpack.c.l.b16 %v106
    %v619 = vunpack.c.l.b16 %v107
    %v620 = vunpack.c.l.b16 %v108
    %v621 = vunpack.c.l.b16 %v109
    %v622 = vunpack.c.l.b16 %v110
    %v623 = vunpack.c.l.b16 %v111
    %v624 = vunpack.c.l.b16 %v112
    %v625 = vunpack.c.l.b16 %v113
    %v626 = vunpack.c.l.b16 %v114
    %v627 = vunpack.c.l.b16 %v115
    %v628 = vunpack.c.l.b16 %v116
    %v629 = vpack.c.b16 %v566, %v565
    %v630 = vpack.c.b16 %v568, %v567
    %v631 = vpack.c.b16 %v570, %v569
    %v632 = vpack.c.b16 %v572, %v571
    %v633 = vpack.c.b16 %v574, %v573
    %v634 = vpack.c.b16 %v576, %v575
    %v635 = vpack.c.b16 %v578, %v577
    %v636 = vpack.c.b16 %v580, %v579
    %v637 = vpack.c.b16 %v582, %v581
    %v638 = vpack.c.b16 %v584, %v583
    %v639 = vpack.c.b16 %v586, %v585
    %v640 = vpack.c.b16 %v588, %v587
    %v641 = vpack.c.b16 %v590, %v589
    %v642 = vpack.c.b16 %v592, %v591
    %v643 = vpack.c.b16 %v594, %v593
    %v644 = vpack.c.b16 %v596, %v595
    %v645 = vpack.c.b16 %v598, %v597
    %v646 = vpack.c.b16 %v600, %v599
    %v647 = vpack.c.b16 %v602, %v601
    %v648 = vpack.c.b16 %v604, %v603
    %v649 = vpack.c.b16 %v606, %v605
    %v650 = vpack.c.b16 %v608, %v607
    %v651 = vpack.c.b16 %v610, %v609
    %v652 = vpack.c.b16 %v612, %v611
    %v653 = vpack.c.b16 %v614, %v613
    %v654 = vpack.c.b16 %v616, %v615
    %v655 = vpack.c.b16 %v618, %v617
    %v656 = vpack.c.b16 %v620, %v619
    %v657 = vpack.c.b16 %v622, %v621
    %v658 = vpack.c.b16 %v624, %v623
    %v659 = vpack.c.b16 %v626, %v625
    %v660 = vpack.c.b16 %v628, %v627
    %vm661 = vcmask 187392
    %v663 = vsel %vm661, %v629, 0
    %v666 = vsel %vm661, %v630, 0
    %v669 = vsel %vm661, %v631, 0
    %v672 = vsel %vm661, %v632, 0
    %v675 = vsel %vm661, %v633, 0
    %v678 = vsel %vm661, %v634, 0
    %v681 = vsel %vm661, %v635, 0
    %v684 = vsel %vm661, %v636, 0
    %v687 = vsel %vm661, %v637, 0
    %v690 = vsel %vm661, %v638, 0
    %v693 = vsel %vm661, %v639, 0
    %v696 = vsel %vm661, %v640, 0
    %v699 = vsel %vm661, %v641, 0
    %v702 = vsel %vm661, %v642, 0
    %v705 = vsel %vm661, %v643, 0
    %v708 = vsel %vm661, %v644, 0
    %v711 = vsel %vm661, %v645, 0
    %v714 = vsel %vm661, %v646, 0
    %v717 = vsel %vm661, %v647, 0
    %v720 = vsel %vm661, %v648, 0
    %v723 = vsel %vm661, %v649, 0
    %v726 = vsel %vm661, %v650, 0
    %v729 = vsel %vm661, %v651, 0
    %v732 = vsel %vm661, %v652, 0
    %v735 = vsel %vm661, %v653, 0
    %v738 = vsel %vm661, %v654, 0
    %v741 = vsel %vm661, %v655, 0
    %v744 = vsel %vm661, %v656, 0
    %v747 = vsel %vm661, %v657, 0
    %v750 = vsel %vm661, %v658, 0
    %v753 = vsel %vm661, %v659, 0
    %v756 = vsel %vm661, %v660, 0
    %vm758 = vcmask 1042432
    %vm759 = vcmask 1043456
    %v760 = vsel %vm758, 4294967295, 65535
    %v761 = vsel %vm759, %v760, 0
    %v763 = vand.u32 %v52, %v761
    %765 = vmatprep.subr.bf16.mxu0 0
    %766 = vmatpush1.bf16.msra.mxu0 %v51
    %767 = vmatprep.subr.bf16.mxu0 0
    %768 = vmatpush1.bf16.msra.mxu0 %v763
    %769 = vmatprep.subr.bf16.mxu0 0
    %770 = vmatpush1.bf16.msra.mxu0 0
    %771 = vmatprep.subr.bf16.mxu0 0
    %772 = vmatpush1.bf16.msra.mxu0 0
    %773 = vmatprep.subr.bf16.mxu0 0
    %774 = vmatpush1.bf16.msra.mxu0 0
    %775 = vmatprep.subr.bf16.mxu0 0
    %776 = vmatpush1.bf16.msra.mxu0 0
    %777 = vmatprep.subr.bf16.mxu0 0
    %778 = vmatpush1.bf16.msra.mxu0 0
    %779 = vmatprep.subr.bf16.mxu0 0
    %780 = vmatpush1.bf16.msra.mxu0 0
    %781 = vmatprep.subr.bf16.mxu0 0
    %782 = vmatpush1.bf16.msra.mxu0 0
    %783 = vmatprep.subr.bf16.mxu0 0
    %784 = vmatpush1.bf16.msra.mxu0 0
    %785 = vmatprep.subr.bf16.mxu0 0
    %786 = vmatpush1.bf16.msra.mxu0 0
    %787 = vmatprep.subr.bf16.mxu0 0
    %788 = vmatpush1.bf16.msra.mxu0 0
    %789 = vmatprep.subr.bf16.mxu0 0
    %790 = vmatpush1.bf16.msra.mxu0 0
    %791 = vmatprep.subr.bf16.mxu0 0
    %792 = vmatpush1.bf16.msra.mxu0 0
    %793 = vmatprep.subr.bf16.mxu0 0
    %794 = vmatpush1.bf16.msra.mxu0 0
    %795 = vmatprep.subr.bf16.mxu0 0
    %796 = vmatpush1.bf16.msra.mxu0 0
    %797 = vmatprep.mubr.bf16.mxu0 0
    %798 = vmatmul.mubr.bf16.gmra.mrb[0].mxu0 %v663
    %v799 = vpop.f32.mrb[0].mxu0
    %v800 = vadd.f32 %v184, %v799
    %v801 = vpop.f32.mrb[0].mxu0
    %v802 = vpop.f32.mrb[0].mxu0
    %v803 = vadd.f32 %v189, %v802
    %v804 = vpop.f32.mrb[0].mxu0
    %805 = vmatprep.mubr.bf16.mxu0 0
    %806 = vmatmul.mubr.bf16.gmra.mrb[0].mxu0 %v666
    %v807 = vpop.f32.mrb[0].mxu0
    %v808 = vadd.f32 %v194, %v807
    %v809 = vpop.f32.mrb[0].mxu0
    %v810 = vpop.f32.mrb[0].mxu0
    %v811 = vadd.f32 %v199, %v810
    %v812 = vpop.f32.mrb[0].mxu0
    %813 = vmatprep.mubr.bf16.mxu0 0
    %814 = vmatmul.mubr.bf16.gmra.mrb[0].mxu0 %v669
    %v815 = vpop.f32.mrb[0].mxu0
    %v816 = vadd.f32 %v204, %v815
    %v817 = vpop.f32.mrb[0].mxu0
    %v818 = vpop.f32.mrb[0].mxu0
    %v819 = vadd.f32 %v209, %v818
    %v820 = vpop.f32.mrb[0].mxu0
    %821 = vmatprep.mubr.bf16.mxu0 0
    %822 = vmatmul.mubr.bf16.gmra.mrb[0].mxu0 %v672
    %v823 = vpop.f32.mrb[0].mxu0
    %v824 = vadd.f32 %v214, %v823
    %v825 = vpop.f32.mrb[0].mxu0
    %v826 = vpop.f32.mrb[0].mxu0
    %v827 = vadd.f32 %v219, %v826
    %v828 = vpop.f32.mrb[0].mxu0
    %829 = vmatprep.mubr.bf16.mxu0 0
    %830 = vmatmul.mubr.bf16.gmra.mrb[0].mxu0 %v675
    %v831 = vpop.f32.mrb[0].mxu0
    %v832 = vadd.f32 %v224, %v831
    %v833 = vpop.f32.mrb[0].mxu0
    %v834 = vpop.f32.mrb[0].mxu0
    %v835 = vadd.f32 %v229, %v834
    %v836 = vpop.f32.mrb[0].mxu0
    %837 = vmatprep.mubr.bf16.mxu0 0
    %838 = vmatmul.mubr.bf16.gmra.mrb[0].mxu0 %v678
    %v839 = vpop.f32.mrb[0].mxu0
    %v840 = vadd.f32 %v234, %v839
    %v841 = vpop.f32.mrb[0].mxu0
    %v842 = vpop.f32.mrb[0].mxu0
    %v843 = vadd.f32 %v239, %v842
    %v844 = vpop.f32.mrb[0].mxu0
    %845 = vmatprep.mubr.bf16.mxu0 0
    %846 = vmatmul.mubr.bf16.gmra.mrb[0].mxu0 %v681
    %v847 = vpop.f32.mrb[0].mxu0
    %v848 = vadd.f32 %v244, %v847
    %v849 = vpop.f32.mrb[0].mxu0
    %v850 = vpop.f32.mrb[0].mxu0
    %v851 = vadd.f32 %v249, %v850
    %v852 = vpop.f32.mrb[0].mxu0
    %853 = vmatprep.mubr.bf16.mxu0 0
    %854 = vmatmul.mubr.bf16.gmra.mrb[0].mxu0 %v684
    %v855 = vpop.f32.mrb[0].mxu0
    %v856 = vadd.f32 %v254, %v855
    %v857 = vpop.f32.mrb[0].mxu0
    %v858 = vpop.f32.mrb[0].mxu0
    %v859 = vadd.f32 %v259, %v858
    %v860 = vpop.f32.mrb[0].mxu0
    %861 = vmatprep.mubr.bf16.mxu0 0
    %862 = vmatmul.mubr.bf16.gmra.mrb[0].mxu0 %v687
    %v863 = vpop.f32.mrb[0].mxu0
    %v864 = vadd.f32 %v264, %v863
    %v865 = vpop.f32.mrb[0].mxu0
    %v866 = vpop.f32.mrb[0].mxu0
    %v867 = vadd.f32 %v269, %v866
    %v868 = vpop.f32.mrb[0].mxu0
    %869 = vmatprep.mubr.bf16.mxu0 0
    %870 = vmatmul.mubr.bf16.gmra.mrb[0].mxu0 %v690
    %v871 = vpop.f32.mrb[0].mxu0
    %v872 = vadd.f32 %v274, %v871
    %v873 = vpop.f32.mrb[0].mxu0
    %v874 = vpop.f32.mrb[0].mxu0
    %v875 = vadd.f32 %v279, %v874
    %v876 = vpop.f32.mrb[0].mxu0
    %877 = vmatprep.mubr.bf16.mxu0 0
    %878 = vmatmul.mubr.bf16.gmra.mrb[0].mxu0 %v693
    %v879 = vpop.f32.mrb[0].mxu0
    %v880 = vadd.f32 %v284, %v879
    %v881 = vpop.f32.mrb[0].mxu0
    %v882 = vpop.f32.mrb[0].mxu0
    %v883 = vadd.f32 %v289, %v882
    %v884 = vpop.f32.mrb[0].mxu0
    %885 = vmatprep.mubr.bf16.mxu0 0
    %886 = vmatmul.mubr.bf16.gmra.mrb[0].mxu0 %v696
    %v887 = vpop.f32.mrb[0].mxu0
    %v888 = vadd.f32 %v294, %v887
    %v889 = vpop.f32.mrb[0].mxu0
    %v890 = vpop.f32.mrb[0].mxu0
    %v891 = vadd.f32 %v299, %v890
    %v892 = vpop.f32.mrb[0].mxu0
    %893 = vmatprep.mubr.bf16.mxu0 0
    %894 = vmatmul.mubr.bf16.gmra.mrb[0].mxu0 %v699
    %v895 = vpop.f32.mrb[0].mxu0
    %v896 = vadd.f32 %v304, %v895
    %v897 = vpop.f32.mrb[0].mxu0
    %v898 = vpop.f32.mrb[0].mxu0
    %v899 = vadd.f32 %v309, %v898
    %v900 = vpop.f32.mrb[0].mxu0
    %901 = vmatprep.mubr.bf16.mxu0 0
    %902 = vmatmul.mubr.bf16.gmra.mrb[0].mxu0 %v702
    %v903 = vpop.f32.mrb[0].mxu0
    %v904 = vadd.f32 %v314, %v903
    %v905 = vpop.f32.mrb[0].mxu0
    %v906 = vpop.f32.mrb[0].mxu0
    %v907 = vadd.f32 %v319, %v906
    %v908 = vpop.f32.mrb[0].mxu0
    %909 = vmatprep.mubr.bf16.mxu0 0
    %910 = vmatmul.mubr.bf16.gmra.mrb[0].mxu0 %v705
    %v911 = vpop.f32.mrb[0].mxu0
    %v912 = vadd.f32 %v324, %v911
    %v913 = vpop.f32.mrb[0].mxu0
    %v914 = vpop.f32.mrb[0].mxu0
    %v915 = vadd.f32 %v329, %v914
    %v916 = vpop.f32.mrb[0].mxu0
    %917 = vmatprep.mubr.bf16.mxu0 0
    %918 = vmatmul.mubr.bf16.gmra.mrb[0].mxu0 %v708
    %v919 = vpop.f32.mrb[0].mxu0
    %v920 = vadd.f32 %v334, %v919
    %v921 = vpop.f32.mrb[0].mxu0
    %v922 = vpop.f32.mrb[0].mxu0
    %v923 = vadd.f32 %v339, %v922
    %v924 = vpop.f32.mrb[0].mxu0
    %925 = vmatprep.mubr.bf16.mxu0 0
    %926 = vmatmul.mubr.bf16.gmra.mrb[0].mxu0 %v711
    %v927 = vpop.f32.mrb[0].mxu0
    %v928 = vadd.f32 %v344, %v927
    %v929 = vpop.f32.mrb[0].mxu0
    %v930 = vpop.f32.mrb[0].mxu0
    %v931 = vadd.f32 %v349, %v930
    %v932 = vpop.f32.mrb[0].mxu0
    %933 = vmatprep.mubr.bf16.mxu0 0
    %934 = vmatmul.mubr.bf16.gmra.mrb[0].mxu0 %v714
    %v935 = vpop.f32.mrb[0].mxu0
    %v936 = vadd.f32 %v354, %v935
    %v937 = vpop.f32.mrb[0].mxu0
    %v938 = vpop.f32.mrb[0].mxu0
    %v939 = vadd.f32 %v359, %v938
    %v940 = vpop.f32.mrb[0].mxu0
    %941 = vmatprep.mubr.bf16.mxu0 0
    %942 = vmatmul.mubr.bf16.gmra.mrb[0].mxu0 %v717
    %v943 = vpop.f32.mrb[0].mxu0
    %v944 = vadd.f32 %v364, %v943
    %v945 = vpop.f32.mrb[0].mxu0
    %v946 = vpop.f32.mrb[0].mxu0
    %v947 = vadd.f32 %v369, %v946
    %v948 = vpop.f32.mrb[0].mxu0
    %949 = vmatprep.mubr.bf16.mxu0 0
    %950 = vmatmul.mubr.bf16.gmra.mrb[0].mxu0 %v720
    %v951 = vpop.f32.mrb[0].mxu0
    %v952 = vadd.f32 %v374, %v951
    %v953 = vpop.f32.mrb[0].mxu0
    %v954 = vpop.f32.mrb[0].mxu0
    %v955 = vadd.f32 %v379, %v954
    %v956 = vpop.f32.mrb[0].mxu0
    %957 = vmatprep.mubr.bf16.mxu0 0
    %958 = vmatmul.mubr.bf16.gmra.mrb[0].mxu0 %v723
    %v959 = vpop.f32.mrb[0].mxu0
    %v960 = vadd.f32 %v384, %v959
    %v961 = vpop.f32.mrb[0].mxu0
    %v962 = vpop.f32.mrb[0].mxu0
    %v963 = vadd.f32 %v389, %v962
    %v964 = vpop.f32.mrb[0].mxu0
    %965 = vmatprep.mubr.bf16.mxu0 0
    %966 = vmatmul.mubr.bf16.gmra.mrb[0].mxu0 %v726
    %v967 = vpop.f32.mrb[0].mxu0
    %v968 = vadd.f32 %v394, %v967
    %v969 = vpop.f32.mrb[0].mxu0
    %v970 = vpop.f32.mrb[0].mxu0
    %v971 = vadd.f32 %v399, %v970
    %v972 = vpop.f32.mrb[0].mxu0
    %973 = vmatprep.mubr.bf16.mxu0 0
    %974 = vmatmul.mubr.bf16.gmra.mrb[0].mxu0 %v729
    %v975 = vpop.f32.mrb[0].mxu0
    %v976 = vadd.f32 %v404, %v975
    %v977 = vpop.f32.mrb[0].mxu0
    %v978 = vpop.f32.mrb[0].mxu0
    %v979 = vadd.f32 %v409, %v978
    %v980 = vpop.f32.mrb[0].mxu0
    %981 = vmatprep.mubr.bf16.mxu0 0
    %982 = vmatmul.mubr.bf16.gmra.mrb[0].mxu0 %v732
    %v983 = vpop.f32.mrb[0].mxu0
    %v984 = vadd.f32 %v414, %v983
    %v985 = vpop.f32.mrb[0].mxu0
    %v986 = vpop.f32.mrb[0].mxu0
    %v987 = vadd.f32 %v419, %v986
    %v988 = vpop.f32.mrb[0].mxu0
    %989 = vmatprep.mubr.bf16.mxu0 0
    %990 = vmatmul.mubr.bf16.gmra.mrb[0].mxu0 %v735
    %v991 = vpop.f32.mrb[0].mxu0
    %v992 = vadd.f32 %v424, %v991
    %v993 = vpop.f32.mrb[0].mxu0
    %v994 = vpop.f32.mrb[0].mxu0
    %v995 = vadd.f32 %v429, %v994
    %v996 = vpop.f32.mrb[0].mxu0
    %997 = vmatprep.mubr.bf16.mxu0 0
    %998 = vmatmul.mubr.bf16.gmra.mrb[0].mxu0 %v738
    %v999 = vpop.f32.mrb[0].mxu0
    %v1000 = vadd.f32 %v434, %v999
    %v1001 = vpop.f32.mrb[0].mxu0
    %v1002 = vpop.f32.mrb[0].mxu0
    %v1003 = vadd.f32 %v439, %v1002
    %v1004 = vpop.f32.mrb[0].mxu0
    %1005 = vmatprep.mubr.bf16.mxu0 0
    %1006 = vmatmul.mubr.bf16.gmra.mrb[0].mxu0 %v741
    %v1007 = vpop.f32.mrb[0].mxu0
    %v1008 = vadd.f32 %v444, %v1007
    %v1009 = vpop.f32.mrb[0].mxu0
    %v1010 = vpop.f32.mrb[0].mxu0
    %v1011 = vadd.f32 %v449, %v1010
    %v1012 = vpop.f32.mrb[0].mxu0
    %1013 = vmatprep.mubr.bf16.mxu0 0
    %1014 = vmatmul.mubr.bf16.gmra.mrb[0].mxu0 %v744
    %v1015 = vpop.f32.mrb[0].mxu0
    %v1016 = vadd.f32 %v454, %v1015
    %v1017 = vpop.f32.mrb[0].mxu0
    %v1018 = vpop.f32.mrb[0].mxu0
    %v1019 = vadd.f32 %v459, %v1018
    %v1020 = vpop.f32.mrb[0].mxu0
    %1021 = vmatprep.mubr.bf16.mxu0 0
    %1022 = vmatmul.mubr.bf16.gmra.mrb[0].mxu0 %v747
    %v1023 = vpop.f32.mrb[0].mxu0
    %v1024 = vadd.f32 %v464, %v1023
    %v1025 = vpop.f32.mrb[0].mxu0
    %v1026 = vpop.f32.mrb[0].mxu0
    %v1027 = vadd.f32 %v469, %v1026
    %v1028 = vpop.f32.mrb[0].mxu0
    %1029 = vmatprep.mubr.bf16.mxu0 0
    %1030 = vmatmul.mubr.bf16.gmra.mrb[0].mxu0 %v750
    %v1031 = vpop.f32.mrb[0].mxu0
    %v1032 = vadd.f32 %v474, %v1031
    %v1033 = vpop.f32.mrb[0].mxu0
    %v1034 = vpop.f32.mrb[0].mxu0
    %v1035 = vadd.f32 %v479, %v1034
    %v1036 = vpop.f32.mrb[0].mxu0
    %1037 = vmatprep.mubr.bf16.mxu0 0
    %1038 = vmatmul.mubr.bf16.gmra.mrb[0].mxu0 %v753
    %v1039 = vpop.f32.mrb[0].mxu0
    %v1040 = vadd.f32 %v484, %v1039
    %v1041 = vpop.f32.mrb[0].mxu0
    %v1042 = vpop.f32.mrb[0].mxu0
    %v1043 = vadd.f32 %v489, %v1042
    %v1044 = vpop.f32.mrb[0].mxu0
    %1045 = vmatprep.mubr.bf16.mxu0 0
    %1046 = vmatmul.mubr.bf16.gmra.mrb[0].mxu0 %v756
    %v1047 = vpop.f32.mrb[0].mxu0
    %v1048 = vadd.f32 %v494, %v1047
    %v1049 = vpop.f32.mrb[0].mxu0
    %v1050 = vpop.f32.mrb[0].mxu0
    %v1051 = vadd.f32 %v499, %v1050
    %v1052 = vpop.f32.mrb[0].mxu0
    %1053 = vdwg.mxu0
    %v1054 = vmax.f32 %v800, 0.0
    %v1055 = vmax.f32 %v803, 0.0
    %v1056 = vmax.f32 %v808, 0.0
    %v1057 = vmax.f32 %v811, 0.0
    %v1058 = vmax.f32 %v816, 0.0
    %v1059 = vmax.f32 %v819, 0.0
    %v1060 = vmax.f32 %v824, 0.0
    %v1061 = vmax.f32 %v827, 0.0
    %v1062 = vmax.f32 %v832, 0.0
    %v1063 = vmax.f32 %v835, 0.0
    %v1064 = vmax.f32 %v840, 0.0
    %v1065 = vmax.f32 %v843, 0.0
    %v1066 = vmax.f32 %v848, 0.0
    %v1067 = vmax.f32 %v851, 0.0
    %v1068 = vmax.f32 %v856, 0.0
    %v1069 = vmax.f32 %v859, 0.0
    %v1070 = vmax.f32 %v864, 0.0
    %v1071 = vmax.f32 %v867, 0.0
    %v1072 = vmax.f32 %v872, 0.0
    %v1073 = vmax.f32 %v875, 0.0
    %v1074 = vmax.f32 %v880, 0.0
    %v1075 = vmax.f32 %v883, 0.0
    %v1076 = vmax.f32 %v888, 0.0
    %v1077 = vmax.f32 %v891, 0.0
    %v1078 = vmax.f32 %v896, 0.0
    %v1079 = vmax.f32 %v899, 0.0
    %v1080 = vmax.f32 %v904, 0.0
    %v1081 = vmax.f32 %v907, 0.0
    %v1082 = vmax.f32 %v912, 0.0
    %v1083 = vmax.f32 %v915, 0.0
    %v1084 = vmax.f32 %v920, 0.0
    %v1085 = vmax.f32 %v923, 0.0
    %v1086 = vmax.f32 %v928, 0.0
    %v1087 = vmax.f32 %v931, 0.0
    %v1088 = vmax.f32 %v936, 0.0
    %v1089 = vmax.f32 %v939, 0.0
    %v1090 = vmax.f32 %v944, 0.0
    %v1091 = vmax.f32 %v947, 0.0
    %v1092 = vmax.f32 %v952, 0.0
    %v1093 = vmax.f32 %v955, 0.0
    %v1094 = vmax.f32 %v960, 0.0
    %v1095 = vmax.f32 %v963, 0.0
    %v1096 = vmax.f32 %v968, 0.0
    %v1097 = vmax.f32 %v971, 0.0
    %v1098 = vmax.f32 %v976, 0.0
    %v1099 = vmax.f32 %v979, 0.0
    %v1100 = vmax.f32 %v984, 0.0
    %v1101 = vmax.f32 %v987, 0.0
    %v1102 = vmax.f32 %v992, 0.0
    %v1103 = vmax.f32 %v995, 0.0
    %v1104 = vmax.f32 %v1000, 0.0
    %v1105 = vmax.f32 %v1003, 0.0
    %v1106 = vmax.f32 %v1008, 0.0
    %v1107 = vmax.f32 %v1011, 0.0
    %v1108 = vmax.f32 %v1016, 0.0
    %v1109 = vmax.f32 %v1019, 0.0
    %v1110 = vmax.f32 %v1024, 0.0
    %v1111 = vmax.f32 %v1027, 0.0
    %v1112 = vmax.f32 %v1032, 0.0
    %v1113 = vmax.f32 %v1035, 0.0
    %v1114 = vmax.f32 %v1040, 0.0
    %v1115 = vmax.f32 %v1043, 0.0
    %v1116 = vmax.f32 %v1048, 0.0
    %v1117 = vmax.f32 %v1051, 0.0
    %v1118 = vpack.c.bf16 %v1055, %v1054
    %v1119 = vpack.c.bf16 %v1057, %v1056
    %v1120 = vpack.c.bf16 %v1059, %v1058
    %v1121 = vpack.c.bf16 %v1061, %v1060
    %v1122 = vpack.c.bf16 %v1063, %v1062
    %v1123 = vpack.c.bf16 %v1065, %v1064
    %v1124 = vpack.c.bf16 %v1067, %v1066
    %v1125 = vpack.c.bf16 %v1069, %v1068
    %v1126 = vpack.c.bf16 %v1071, %v1070
    %v1127 = vpack.c.bf16 %v1073, %v1072
    %v1128 = vpack.c.bf16 %v1075, %v1074
    %v1129 = vpack.c.bf16 %v1077, %v1076
    %v1130 = vpack.c.bf16 %v1079, %v1078
    %v1131 = vpack.c.bf16 %v1081, %v1080
    %v1132 = vpack.c.bf16 %v1083, %v1082
    %v1133 = vpack.c.bf16 %v1085, %v1084
    %v1134 = vpack.c.bf16 %v1087, %v1086
    %v1135 = vpack.c.bf16 %v1089, %v1088
    %v1136 = vpack.c.bf16 %v1091, %v1090
    %v1137 = vpack.c.bf16 %v1093, %v1092
    %v1138 = vpack.c.bf16 %v1095, %v1094
    %v1139 = vpack.c.bf16 %v1097, %v1096
    %v1140 = vpack.c.bf16 %v1099, %v1098
    %v1141 = vpack.c.bf16 %v1101, %v1100
    %v1142 = vpack.c.bf16 %v1103, %v1102
    %v1143 = vpack.c.bf16 %v1105, %v1104
    %v1144 = vpack.c.bf16 %v1107, %v1106
    %v1145 = vpack.c.bf16 %v1109, %v1108
    %v1146 = vpack.c.bf16 %v1111, %v1110
    %v1147 = vpack.c.bf16 %v1113, %v1112
    %v1148 = vpack.c.bf16 %v1115, %v1114
    %v1149 = vpack.c.bf16 %v1117, %v1116
    %v1150 = vld [vmem:[%s3] sm:$0xff]
    %v1151 = vld [vmem:[%s3 + $0x8] sm:$0xff]
    %v1152 = vld [vmem:[%s3 + $0x10] sm:$0xff]
    %v1153 = vld [vmem:[%s3 + $0x18] sm:$0xff]
    %v1154 = vld [vmem:[%s3 + $0x20] sm:$0xff]
    %v1155 = vld [vmem:[%s3 + $0x28] sm:$0xff]
    %v1156 = vld [vmem:[%s3 + $0x30] sm:$0xff]
    %v1157 = vld [vmem:[%s3 + $0x38] sm:$0xff]
    %v1158 = vld [vmem:[%s3 + $0x40] sm:$0xff]
    %v1159 = vld [vmem:[%s3 + $0x48] sm:$0xff]
    %v1160 = vld [vmem:[%s3 + $0x50] sm:$0xff]
    %v1161 = vld [vmem:[%s3 + $0x58] sm:$0xff]
    %v1162 = vld [vmem:[%s3 + $0x60] sm:$0xff]
    %v1163 = vld [vmem:[%s3 + $0x68] sm:$0xff]
    %v1164 = vld [vmem:[%s3 + $0x70] sm:$0xff]
    %v1165 = vld [vmem:[%s3 + $0x78] sm:$0xff]
    %v1166 = vld [vmem:[%s3 + $0x80] sm:$0xff]
    %v1167 = vld [vmem:[%s3 + $0x88] sm:$0xff]
    %v1168 = vld [vmem:[%s3 + $0x90] sm:$0xff]
    %v1169 = vld [vmem:[%s3 + $0x98] sm:$0xff]
    %v1170 = vld [vmem:[%s3 + $0xa0] sm:$0xff]
    %v1171 = vld [vmem:[%s3 + $0xa8] sm:$0xff]
    %v1172 = vld [vmem:[%s3 + $0xb0] sm:$0xff]
    %v1173 = vld [vmem:[%s3 + $0xb8] sm:$0xff]
    %v1174 = vld [vmem:[%s3 + $0xc0] sm:$0xff]
    %v1175 = vld [vmem:[%s3 + $0xc8] sm:$0xff]
    %v1176 = vld [vmem:[%s3 + $0xd0] sm:$0xff]
    %v1177 = vld [vmem:[%s3 + $0xd8] sm:$0xff]
    %v1178 = vld [vmem:[%s3 + $0xe0] sm:$0xff]
    %v1179 = vld [vmem:[%s3 + $0xe8] sm:$0xff]
    %v1180 = vld [vmem:[%s3 + $0xf0] sm:$0xff]
    %v1181 = vld [vmem:[%s3 + $0xf8] sm:$0xff]
    %v1182 = vld [vmem:[%s3 + $0x100] sm:$0xff]
    %v1183 = vld [vmem:[%s3 + $0x108] sm:$0xff]
    %v1184 = vld [vmem:[%s3 + $0x110] sm:$0xff]
    %v1185 = vld [vmem:[%s3 + $0x118] sm:$0xff]
    %v1186 = vld [vmem:[%s3 + $0x120] sm:$0xff]
    %v1187 = vld [vmem:[%s3 + $0x128] sm:$0xff]
    %v1188 = vld [vmem:[%s3 + $0x130] sm:$0xff]
    %v1189 = vld [vmem:[%s3 + $0x138] sm:$0xff]
    %v1190 = vld [vmem:[%s3 + $0x140] sm:$0xff]
    %v1191 = vld [vmem:[%s3 + $0x148] sm:$0xff]
    %v1192 = vld [vmem:[%s3 + $0x150] sm:$0xff]
    %v1193 = vld [vmem:[%s3 + $0x158] sm:$0xff]
    %v1194 = vld [vmem:[%s3 + $0x160] sm:$0xff]
    %v1195 = vld [vmem:[%s3 + $0x168] sm:$0xff]
    %v1196 = vld [vmem:[%s3 + $0x170] sm:$0xff]
    %v1197 = vld [vmem:[%s3 + $0x178] sm:$0xff]
    %v1198 = vld [vmem:[%s3 + $0x180] sm:$0xff]
    %v1199 = vld [vmem:[%s3 + $0x188] sm:$0xff]
    %v1200 = vld [vmem:[%s3 + $0x190] sm:$0xff]
    %v1201 = vld [vmem:[%s3 + $0x198] sm:$0xff]
    %v1202 = vld [vmem:[%s3 + $0x1a0] sm:$0xff]
    %v1203 = vld [vmem:[%s3 + $0x1a8] sm:$0xff]
    %v1204 = vld [vmem:[%s3 + $0x1b0] sm:$0xff]
    %v1205 = vld [vmem:[%s3 + $0x1b8] sm:$0xff]
    %v1206 = vld [vmem:[%s3 + $0x1c0] sm:$0xff]
    %v1207 = vld [vmem:[%s3 + $0x1c8] sm:$0xff]
    %v1208 = vld [vmem:[%s3 + $0x1d0] sm:$0xff]
    %v1209 = vld [vmem:[%s3 + $0x1d8] sm:$0xff]
    %v1210 = vld [vmem:[%s3 + $0x1e0] sm:$0xff]
    %v1211 = vld [vmem:[%s3 + $0x1e8] sm:$0xff]
    %v1212 = vld [vmem:[%s3 + $0x1f0] sm:$0xff]
    %v1213 = vld [vmem:[%s3 + $0x1f8] sm:$0xff]
    %v1214 = vld [vmem:[%s3 + $0x200] sm:$0xff]
    %v1215 = vld [vmem:[%s3 + $0x208] sm:$0xff]
    %v1216 = vld [vmem:[%s3 + $0x210] sm:$0xff]
    %v1217 = vld [vmem:[%s3 + $0x218] sm:$0xff]
    %v1218 = vld [vmem:[%s3 + $0x220] sm:$0xff]
    %v1219 = vld [vmem:[%s3 + $0x228] sm:$0xff]
    %v1220 = vld [vmem:[%s3 + $0x230] sm:$0xff]
    %v1221 = vld [vmem:[%s3 + $0x238] sm:$0xff]
    %v1222 = vld [vmem:[%s3 + $0x240] sm:$0xff]
    %v1223 = vld [vmem:[%s3 + $0x248] sm:$0xff]
    %v1224 = vld [vmem:[%s3 + $0x250] sm:$0xff]
    %v1225 = vld [vmem:[%s3 + $0x258] sm:$0xff]
    %v1226 = vld [vmem:[%s3 + $0x260] sm:$0xff]
    %v1227 = vld [vmem:[%s3 + $0x268] sm:$0xff]
    %v1228 = vld [vmem:[%s3 + $0x270] sm:$0xff]
    %v1229 = vld [vmem:[%s3 + $0x278] sm:$0xff]
    %v1230 = vld [vmem:[%s3 + $0x280] sm:$0xff]
    %v1231 = vld [vmem:[%s3 + $0x288] sm:$0xff]
    %v1232 = vld [vmem:[%s3 + $0x290] sm:$0xff]
    %v1233 = vld [vmem:[%s3 + $0x298] sm:$0xff]
    %v1234 = vld [vmem:[%s3 + $0x2a0] sm:$0xff]
    %v1235 = vld [vmem:[%s3 + $0x2a8] sm:$0xff]
    %v1236 = vld [vmem:[%s3 + $0x2b0] sm:$0xff]
    %v1237 = vld [vmem:[%s3 + $0x2b8] sm:$0xff]
    %v1238 = vld [vmem:[%s3 + $0x2c0] sm:$0xff]
    %v1239 = vld [vmem:[%s3 + $0x2c8] sm:$0xff]
    %v1240 = vld [vmem:[%s3 + $0x2d0] sm:$0xff]
    %v1241 = vld [vmem:[%s3 + $0x2d8] sm:$0xff]
    %v1242 = vld [vmem:[%s3 + $0x2e0] sm:$0xff]
    %v1243 = vld [vmem:[%s3 + $0x2e8] sm:$0xff]
    %v1244 = vld [vmem:[%s3 + $0x2f0] sm:$0xff]
    %v1245 = vld [vmem:[%s3 + $0x2f8] sm:$0xff]
    %v1246 = vld [vmem:[%s3 + $0x300] sm:$0xff]
    %v1247 = vld [vmem:[%s3 + $0x308] sm:$0xff]
    %v1248 = vld [vmem:[%s3 + $0x310] sm:$0xff]
    %v1249 = vld [vmem:[%s3 + $0x318] sm:$0xff]
    %v1250 = vld [vmem:[%s3 + $0x320] sm:$0xff]
    %v1251 = vld [vmem:[%s3 + $0x328] sm:$0xff]
    %v1252 = vld [vmem:[%s3 + $0x330] sm:$0xff]
    %v1253 = vld [vmem:[%s3 + $0x338] sm:$0xff]
    %v1254 = vld [vmem:[%s3 + $0x340] sm:$0xff]
    %v1255 = vld [vmem:[%s3 + $0x348] sm:$0xff]
    %v1256 = vld [vmem:[%s3 + $0x350] sm:$0xff]
    %v1257 = vld [vmem:[%s3 + $0x358] sm:$0xff]
    %v1258 = vld [vmem:[%s3 + $0x360] sm:$0xff]
    %v1259 = vld [vmem:[%s3 + $0x368] sm:$0xff]
    %v1260 = vld [vmem:[%s3 + $0x370] sm:$0xff]
    %v1261 = vld [vmem:[%s3 + $0x378] sm:$0xff]
    %v1262 = vld [vmem:[%s3 + $0x380] sm:$0xff]
    %v1263 = vld [vmem:[%s3 + $0x388] sm:$0xff]
    %v1264 = vld [vmem:[%s3 + $0x390] sm:$0xff]
    %v1265 = vld [vmem:[%s3 + $0x398] sm:$0xff]
    %v1266 = vld [vmem:[%s3 + $0x3a0] sm:$0xff]
    %v1267 = vld [vmem:[%s3 + $0x3a8] sm:$0xff]
    %v1268 = vld [vmem:[%s3 + $0x3b0] sm:$0xff]
    %v1269 = vld [vmem:[%s3 + $0x3b8] sm:$0xff]
    %v1270 = vld [vmem:[%s3 + $0x3c0] sm:$0xff]
    %v1271 = vld [vmem:[%s3 + $0x3c8] sm:$0xff]
    %v1272 = vld [vmem:[%s3 + $0x3d0] sm:$0xff]
    %v1273 = vld [vmem:[%s3 + $0x3d8] sm:$0xff]
    %v1274 = vld [vmem:[%s3 + $0x3e0] sm:$0xff]
    %v1275 = vld [vmem:[%s3 + $0x3e8] sm:$0xff]
    %v1276 = vld [vmem:[%s3 + $0x3f0] sm:$0xff]
    %v1277 = vld [vmem:[%s3 + $0x3f8] sm:$0xff]
    %v1278 = vld [vmem:[%s4] sm:$0xff]
    %v1279 = vld [vmem:[%s4 + $0x8] sm:$0xff]
    %v1280 = vld [vmem:[%s4 + $0x10] sm:$0xff]
    %v1281 = vld [vmem:[%s4 + $0x18] sm:$0xff]
    %v1282 = vld [vmem:[%s4 + $0x20] sm:$0xff]
    %v1283 = vld [vmem:[%s4 + $0x28] sm:$0xff]
    %v1284 = vld [vmem:[%s4 + $0x30] sm:$0xff]
    %v1285 = vld [vmem:[%s4 + $0x38] sm:$0xff]
    %v1286 = vld [vmem:[%s4 + $0x40] sm:$0xff]
    %v1287 = vld [vmem:[%s4 + $0x48] sm:$0xff]
    %v1288 = vld [vmem:[%s4 + $0x50] sm:$0xff]
    %v1289 = vld [vmem:[%s4 + $0x58] sm:$0xff]
    %v1290 = vld [vmem:[%s4 + $0x60] sm:$0xff]
    %v1291 = vld [vmem:[%s4 + $0x68] sm:$0xff]
    %v1292 = vld [vmem:[%s4 + $0x70] sm:$0xff]
    %v1293 = vld [vmem:[%s4 + $0x78] sm:$0xff]
    %v1294 = vld [vmem:[%s4 + $0x80] sm:$0xff]
    %v1295 = vld [vmem:[%s4 + $0x88] sm:$0xff]
    %v1296 = vld [vmem:[%s4 + $0x90] sm:$0xff]
    %v1297 = vld [vmem:[%s4 + $0x98] sm:$0xff]
    %v1298 = vld [vmem:[%s4 + $0xa0] sm:$0xff]
    %v1299 = vld [vmem:[%s4 + $0xa8] sm:$0xff]
    %v1300 = vld [vmem:[%s4 + $0xb0] sm:$0xff]
    %v1301 = vld [vmem:[%s4 + $0xb8] sm:$0xff]
    %v1302 = vld [vmem:[%s4 + $0xc0] sm:$0xff]
    %v1303 = vld [vmem:[%s4 + $0xc8] sm:$0xff]
    %v1304 = vld [vmem:[%s4 + $0xd0] sm:$0xff]
    %v1305 = vld [vmem:[%s4 + $0xd8] sm:$0xff]
    %v1306 = vld [vmem:[%s4 + $0xe0] sm:$0xff]
    %v1307 = vld [vmem:[%s4 + $0xe8] sm:$0xff]
    %v1308 = vld [vmem:[%s4 + $0xf0] sm:$0xff]
    %v1309 = vld [vmem:[%s4 + $0xf8] sm:$0xff]
    %v1310 = vld [vmem:[%s4 + $0x100] sm:$0xff]
    %v1311 = vld [vmem:[%s4 + $0x108] sm:$0xff]
    %v1312 = vld [vmem:[%s4 + $0x110] sm:$0xff]
    %v1313 = vld [vmem:[%s4 + $0x118] sm:$0xff]
    %v1314 = vld [vmem:[%s4 + $0x120] sm:$0xff]
    %v1315 = vld [vmem:[%s4 + $0x128] sm:$0xff]
    %v1316 = vld [vmem:[%s4 + $0x130] sm:$0xff]
    %v1317 = vld [vmem:[%s4 + $0x138] sm:$0xff]
    %v1318 = vld [vmem:[%s4 + $0x140] sm:$0xff]
    %v1319 = vld [vmem:[%s4 + $0x148] sm:$0xff]
    %v1320 = vld [vmem:[%s4 + $0x150] sm:$0xff]
    %v1321 = vld [vmem:[%s4 + $0x158] sm:$0xff]
    %v1322 = vld [vmem:[%s4 + $0x160] sm:$0xff]
    %v1323 = vld [vmem:[%s4 + $0x168] sm:$0xff]
    %v1324 = vld [vmem:[%s4 + $0x170] sm:$0xff]
    %v1325 = vld [vmem:[%s4 + $0x178] sm:$0xff]
    %v1326 = vld [vmem:[%s4 + $0x180] sm:$0xff]
    %v1327 = vld [vmem:[%s4 + $0x188] sm:$0xff]
    %v1328 = vld [vmem:[%s4 + $0x190] sm:$0xff]
    %v1329 = vld [vmem:[%s4 + $0x198] sm:$0xff]
    %v1330 = vld [vmem:[%s4 + $0x1a0] sm:$0xff]
    %v1331 = vld [vmem:[%s4 + $0x1a8] sm:$0xff]
    %v1332 = vld [vmem:[%s4 + $0x1b0] sm:$0xff]
    %v1333 = vld [vmem:[%s4 + $0x1b8] sm:$0xff]
    %v1334 = vld [vmem:[%s4 + $0x1c0] sm:$0xff]
    %v1335 = vld [vmem:[%s4 + $0x1c8] sm:$0xff]
    %v1336 = vld [vmem:[%s4 + $0x1d0] sm:$0xff]
    %v1337 = vld [vmem:[%s4 + $0x1d8] sm:$0xff]
    %v1338 = vld [vmem:[%s4 + $0x1e0] sm:$0xff]
    %v1339 = vld [vmem:[%s4 + $0x1e8] sm:$0xff]
    %v1340 = vld [vmem:[%s4 + $0x1f0] sm:$0xff]
    %v1341 = vld [vmem:[%s4 + $0x1f8] sm:$0xff]
    %1343 = vset.pattern.permute.xlu0 0
    %1344 = vperm.xlu0 %1343, %v1278
    %v1345 = vpop.permute.xlu0 %1344
    %1348 = vset.pattern.permute.xlu0 0
    %1349 = vperm.xlu0 %1348, %v1279
    %v1350 = vpop.permute.xlu0 %1349
    %1353 = vset.pattern.permute.xlu0 0
    %1354 = vperm.xlu0 %1353, %v1280
    %v1355 = vpop.permute.xlu0 %1354
    %1358 = vset.pattern.permute.xlu0 0
    %1359 = vperm.xlu0 %1358, %v1281
    %v1360 = vpop.permute.xlu0 %1359
    %1363 = vset.pattern.permute.xlu0 0
    %1364 = vperm.xlu0 %1363, %v1282
    %v1365 = vpop.permute.xlu0 %1364
    %1368 = vset.pattern.permute.xlu0 0
    %1369 = vperm.xlu0 %1368, %v1283
    %v1370 = vpop.permute.xlu0 %1369
    %1373 = vset.pattern.permute.xlu0 0
    %1374 = vperm.xlu0 %1373, %v1284
    %v1375 = vpop.permute.xlu0 %1374
    %1378 = vset.pattern.permute.xlu0 0
    %1379 = vperm.xlu0 %1378, %v1285
    %v1380 = vpop.permute.xlu0 %1379
    %1383 = vset.pattern.permute.xlu0 0
    %1384 = vperm.xlu0 %1383, %v1286
    %v1385 = vpop.permute.xlu0 %1384
    %1388 = vset.pattern.permute.xlu0 0
    %1389 = vperm.xlu0 %1388, %v1287
    %v1390 = vpop.permute.xlu0 %1389
    %1393 = vset.pattern.permute.xlu0 0
    %1394 = vperm.xlu0 %1393, %v1288
    %v1395 = vpop.permute.xlu0 %1394
    %1398 = vset.pattern.permute.xlu0 0
    %1399 = vperm.xlu0 %1398, %v1289
    %v1400 = vpop.permute.xlu0 %1399
    %1403 = vset.pattern.permute.xlu0 0
    %1404 = vperm.xlu0 %1403, %v1290
    %v1405 = vpop.permute.xlu0 %1404
    %1408 = vset.pattern.permute.xlu0 0
    %1409 = vperm.xlu0 %1408, %v1291
    %v1410 = vpop.permute.xlu0 %1409
    %1413 = vset.pattern.permute.xlu0 0
    %1414 = vperm.xlu0 %1413, %v1292
    %v1415 = vpop.permute.xlu0 %1414
    %1418 = vset.pattern.permute.xlu0 0
    %1419 = vperm.xlu0 %1418, %v1293
    %v1420 = vpop.permute.xlu0 %1419
    %1423 = vset.pattern.permute.xlu0 0
    %1424 = vperm.xlu0 %1423, %v1294
    %v1425 = vpop.permute.xlu0 %1424
    %1428 = vset.pattern.permute.xlu0 0
    %1429 = vperm.xlu0 %1428, %v1295
    %v1430 = vpop.permute.xlu0 %1429
    %1433 = vset.pattern.permute.xlu0 0
    %1434 = vperm.xlu0 %1433, %v1296
    %v1435 = vpop.permute.xlu0 %1434
    %1438 = vset.pattern.permute.xlu0 0
    %1439 = vperm.xlu0 %1438, %v1297
    %v1440 = vpop.permute.xlu0 %1439
    %1443 = vset.pattern.permute.xlu0 0
    %1444 = vperm.xlu0 %1443, %v1298
    %v1445 = vpop.permute.xlu0 %1444
    %1448 = vset.pattern.permute.xlu0 0
    %1449 = vperm.xlu0 %1448, %v1299
    %v1450 = vpop.permute.xlu0 %1449
    %1453 = vset.pattern.permute.xlu0 0
    %1454 = vperm.xlu0 %1453, %v1300
    %v1455 = vpop.permute.xlu0 %1454
    %1458 = vset.pattern.permute.xlu0 0
    %1459 = vperm.xlu0 %1458, %v1301
    %v1460 = vpop.permute.xlu0 %1459
    %1463 = vset.pattern.permute.xlu0 0
    %1464 = vperm.xlu0 %1463, %v1302
    %v1465 = vpop.permute.xlu0 %1464
    %1468 = vset.pattern.permute.xlu0 0
    %1469 = vperm.xlu0 %1468, %v1303
    %v1470 = vpop.permute.xlu0 %1469
    %1473 = vset.pattern.permute.xlu0 0
    %1474 = vperm.xlu0 %1473, %v1304
    %v1475 = vpop.permute.xlu0 %1474
    %1478 = vset.pattern.permute.xlu0 0
    %1479 = vperm.xlu0 %1478, %v1305
    %v1480 = vpop.permute.xlu0 %1479
    %1483 = vset.pattern.permute.xlu0 0
    %1484 = vperm.xlu0 %1483, %v1306
    %v1485 = vpop.permute.xlu0 %1484
    %1488 = vset.pattern.permute.xlu0 0
    %1489 = vperm.xlu0 %1488, %v1307
    %v1490 = vpop.permute.xlu0 %1489
    %1493 = vset.pattern.permute.xlu0 0
    %1494 = vperm.xlu0 %1493, %v1308
    %v1495 = vpop.permute.xlu0 %1494
    %1498 = vset.pattern.permute.xlu0 0
    %1499 = vperm.xlu0 %1498, %v1309
    %v1500 = vpop.permute.xlu0 %1499
    %1503 = vset.pattern.permute.xlu0 0
    %1504 = vperm.xlu0 %1503, %v1310
    %v1505 = vpop.permute.xlu0 %1504
    %1508 = vset.pattern.permute.xlu0 0
    %1509 = vperm.xlu0 %1508, %v1311
    %v1510 = vpop.permute.xlu0 %1509
    %1513 = vset.pattern.permute.xlu0 0
    %1514 = vperm.xlu0 %1513, %v1312
    %v1515 = vpop.permute.xlu0 %1514
    %1518 = vset.pattern.permute.xlu0 0
    %1519 = vperm.xlu0 %1518, %v1313
    %v1520 = vpop.permute.xlu0 %1519
    %1523 = vset.pattern.permute.xlu0 0
    %1524 = vperm.xlu0 %1523, %v1314
    %v1525 = vpop.permute.xlu0 %1524
    %1528 = vset.pattern.permute.xlu0 0
    %1529 = vperm.xlu0 %1528, %v1315
    %v1530 = vpop.permute.xlu0 %1529
    %1533 = vset.pattern.permute.xlu0 0
    %1534 = vperm.xlu0 %1533, %v1316
    %v1535 = vpop.permute.xlu0 %1534
    %1538 = vset.pattern.permute.xlu0 0
    %1539 = vperm.xlu0 %1538, %v1317
    %v1540 = vpop.permute.xlu0 %1539
    %1543 = vset.pattern.permute.xlu0 0
    %1544 = vperm.xlu0 %1543, %v1318
    %v1545 = vpop.permute.xlu0 %1544
    %1548 = vset.pattern.permute.xlu0 0
    %1549 = vperm.xlu0 %1548, %v1319
    %v1550 = vpop.permute.xlu0 %1549
    %1553 = vset.pattern.permute.xlu0 0
    %1554 = vperm.xlu0 %1553, %v1320
    %v1555 = vpop.permute.xlu0 %1554
    %1558 = vset.pattern.permute.xlu0 0
    %1559 = vperm.xlu0 %1558, %v1321
    %v1560 = vpop.permute.xlu0 %1559
    %1563 = vset.pattern.permute.xlu0 0
    %1564 = vperm.xlu0 %1563, %v1322
    %v1565 = vpop.permute.xlu0 %1564
    %1568 = vset.pattern.permute.xlu0 0
    %1569 = vperm.xlu0 %1568, %v1323
    %v1570 = vpop.permute.xlu0 %1569
    %1573 = vset.pattern.permute.xlu0 0
    %1574 = vperm.xlu0 %1573, %v1324
    %v1575 = vpop.permute.xlu0 %1574
    %1578 = vset.pattern.permute.xlu0 0
    %1579 = vperm.xlu0 %1578, %v1325
    %v1580 = vpop.permute.xlu0 %1579
    %1583 = vset.pattern.permute.xlu0 0
    %1584 = vperm.xlu0 %1583, %v1326
    %v1585 = vpop.permute.xlu0 %1584
    %1588 = vset.pattern.permute.xlu0 0
    %1589 = vperm.xlu0 %1588, %v1327
    %v1590 = vpop.permute.xlu0 %1589
    %1593 = vset.pattern.permute.xlu0 0
    %1594 = vperm.xlu0 %1593, %v1328
    %v1595 = vpop.permute.xlu0 %1594
    %1598 = vset.pattern.permute.xlu0 0
    %1599 = vperm.xlu0 %1598, %v1329
    %v1600 = vpop.permute.xlu0 %1599
    %1603 = vset.pattern.permute.xlu0 0
    %1604 = vperm.xlu0 %1603, %v1330
    %v1605 = vpop.permute.xlu0 %1604
    %1608 = vset.pattern.permute.xlu0 0
    %1609 = vperm.xlu0 %1608, %v1331
    %v1610 = vpop.permute.xlu0 %1609
    %1613 = vset.pattern.permute.xlu0 0
    %1614 = vperm.xlu0 %1613, %v1332
    %v1615 = vpop.permute.xlu0 %1614
    %1618 = vset.pattern.permute.xlu0 0
    %1619 = vperm.xlu0 %1618, %v1333
    %v1620 = vpop.permute.xlu0 %1619
    %1623 = vset.pattern.permute.xlu0 0
    %1624 = vperm.xlu0 %1623, %v1334
    %v1625 = vpop.permute.xlu0 %1624
    %1628 = vset.pattern.permute.xlu0 0
    %1629 = vperm.xlu0 %1628, %v1335
    %v1630 = vpop.permute.xlu0 %1629
    %1633 = vset.pattern.permute.xlu0 0
    %1634 = vperm.xlu0 %1633, %v1336
    %v1635 = vpop.permute.xlu0 %1634
    %1638 = vset.pattern.permute.xlu0 0
    %1639 = vperm.xlu0 %1638, %v1337
    %v1640 = vpop.permute.xlu0 %1639
    %1643 = vset.pattern.permute.xlu0 0
    %1644 = vperm.xlu0 %1643, %v1338
    %v1645 = vpop.permute.xlu0 %1644
    %1648 = vset.pattern.permute.xlu0 0
    %1649 = vperm.xlu0 %1648, %v1339
    %v1650 = vpop.permute.xlu0 %1649
    %1653 = vset.pattern.permute.xlu0 0
    %1654 = vperm.xlu0 %1653, %v1340
    %v1655 = vpop.permute.xlu0 %1654
    %1658 = vset.pattern.permute.xlu0 0
    %1659 = vperm.xlu0 %1658, %v1341
    %v1660 = vpop.permute.xlu0 %1659
    %v1790 = vunpack.c.l.b16 %v1150
    %v1791 = vunpack.c.h.b16 %v1150
    %v1792 = vunpack.c.l.b16 %v1151
    %v1793 = vunpack.c.h.b16 %v1151
    %v1794 = vunpack.c.l.b16 %v1152
    %v1795 = vunpack.c.h.b16 %v1152
    %v1796 = vunpack.c.l.b16 %v1153
    %v1797 = vunpack.c.h.b16 %v1153
    %v1798 = vunpack.c.l.b16 %v1154
    %v1799 = vunpack.c.h.b16 %v1154
    %v1800 = vunpack.c.l.b16 %v1155
    %v1801 = vunpack.c.h.b16 %v1155
    %v1802 = vunpack.c.l.b16 %v1156
    %v1803 = vunpack.c.h.b16 %v1156
    %v1804 = vunpack.c.l.b16 %v1157
    %v1805 = vunpack.c.h.b16 %v1157
    %v1806 = vunpack.c.l.b16 %v1158
    %v1807 = vunpack.c.h.b16 %v1158
    %v1808 = vunpack.c.l.b16 %v1159
    %v1809 = vunpack.c.h.b16 %v1159
    %v1810 = vunpack.c.l.b16 %v1160
    %v1811 = vunpack.c.h.b16 %v1160
    %v1812 = vunpack.c.l.b16 %v1161
    %v1813 = vunpack.c.h.b16 %v1161
    %v1814 = vunpack.c.l.b16 %v1162
    %v1815 = vunpack.c.h.b16 %v1162
    %v1816 = vunpack.c.l.b16 %v1163
    %v1817 = vunpack.c.h.b16 %v1163
    %v1818 = vunpack.c.l.b16 %v1164
    %v1819 = vunpack.c.h.b16 %v1164
    %v1820 = vunpack.c.l.b16 %v1165
    %v1821 = vunpack.c.h.b16 %v1165
    %v1822 = vunpack.c.l.b16 %v1166
    %v1823 = vunpack.c.h.b16 %v1166
    %v1824 = vunpack.c.l.b16 %v1167
    %v1825 = vunpack.c.h.b16 %v1167
    %v1826 = vunpack.c.l.b16 %v1168
    %v1827 = vunpack.c.h.b16 %v1168
    %v1828 = vunpack.c.l.b16 %v1169
    %v1829 = vunpack.c.h.b16 %v1169
    %v1830 = vunpack.c.l.b16 %v1170
    %v1831 = vunpack.c.h.b16 %v1170
    %v1832 = vunpack.c.l.b16 %v1171
    %v1833 = vunpack.c.h.b16 %v1171
    %v1834 = vunpack.c.l.b16 %v1172
    %v1835 = vunpack.c.h.b16 %v1172
    %v1836 = vunpack.c.l.b16 %v1173
    %v1837 = vunpack.c.h.b16 %v1173
    %v1838 = vunpack.c.l.b16 %v1174
    %v1839 = vunpack.c.h.b16 %v1174
    %v1840 = vunpack.c.l.b16 %v1175
    %v1841 = vunpack.c.h.b16 %v1175
    %v1842 = vunpack.c.l.b16 %v1176
    %v1843 = vunpack.c.h.b16 %v1176
    %v1844 = vunpack.c.l.b16 %v1177
    %v1845 = vunpack.c.h.b16 %v1177
    %v1846 = vunpack.c.l.b16 %v1178
    %v1847 = vunpack.c.h.b16 %v1178
    %v1848 = vunpack.c.l.b16 %v1179
    %v1849 = vunpack.c.h.b16 %v1179
    %v1850 = vunpack.c.l.b16 %v1180
    %v1851 = vunpack.c.h.b16 %v1180
    %v1852 = vunpack.c.l.b16 %v1181
    %v1853 = vunpack.c.h.b16 %v1181
    %v1854 = vunpack.c.l.b16 %v1182
    %v1855 = vunpack.c.h.b16 %v1182
    %v1856 = vunpack.c.l.b16 %v1183
    %v1857 = vunpack.c.h.b16 %v1183
    %v1858 = vunpack.c.l.b16 %v1184
    %v1859 = vunpack.c.h.b16 %v1184
    %v1860 = vunpack.c.l.b16 %v1185
    %v1861 = vunpack.c.h.b16 %v1185
    %v1862 = vunpack.c.l.b16 %v1186
    %v1863 = vunpack.c.h.b16 %v1186
    %v1864 = vunpack.c.l.b16 %v1187
    %v1865 = vunpack.c.h.b16 %v1187
    %v1866 = vunpack.c.l.b16 %v1188
    %v1867 = vunpack.c.h.b16 %v1188
    %v1868 = vunpack.c.l.b16 %v1189
    %v1869 = vunpack.c.h.b16 %v1189
    %v1870 = vunpack.c.l.b16 %v1190
    %v1871 = vunpack.c.h.b16 %v1190
    %v1872 = vunpack.c.l.b16 %v1191
    %v1873 = vunpack.c.h.b16 %v1191
    %v1874 = vunpack.c.l.b16 %v1192
    %v1875 = vunpack.c.h.b16 %v1192
    %v1876 = vunpack.c.l.b16 %v1193
    %v1877 = vunpack.c.h.b16 %v1193
    %v1878 = vunpack.c.l.b16 %v1194
    %v1879 = vunpack.c.h.b16 %v1194
    %v1880 = vunpack.c.l.b16 %v1195
    %v1881 = vunpack.c.h.b16 %v1195
    %v1882 = vunpack.c.l.b16 %v1196
    %v1883 = vunpack.c.h.b16 %v1196
    %v1884 = vunpack.c.l.b16 %v1197
    %v1885 = vunpack.c.h.b16 %v1197
    %v1886 = vunpack.c.l.b16 %v1198
    %v1887 = vunpack.c.h.b16 %v1198
    %v1888 = vunpack.c.l.b16 %v1199
    %v1889 = vunpack.c.h.b16 %v1199
    %v1890 = vunpack.c.l.b16 %v1200
    %v1891 = vunpack.c.h.b16 %v1200
    %v1892 = vunpack.c.l.b16 %v1201
    %v1893 = vunpack.c.h.b16 %v1201
    %v1894 = vunpack.c.l.b16 %v1202
    %v1895 = vunpack.c.h.b16 %v1202
    %v1896 = vunpack.c.l.b16 %v1203
    %v1897 = vunpack.c.h.b16 %v1203
    %v1898 = vunpack.c.l.b16 %v1204
    %v1899 = vunpack.c.h.b16 %v1204
    %v1900 = vunpack.c.l.b16 %v1205
    %v1901 = vunpack.c.h.b16 %v1205
    %v1902 = vunpack.c.l.b16 %v1206
    %v1903 = vunpack.c.h.b16 %v1206
    %v1904 = vunpack.c.l.b16 %v1207
    %v1905 = vunpack.c.h.b16 %v1207
    %v1906 = vunpack.c.l.b16 %v1208
    %v1907 = vunpack.c.h.b16 %v1208
    %v1908 = vunpack.c.l.b16 %v1209
    %v1909 = vunpack.c.h.b16 %v1209
    %v1910 = vunpack.c.l.b16 %v1210
    %v1911 = vunpack.c.h.b16 %v1210
    %v1912 = vunpack.c.l.b16 %v1211
    %v1913 = vunpack.c.h.b16 %v1211
    %v1914 = vunpack.c.l.b16 %v1212
    %v1915 = vunpack.c.h.b16 %v1212
    %v1916 = vunpack.c.l.b16 %v1213
    %v1917 = vunpack.c.h.b16 %v1213
    %v1918 = vunpack.c.l.b16 %v1214
    %v1919 = vunpack.c.h.b16 %v1214
    %v1920 = vunpack.c.l.b16 %v1215
    %v1921 = vunpack.c.h.b16 %v1215
    %v1922 = vunpack.c.l.b16 %v1216
    %v1923 = vunpack.c.h.b16 %v1216
    %v1924 = vunpack.c.l.b16 %v1217
    %v1925 = vunpack.c.h.b16 %v1217
    %v1926 = vunpack.c.l.b16 %v1218
    %v1927 = vunpack.c.h.b16 %v1218
    %v1928 = vunpack.c.l.b16 %v1219
    %v1929 = vunpack.c.h.b16 %v1219
    %v1930 = vunpack.c.l.b16 %v1220
    %v1931 = vunpack.c.h.b16 %v1220
    %v1932 = vunpack.c.l.b16 %v1221
    %v1933 = vunpack.c.h.b16 %v1221
    %v1934 = vunpack.c.l.b16 %v1222
    %v1935 = vunpack.c.h.b16 %v1222
    %v1936 = vunpack.c.l.b16 %v1223
    %v1937 = vunpack.c.h.b16 %v1223
    %v1938 = vunpack.c.l.b16 %v1224
    %v1939 = vunpack.c.h.b16 %v1224
    %v1940 = vunpack.c.l.b16 %v1225
    %v1941 = vunpack.c.h.b16 %v1225
    %v1942 = vunpack.c.l.b16 %v1226
    %v1943 = vunpack.c.h.b16 %v1226
    %v1944 = vunpack.c.l.b16 %v1227
    %v1945 = vunpack.c.h.b16 %v1227
    %v1946 = vunpack.c.l.b16 %v1228
    %v1947 = vunpack.c.h.b16 %v1228
    %v1948 = vunpack.c.l.b16 %v1229
    %v1949 = vunpack.c.h.b16 %v1229
    %v1950 = vunpack.c.l.b16 %v1230
    %v1951 = vunpack.c.h.b16 %v1230
    %v1952 = vunpack.c.l.b16 %v1231
    %v1953 = vunpack.c.h.b16 %v1231
    %v1954 = vunpack.c.l.b16 %v1232
    %v1955 = vunpack.c.h.b16 %v1232
    %v1956 = vunpack.c.l.b16 %v1233
    %v1957 = vunpack.c.h.b16 %v1233
    %v1958 = vunpack.c.l.b16 %v1234
    %v1959 = vunpack.c.h.b16 %v1234
    %v1960 = vunpack.c.l.b16 %v1235
    %v1961 = vunpack.c.h.b16 %v1235
    %v1962 = vunpack.c.l.b16 %v1236
    %v1963 = vunpack.c.h.b16 %v1236
    %v1964 = vunpack.c.l.b16 %v1237
    %v1965 = vunpack.c.h.b16 %v1237
    %v1966 = vunpack.c.l.b16 %v1238
    %v1967 = vunpack.c.h.b16 %v1238
    %v1968 = vunpack.c.l.b16 %v1239
    %v1969 = vunpack.c.h.b16 %v1239
    %v1970 = vunpack.c.l.b16 %v1240
    %v1971 = vunpack.c.h.b16 %v1240
    %v1972 = vunpack.c.l.b16 %v1241
    %v1973 = vunpack.c.h.b16 %v1241
    %v1974 = vunpack.c.l.b16 %v1242
    %v1975 = vunpack.c.h.b16 %v1242
    %v1976 = vunpack.c.l.b16 %v1243
    %v1977 = vunpack.c.h.b16 %v1243
    %v1978 = vunpack.c.l.b16 %v1244
    %v1979 = vunpack.c.h.b16 %v1244
    %v1980 = vunpack.c.l.b16 %v1245
    %v1981 = vunpack.c.h.b16 %v1245
    %v1982 = vunpack.c.l.b16 %v1246
    %v1983 = vunpack.c.h.b16 %v1246
    %v1984 = vunpack.c.l.b16 %v1247
    %v1985 = vunpack.c.h.b16 %v1247
    %v1986 = vunpack.c.l.b16 %v1248
    %v1987 = vunpack.c.h.b16 %v1248
    %v1988 = vunpack.c.l.b16 %v1249
    %v1989 = vunpack.c.h.b16 %v1249
    %v1990 = vunpack.c.l.b16 %v1250
    %v1991 = vunpack.c.h.b16 %v1250
    %v1992 = vunpack.c.l.b16 %v1251
    %v1993 = vunpack.c.h.b16 %v1251
    %v1994 = vunpack.c.l.b16 %v1252
    %v1995 = vunpack.c.h.b16 %v1252
    %v1996 = vunpack.c.l.b16 %v1253
    %v1997 = vunpack.c.h.b16 %v1253
    %v1998 = vunpack.c.l.b16 %v1254
    %v1999 = vunpack.c.h.b16 %v1254
    %v2000 = vunpack.c.l.b16 %v1255
    %v2001 = vunpack.c.h.b16 %v1255
    %v2002 = vunpack.c.l.b16 %v1256
    %v2003 = vunpack.c.h.b16 %v1256
    %v2004 = vunpack.c.l.b16 %v1257
    %v2005 = vunpack.c.h.b16 %v1257
    %v2006 = vunpack.c.l.b16 %v1258
    %v2007 = vunpack.c.h.b16 %v1258
    %v2008 = vunpack.c.l.b16 %v1259
    %v2009 = vunpack.c.h.b16 %v1259
    %v2010 = vunpack.c.l.b16 %v1260
    %v2011 = vunpack.c.h.b16 %v1260
    %v2012 = vunpack.c.l.b16 %v1261
    %v2013 = vunpack.c.h.b16 %v1261
    %v2014 = vunpack.c.l.b16 %v1262
    %v2015 = vunpack.c.h.b16 %v1262
    %v2016 = vunpack.c.l.b16 %v1263
    %v2017 = vunpack.c.h.b16 %v1263
    %v2018 = vunpack.c.l.b16 %v1264
    %v2019 = vunpack.c.h.b16 %v1264
    %v2020 = vunpack.c.l.b16 %v1265
    %v2021 = vunpack.c.h.b16 %v1265
    %v2022 = vunpack.c.l.b16 %v1266
    %v2023 = vunpack.c.h.b16 %v1266
    %v2024 = vunpack.c.l.b16 %v1267
    %v2025 = vunpack.c.h.b16 %v1267
    %v2026 = vunpack.c.l.b16 %v1268
    %v2027 = vunpack.c.h.b16 %v1268
    %v2028 = vunpack.c.l.b16 %v1269
    %v2029 = vunpack.c.h.b16 %v1269
    %v2030 = vunpack.c.l.b16 %v1270
    %v2031 = vunpack.c.h.b16 %v1270
    %v2032 = vunpack.c.l.b16 %v1271
    %v2033 = vunpack.c.h.b16 %v1271
    %v2034 = vunpack.c.l.b16 %v1272
    %v2035 = vunpack.c.h.b16 %v1272
    %v2036 = vunpack.c.l.b16 %v1273
    %v2037 = vunpack.c.h.b16 %v1273
    %v2038 = vunpack.c.l.b16 %v1274
    %v2039 = vunpack.c.h.b16 %v1274
    %v2040 = vunpack.c.l.b16 %v1275
    %v2041 = vunpack.c.h.b16 %v1275
    %v2042 = vunpack.c.l.b16 %v1276
    %v2043 = vunpack.c.h.b16 %v1276
    %v2044 = vunpack.c.l.b16 %v1277
    %v2045 = vunpack.c.h.b16 %v1277
    %v2046 = vpack.c.b16 %v1794, %v1790
    %v2047 = vpack.c.b16 %v1795, %v1791
    %v2048 = vpack.c.b16 %v1796, %v1792
    %v2049 = vpack.c.b16 %v1797, %v1793
    %v2050 = vpack.c.b16 %v1802, %v1798
    %v2051 = vpack.c.b16 %v1803, %v1799
    %v2052 = vpack.c.b16 %v1804, %v1800
    %v2053 = vpack.c.b16 %v1805, %v1801
    %v2054 = vpack.c.b16 %v1810, %v1806
    %v2055 = vpack.c.b16 %v1811, %v1807
    %v2056 = vpack.c.b16 %v1812, %v1808
    %v2057 = vpack.c.b16 %v1813, %v1809
    %v2058 = vpack.c.b16 %v1818, %v1814
    %v2059 = vpack.c.b16 %v1819, %v1815
    %v2060 = vpack.c.b16 %v1820, %v1816
    %v2061 = vpack.c.b16 %v1821, %v1817
    %v2062 = vpack.c.b16 %v1826, %v1822
    %v2063 = vpack.c.b16 %v1827, %v1823
    %v2064 = vpack.c.b16 %v1828, %v1824
    %v2065 = vpack.c.b16 %v1829, %v1825
    %v2066 = vpack.c.b16 %v1834, %v1830
    %v2067 = vpack.c.b16 %v1835, %v1831
    %v2068 = vpack.c.b16 %v1836, %v1832
    %v2069 = vpack.c.b16 %v1837, %v1833
    %v2070 = vpack.c.b16 %v1842, %v1838
    %v2071 = vpack.c.b16 %v1843, %v1839
    %v2072 = vpack.c.b16 %v1844, %v1840
    %v2073 = vpack.c.b16 %v1845, %v1841
    %v2074 = vpack.c.b16 %v1850, %v1846
    %v2075 = vpack.c.b16 %v1851, %v1847
    %v2076 = vpack.c.b16 %v1852, %v1848
    %v2077 = vpack.c.b16 %v1853, %v1849
    %v2078 = vpack.c.b16 %v1858, %v1854
    %v2079 = vpack.c.b16 %v1859, %v1855
    %v2080 = vpack.c.b16 %v1860, %v1856
    %v2081 = vpack.c.b16 %v1861, %v1857
    %v2082 = vpack.c.b16 %v1866, %v1862
    %v2083 = vpack.c.b16 %v1867, %v1863
    %v2084 = vpack.c.b16 %v1868, %v1864
    %v2085 = vpack.c.b16 %v1869, %v1865
    %v2086 = vpack.c.b16 %v1874, %v1870
    %v2087 = vpack.c.b16 %v1875, %v1871
    %v2088 = vpack.c.b16 %v1876, %v1872
    %v2089 = vpack.c.b16 %v1877, %v1873
    %v2090 = vpack.c.b16 %v1882, %v1878
    %v2091 = vpack.c.b16 %v1883, %v1879
    %v2092 = vpack.c.b16 %v1884, %v1880
    %v2093 = vpack.c.b16 %v1885, %v1881
    %v2094 = vpack.c.b16 %v1890, %v1886
    %v2095 = vpack.c.b16 %v1891, %v1887
    %v2096 = vpack.c.b16 %v1892, %v1888
    %v2097 = vpack.c.b16 %v1893, %v1889
    %v2098 = vpack.c.b16 %v1898, %v1894
    %v2099 = vpack.c.b16 %v1899, %v1895
    %v2100 = vpack.c.b16 %v1900, %v1896
    %v2101 = vpack.c.b16 %v1901, %v1897
    %v2102 = vpack.c.b16 %v1906, %v1902
    %v2103 = vpack.c.b16 %v1907, %v1903
    %v2104 = vpack.c.b16 %v1908, %v1904
    %v2105 = vpack.c.b16 %v1909, %v1905
    %v2106 = vpack.c.b16 %v1914, %v1910
    %v2107 = vpack.c.b16 %v1915, %v1911
    %v2108 = vpack.c.b16 %v1916, %v1912
    %v2109 = vpack.c.b16 %v1917, %v1913
    %v2110 = vpack.c.b16 %v1922, %v1918
    %v2111 = vpack.c.b16 %v1923, %v1919
    %v2112 = vpack.c.b16 %v1924, %v1920
    %v2113 = vpack.c.b16 %v1925, %v1921
    %v2114 = vpack.c.b16 %v1930, %v1926
    %v2115 = vpack.c.b16 %v1931, %v1927
    %v2116 = vpack.c.b16 %v1932, %v1928
    %v2117 = vpack.c.b16 %v1933, %v1929
    %v2118 = vpack.c.b16 %v1938, %v1934
    %v2119 = vpack.c.b16 %v1939, %v1935
    %v2120 = vpack.c.b16 %v1940, %v1936
    %v2121 = vpack.c.b16 %v1941, %v1937
    %v2122 = vpack.c.b16 %v1946, %v1942
    %v2123 = vpack.c.b16 %v1947, %v1943
    %v2124 = vpack.c.b16 %v1948, %v1944
    %v2125 = vpack.c.b16 %v1949, %v1945
    %v2126 = vpack.c.b16 %v1954, %v1950
    %v2127 = vpack.c.b16 %v1955, %v1951
    %v2128 = vpack.c.b16 %v1956, %v1952
    %v2129 = vpack.c.b16 %v1957, %v1953
    %v2130 = vpack.c.b16 %v1962, %v1958
    %v2131 = vpack.c.b16 %v1963, %v1959
    %v2132 = vpack.c.b16 %v1964, %v1960
    %v2133 = vpack.c.b16 %v1965, %v1961
    %v2134 = vpack.c.b16 %v1970, %v1966
    %v2135 = vpack.c.b16 %v1971, %v1967
    %v2136 = vpack.c.b16 %v1972, %v1968
    %v2137 = vpack.c.b16 %v1973, %v1969
    %v2138 = vpack.c.b16 %v1978, %v1974
    %v2139 = vpack.c.b16 %v1979, %v1975
    %v2140 = vpack.c.b16 %v1980, %v1976
    %v2141 = vpack.c.b16 %v1981, %v1977
    %v2142 = vpack.c.b16 %v1986, %v1982
    %v2143 = vpack.c.b16 %v1987, %v1983
    %v2144 = vpack.c.b16 %v1988, %v1984
    %v2145 = vpack.c.b16 %v1989, %v1985
    %v2146 = vpack.c.b16 %v1994, %v1990
    %v2147 = vpack.c.b16 %v1995, %v1991
    %v2148 = vpack.c.b16 %v1996, %v1992
    %v2149 = vpack.c.b16 %v1997, %v1993
    %v2150 = vpack.c.b16 %v2002, %v1998
    %v2151 = vpack.c.b16 %v2003, %v1999
    %v2152 = vpack.c.b16 %v2004, %v2000
    %v2153 = vpack.c.b16 %v2005, %v2001
    %v2154 = vpack.c.b16 %v2010, %v2006
    %v2155 = vpack.c.b16 %v2011, %v2007
    %v2156 = vpack.c.b16 %v2012, %v2008
    %v2157 = vpack.c.b16 %v2013, %v2009
    %v2158 = vpack.c.b16 %v2018, %v2014
    %v2159 = vpack.c.b16 %v2019, %v2015
    %v2160 = vpack.c.b16 %v2020, %v2016
    %v2161 = vpack.c.b16 %v2021, %v2017
    %v2162 = vpack.c.b16 %v2026, %v2022
    %v2163 = vpack.c.b16 %v2027, %v2023
    %v2164 = vpack.c.b16 %v2028, %v2024
    %v2165 = vpack.c.b16 %v2029, %v2025
    %v2166 = vpack.c.b16 %v2034, %v2030
    %v2167 = vpack.c.b16 %v2035, %v2031
    %v2168 = vpack.c.b16 %v2036, %v2032
    %v2169 = vpack.c.b16 %v2037, %v2033
    %v2170 = vpack.c.b16 %v2042, %v2038
    %v2171 = vpack.c.b16 %v2043, %v2039
    %v2172 = vpack.c.b16 %v2044, %v2040
    %v2173 = vpack.c.b16 %v2045, %v2041
    %2302 = vmatprep.subr.bf16.mxu0 0
    %2303 = vmatpush1.bf16.msra.mxu0 %v1118
    %2304 = vmatprep.subr.bf16.mxu0 0
    %2305 = vmatpush1.bf16.msra.mxu0 %v1119
    %2306 = vmatprep.subr.bf16.mxu0 0
    %2307 = vmatpush1.bf16.msra.mxu0 %v1120
    %2308 = vmatprep.subr.bf16.mxu0 0
    %2309 = vmatpush1.bf16.msra.mxu0 %v1121
    %2310 = vmatprep.subr.bf16.mxu0 0
    %2311 = vmatpush1.bf16.msra.mxu0 %v1122
    %2312 = vmatprep.subr.bf16.mxu0 0
    %2313 = vmatpush1.bf16.msra.mxu0 %v1123
    %2314 = vmatprep.subr.bf16.mxu0 0
    %2315 = vmatpush1.bf16.msra.mxu0 %v1124
    %2316 = vmatprep.subr.bf16.mxu0 0
    %2317 = vmatpush1.bf16.msra.mxu0 %v1125
    %2318 = vmatprep.subr.bf16.mxu0 0
    %2319 = vmatpush1.bf16.msra.mxu0 %v1126
    %2320 = vmatprep.subr.bf16.mxu0 0
    %2321 = vmatpush1.bf16.msra.mxu0 %v1127
    %2322 = vmatprep.subr.bf16.mxu0 0
    %2323 = vmatpush1.bf16.msra.mxu0 %v1128
    %2324 = vmatprep.subr.bf16.mxu0 0
    %2325 = vmatpush1.bf16.msra.mxu0 %v1129
    %2326 = vmatprep.subr.bf16.mxu0 0
    %2327 = vmatpush1.bf16.msra.mxu0 %v1130
    %2328 = vmatprep.subr.bf16.mxu0 0
    %2329 = vmatpush1.bf16.msra.mxu0 %v1131
    %2330 = vmatprep.subr.bf16.mxu0 0
    %2331 = vmatpush1.bf16.msra.mxu0 %v1132
    %2332 = vmatprep.subr.bf16.mxu0 0
    %2333 = vmatpush1.bf16.msra.mxu0 %v1133
    %2334 = vmatprep.mubr.bf16.mxu0 %v2047
    %2335 = vmatmul.mubr.bf16.gmra.mrb[0].mxu0 %v2046
    %v2336 = vpop.f32.mrb[0].mxu0
    %v2337 = vadd.f32 %v1345, %v2336
    %v2338 = vpop.f32.mrb[0].mxu0
    %v2339 = vpop.f32.mrb[0].mxu0
    %v2340 = vadd.f32 %v1350, %v2339
    %v2341 = vpop.f32.mrb[0].mxu0
    %2342 = vmatprep.mubr.bf16.mxu0 %v2051
    %2343 = vmatmul.mubr.bf16.gmra.mrb[0].mxu0 %v2050
    %v2344 = vpop.f32.mrb[0].mxu0
    %v2345 = vadd.f32 %v1355, %v2344
    %v2346 = vpop.f32.mrb[0].mxu0
    %v2347 = vpop.f32.mrb[0].mxu0
    %v2348 = vadd.f32 %v1360, %v2347
    %v2349 = vpop.f32.mrb[0].mxu0
    %2350 = vmatprep.mubr.bf16.mxu0 %v2055
    %2351 = vmatmul.mubr.bf16.gmra.mrb[0].mxu0 %v2054
    %v2352 = vpop.f32.mrb[0].mxu0
    %v2353 = vadd.f32 %v1365, %v2352
    %v2354 = vpop.f32.mrb[0].mxu0
    %v2355 = vpop.f32.mrb[0].mxu0
    %v2356 = vadd.f32 %v1370, %v2355
    %v2357 = vpop.f32.mrb[0].mxu0
    %2358 = vmatprep.mubr.bf16.mxu0 %v2059
    %2359 = vmatmul.mubr.bf16.gmra.mrb[0].mxu0 %v2058
    %v2360 = vpop.f32.mrb[0].mxu0
    %v2361 = vadd.f32 %v1375, %v2360
    %v2362 = vpop.f32.mrb[0].mxu0
    %v2363 = vpop.f32.mrb[0].mxu0
    %v2364 = vadd.f32 %v1380, %v2363
    %v2365 = vpop.f32.mrb[0].mxu0
    %2366 = vmatprep.mubr.bf16.mxu0 %v2063
    %2367 = vmatmul.mubr.bf16.gmra.mrb[0].mxu0 %v2062
    %v2368 = vpop.f32.mrb[0].mxu0
    %v2369 = vadd.f32 %v1385, %v2368
    %v2370 = vpop.f32.mrb[0].mxu0
    %v2371 = vpop.f32.mrb[0].mxu0
    %v2372 = vadd.f32 %v1390, %v2371
    %v2373 = vpop.f32.mrb[0].mxu0
    %2374 = vmatprep.mubr.bf16.mxu0 %v2067
    %2375 = vmatmul.mubr.bf16.gmra.mrb[0].mxu0 %v2066
    %v2376 = vpop.f32.mrb[0].mxu0
    %v2377 = vadd.f32 %v1395, %v2376
    %v2378 = vpop.f32.mrb[0].mxu0
    %v2379 = vpop.f32.mrb[0].mxu0
    %v2380 = vadd.f32 %v1400, %v2379
    %v2381 = vpop.f32.mrb[0].mxu0
    %2382 = vmatprep.mubr.bf16.mxu0 %v2071
    %2383 = vmatmul.mubr.bf16.gmra.mrb[0].mxu0 %v2070
    %v2384 = vpop.f32.mrb[0].mxu0
    %v2385 = vadd.f32 %v1405, %v2384
    %v2386 = vpop.f32.mrb[0].mxu0
    %v2387 = vpop.f32.mrb[0].mxu0
    %v2388 = vadd.f32 %v1410, %v2387
    %v2389 = vpop.f32.mrb[0].mxu0
    %2390 = vmatprep.mubr.bf16.mxu0 %v2075
    %2391 = vmatmul.mubr.bf16.gmra.mrb[0].mxu0 %v2074
    %v2392 = vpop.f32.mrb[0].mxu0
    %v2393 = vadd.f32 %v1415, %v2392
    %v2394 = vpop.f32.mrb[0].mxu0
    %v2395 = vpop.f32.mrb[0].mxu0
    %v2396 = vadd.f32 %v1420, %v2395
    %v2397 = vpop.f32.mrb[0].mxu0
    %2398 = vmatprep.mubr.bf16.mxu0 %v2079
    %2399 = vmatmul.mubr.bf16.gmra.mrb[0].mxu0 %v2078
    %v2400 = vpop.f32.mrb[0].mxu0
    %v2401 = vadd.f32 %v1425, %v2400
    %v2402 = vpop.f32.mrb[0].mxu0
    %v2403 = vpop.f32.mrb[0].mxu0
    %v2404 = vadd.f32 %v1430, %v2403
    %v2405 = vpop.f32.mrb[0].mxu0
    %2406 = vmatprep.mubr.bf16.mxu0 %v2083
    %2407 = vmatmul.mubr.bf16.gmra.mrb[0].mxu0 %v2082
    %v2408 = vpop.f32.mrb[0].mxu0
    %v2409 = vadd.f32 %v1435, %v2408
    %v2410 = vpop.f32.mrb[0].mxu0
    %v2411 = vpop.f32.mrb[0].mxu0
    %v2412 = vadd.f32 %v1440, %v2411
    %v2413 = vpop.f32.mrb[0].mxu0
    %2414 = vmatprep.mubr.bf16.mxu0 %v2087
    %2415 = vmatmul.mubr.bf16.gmra.mrb[0].mxu0 %v2086
    %v2416 = vpop.f32.mrb[0].mxu0
    %v2417 = vadd.f32 %v1445, %v2416
    %v2418 = vpop.f32.mrb[0].mxu0
    %v2419 = vpop.f32.mrb[0].mxu0
    %v2420 = vadd.f32 %v1450, %v2419
    %v2421 = vpop.f32.mrb[0].mxu0
    %2422 = vmatprep.mubr.bf16.mxu0 %v2091
    %2423 = vmatmul.mubr.bf16.gmra.mrb[0].mxu0 %v2090
    %v2424 = vpop.f32.mrb[0].mxu0
    %v2425 = vadd.f32 %v1455, %v2424
    %v2426 = vpop.f32.mrb[0].mxu0
    %v2427 = vpop.f32.mrb[0].mxu0
    %v2428 = vadd.f32 %v1460, %v2427
    %v2429 = vpop.f32.mrb[0].mxu0
    %2430 = vmatprep.mubr.bf16.mxu0 %v2095
    %2431 = vmatmul.mubr.bf16.gmra.mrb[0].mxu0 %v2094
    %v2432 = vpop.f32.mrb[0].mxu0
    %v2433 = vadd.f32 %v1465, %v2432
    %v2434 = vpop.f32.mrb[0].mxu0
    %v2435 = vpop.f32.mrb[0].mxu0
    %v2436 = vadd.f32 %v1470, %v2435
    %v2437 = vpop.f32.mrb[0].mxu0
    %2438 = vmatprep.mubr.bf16.mxu0 %v2099
    %2439 = vmatmul.mubr.bf16.gmra.mrb[0].mxu0 %v2098
    %v2440 = vpop.f32.mrb[0].mxu0
    %v2441 = vadd.f32 %v1475, %v2440
    %v2442 = vpop.f32.mrb[0].mxu0
    %v2443 = vpop.f32.mrb[0].mxu0
    %v2444 = vadd.f32 %v1480, %v2443
    %v2445 = vpop.f32.mrb[0].mxu0
    %2446 = vmatprep.mubr.bf16.mxu0 %v2103
    %2447 = vmatmul.mubr.bf16.gmra.mrb[0].mxu0 %v2102
    %v2448 = vpop.f32.mrb[0].mxu0
    %v2449 = vadd.f32 %v1485, %v2448
    %v2450 = vpop.f32.mrb[0].mxu0
    %v2451 = vpop.f32.mrb[0].mxu0
    %v2452 = vadd.f32 %v1490, %v2451
    %v2453 = vpop.f32.mrb[0].mxu0
    %2454 = vmatprep.mubr.bf16.mxu0 %v2107
    %2455 = vmatmul.mubr.bf16.gmra.mrb[0].mxu0 %v2106
    %v2456 = vpop.f32.mrb[0].mxu0
    %v2457 = vadd.f32 %v1495, %v2456
    %v2458 = vpop.f32.mrb[0].mxu0
    %v2459 = vpop.f32.mrb[0].mxu0
    %v2460 = vadd.f32 %v1500, %v2459
    %v2461 = vpop.f32.mrb[0].mxu0
    %2462 = vmatprep.mubr.bf16.mxu0 %v2111
    %2463 = vmatmul.mubr.bf16.gmra.mrb[0].mxu0 %v2110
    %v2464 = vpop.f32.mrb[0].mxu0
    %v2465 = vadd.f32 %v1505, %v2464
    %v2466 = vpop.f32.mrb[0].mxu0
    %v2467 = vpop.f32.mrb[0].mxu0
    %v2468 = vadd.f32 %v1510, %v2467
    %v2469 = vpop.f32.mrb[0].mxu0
    %2470 = vmatprep.mubr.bf16.mxu0 %v2115
    %2471 = vmatmul.mubr.bf16.gmra.mrb[0].mxu0 %v2114
    %v2472 = vpop.f32.mrb[0].mxu0
    %v2473 = vadd.f32 %v1515, %v2472
    %v2474 = vpop.f32.mrb[0].mxu0
    %v2475 = vpop.f32.mrb[0].mxu0
    %v2476 = vadd.f32 %v1520, %v2475
    %v2477 = vpop.f32.mrb[0].mxu0
    %2478 = vmatprep.mubr.bf16.mxu0 %v2119
    %2479 = vmatmul.mubr.bf16.gmra.mrb[0].mxu0 %v2118
    %v2480 = vpop.f32.mrb[0].mxu0
    %v2481 = vadd.f32 %v1525, %v2480
    %v2482 = vpop.f32.mrb[0].mxu0
    %v2483 = vpop.f32.mrb[0].mxu0
    %v2484 = vadd.f32 %v1530, %v2483
    %v2485 = vpop.f32.mrb[0].mxu0
    %2486 = vmatprep.mubr.bf16.mxu0 %v2123
    %2487 = vmatmul.mubr.bf16.gmra.mrb[0].mxu0 %v2122
    %v2488 = vpop.f32.mrb[0].mxu0
    %v2489 = vadd.f32 %v1535, %v2488
    %v2490 = vpop.f32.mrb[0].mxu0
    %v2491 = vpop.f32.mrb[0].mxu0
    %v2492 = vadd.f32 %v1540, %v2491
    %v2493 = vpop.f32.mrb[0].mxu0
    %2494 = vmatprep.mubr.bf16.mxu0 %v2127
    %2495 = vmatmul.mubr.bf16.gmra.mrb[0].mxu0 %v2126
    %v2496 = vpop.f32.mrb[0].mxu0
    %v2497 = vadd.f32 %v1545, %v2496
    %v2498 = vpop.f32.mrb[0].mxu0
    %v2499 = vpop.f32.mrb[0].mxu0
    %v2500 = vadd.f32 %v1550, %v2499
    %v2501 = vpop.f32.mrb[0].mxu0
    %2502 = vmatprep.mubr.bf16.mxu0 %v2131
    %2503 = vmatmul.mubr.bf16.gmra.mrb[0].mxu0 %v2130
    %v2504 = vpop.f32.mrb[0].mxu0
    %v2505 = vadd.f32 %v1555, %v2504
    %v2506 = vpop.f32.mrb[0].mxu0
    %v2507 = vpop.f32.mrb[0].mxu0
    %v2508 = vadd.f32 %v1560, %v2507
    %v2509 = vpop.f32.mrb[0].mxu0
    %2510 = vmatprep.mubr.bf16.mxu0 %v2135
    %2511 = vmatmul.mubr.bf16.gmra.mrb[0].mxu0 %v2134
    %v2512 = vpop.f32.mrb[0].mxu0
    %v2513 = vadd.f32 %v1565, %v2512
    %v2514 = vpop.f32.mrb[0].mxu0
    %v2515 = vpop.f32.mrb[0].mxu0
    %v2516 = vadd.f32 %v1570, %v2515
    %v2517 = vpop.f32.mrb[0].mxu0
    %2518 = vmatprep.mubr.bf16.mxu0 %v2139
    %2519 = vmatmul.mubr.bf16.gmra.mrb[0].mxu0 %v2138
    %v2520 = vpop.f32.mrb[0].mxu0
    %v2521 = vadd.f32 %v1575, %v2520
    %v2522 = vpop.f32.mrb[0].mxu0
    %v2523 = vpop.f32.mrb[0].mxu0
    %v2524 = vadd.f32 %v1580, %v2523
    %v2525 = vpop.f32.mrb[0].mxu0
    %2526 = vmatprep.mubr.bf16.mxu0 %v2143
    %2527 = vmatmul.mubr.bf16.gmra.mrb[0].mxu0 %v2142
    %v2528 = vpop.f32.mrb[0].mxu0
    %v2529 = vadd.f32 %v1585, %v2528
    %v2530 = vpop.f32.mrb[0].mxu0
    %v2531 = vpop.f32.mrb[0].mxu0
    %v2532 = vadd.f32 %v1590, %v2531
    %v2533 = vpop.f32.mrb[0].mxu0
    %2534 = vmatprep.mubr.bf16.mxu0 %v2147
    %2535 = vmatmul.mubr.bf16.gmra.mrb[0].mxu0 %v2146
    %v2536 = vpop.f32.mrb[0].mxu0
    %v2537 = vadd.f32 %v1595, %v2536
    %v2538 = vpop.f32.mrb[0].mxu0
    %v2539 = vpop.f32.mrb[0].mxu0
    %v2540 = vadd.f32 %v1600, %v2539
    %v2541 = vpop.f32.mrb[0].mxu0
    %2542 = vmatprep.mubr.bf16.mxu0 %v2151
    %2543 = vmatmul.mubr.bf16.gmra.mrb[0].mxu0 %v2150
    %v2544 = vpop.f32.mrb[0].mxu0
    %v2545 = vadd.f32 %v1605, %v2544
    %v2546 = vpop.f32.mrb[0].mxu0
    %v2547 = vpop.f32.mrb[0].mxu0
    %v2548 = vadd.f32 %v1610, %v2547
    %v2549 = vpop.f32.mrb[0].mxu0
    %2550 = vmatprep.mubr.bf16.mxu0 %v2155
    %2551 = vmatmul.mubr.bf16.gmra.mrb[0].mxu0 %v2154
    %v2552 = vpop.f32.mrb[0].mxu0
    %v2553 = vadd.f32 %v1615, %v2552
    %v2554 = vpop.f32.mrb[0].mxu0
    %v2555 = vpop.f32.mrb[0].mxu0
    %v2556 = vadd.f32 %v1620, %v2555
    %v2557 = vpop.f32.mrb[0].mxu0
    %2558 = vmatprep.mubr.bf16.mxu0 %v2159
    %2559 = vmatmul.mubr.bf16.gmra.mrb[0].mxu0 %v2158
    %v2560 = vpop.f32.mrb[0].mxu0
    %v2561 = vadd.f32 %v1625, %v2560
    %v2562 = vpop.f32.mrb[0].mxu0
    %v2563 = vpop.f32.mrb[0].mxu0
    %v2564 = vadd.f32 %v1630, %v2563
    %v2565 = vpop.f32.mrb[0].mxu0
    %2566 = vmatprep.mubr.bf16.mxu0 %v2163
    %2567 = vmatmul.mubr.bf16.gmra.mrb[0].mxu0 %v2162
    %v2568 = vpop.f32.mrb[0].mxu0
    %v2569 = vadd.f32 %v1635, %v2568
    %v2570 = vpop.f32.mrb[0].mxu0
    %v2571 = vpop.f32.mrb[0].mxu0
    %v2572 = vadd.f32 %v1640, %v2571
    %v2573 = vpop.f32.mrb[0].mxu0
    %2574 = vmatprep.mubr.bf16.mxu0 %v2167
    %2575 = vmatmul.mubr.bf16.gmra.mrb[0].mxu0 %v2166
    %v2576 = vpop.f32.mrb[0].mxu0
    %v2577 = vadd.f32 %v1645, %v2576
    %v2578 = vpop.f32.mrb[0].mxu0
    %v2579 = vpop.f32.mrb[0].mxu0
    %v2580 = vadd.f32 %v1650, %v2579
    %v2581 = vpop.f32.mrb[0].mxu0
    %2582 = vmatprep.mubr.bf16.mxu0 %v2171
    %2583 = vmatmul.mubr.bf16.gmra.mrb[0].mxu0 %v2170
    %v2584 = vpop.f32.mrb[0].mxu0
    %v2585 = vadd.f32 %v1655, %v2584
    %v2586 = vpop.f32.mrb[0].mxu0
    %v2587 = vpop.f32.mrb[0].mxu0
    %v2588 = vadd.f32 %v1660, %v2587
    %v2589 = vpop.f32.mrb[0].mxu0
    %2590 = vdwg.mxu0
    %2591 = vmatprep.subr.bf16.mxu0 0
    %2592 = vmatpush1.bf16.msra.mxu0 %v1134
    %2593 = vmatprep.subr.bf16.mxu0 0
    %2594 = vmatpush1.bf16.msra.mxu0 %v1135
    %2595 = vmatprep.subr.bf16.mxu0 0
    %2596 = vmatpush1.bf16.msra.mxu0 %v1136
    %2597 = vmatprep.subr.bf16.mxu0 0
    %2598 = vmatpush1.bf16.msra.mxu0 %v1137
    %2599 = vmatprep.subr.bf16.mxu0 0
    %2600 = vmatpush1.bf16.msra.mxu0 %v1138
    %2601 = vmatprep.subr.bf16.mxu0 0
    %2602 = vmatpush1.bf16.msra.mxu0 %v1139
    %2603 = vmatprep.subr.bf16.mxu0 0
    %2604 = vmatpush1.bf16.msra.mxu0 %v1140
    %2605 = vmatprep.subr.bf16.mxu0 0
    %2606 = vmatpush1.bf16.msra.mxu0 %v1141
    %2607 = vmatprep.subr.bf16.mxu0 0
    %2608 = vmatpush1.bf16.msra.mxu0 %v1142
    %2609 = vmatprep.subr.bf16.mxu0 0
    %2610 = vmatpush1.bf16.msra.mxu0 %v1143
    %2611 = vmatprep.subr.bf16.mxu0 0
    %2612 = vmatpush1.bf16.msra.mxu0 %v1144
    %2613 = vmatprep.subr.bf16.mxu0 0
    %2614 = vmatpush1.bf16.msra.mxu0 %v1145
    %2615 = vmatprep.subr.bf16.mxu0 0
    %2616 = vmatpush1.bf16.msra.mxu0 %v1146
    %2617 = vmatprep.subr.bf16.mxu0 0
    %2618 = vmatpush1.bf16.msra.mxu0 %v1147
    %2619 = vmatprep.subr.bf16.mxu0 0
    %2620 = vmatpush1.bf16.msra.mxu0 %v1148
    %2621 = vmatprep.subr.bf16.mxu0 0
    %2622 = vmatpush1.bf16.msra.mxu0 %v1149
    %2623 = vmatprep.mubr.bf16.mxu0 %v2049
    %2624 = vmatmul.mubr.bf16.gmra.mrb[0].mxu0 %v2048
    %v2625 = vpop.f32.mrb[0].mxu0
    %v2626 = vadd.f32 %v2337, %v2625
    %v2627 = vpop.f32.mrb[0].mxu0
    %v2628 = vpop.f32.mrb[0].mxu0
    %v2629 = vadd.f32 %v2340, %v2628
    %v2630 = vpop.f32.mrb[0].mxu0
    %2631 = vmatprep.mubr.bf16.mxu0 %v2053
    %2632 = vmatmul.mubr.bf16.gmra.mrb[0].mxu0 %v2052
    %v2633 = vpop.f32.mrb[0].mxu0
    %v2634 = vadd.f32 %v2345, %v2633
    %v2635 = vpop.f32.mrb[0].mxu0
    %v2636 = vpop.f32.mrb[0].mxu0
    %v2637 = vadd.f32 %v2348, %v2636
    %v2638 = vpop.f32.mrb[0].mxu0
    %2639 = vmatprep.mubr.bf16.mxu0 %v2057
    %2640 = vmatmul.mubr.bf16.gmra.mrb[0].mxu0 %v2056
    %v2641 = vpop.f32.mrb[0].mxu0
    %v2642 = vadd.f32 %v2353, %v2641
    %v2643 = vpop.f32.mrb[0].mxu0
    %v2644 = vpop.f32.mrb[0].mxu0
    %v2645 = vadd.f32 %v2356, %v2644
    %v2646 = vpop.f32.mrb[0].mxu0
    %2647 = vmatprep.mubr.bf16.mxu0 %v2061
    %2648 = vmatmul.mubr.bf16.gmra.mrb[0].mxu0 %v2060
    %v2649 = vpop.f32.mrb[0].mxu0
    %v2650 = vadd.f32 %v2361, %v2649
    %v2651 = vpop.f32.mrb[0].mxu0
    %v2652 = vpop.f32.mrb[0].mxu0
    %v2653 = vadd.f32 %v2364, %v2652
    %v2654 = vpop.f32.mrb[0].mxu0
    %2655 = vmatprep.mubr.bf16.mxu0 %v2065
    %2656 = vmatmul.mubr.bf16.gmra.mrb[0].mxu0 %v2064
    %v2657 = vpop.f32.mrb[0].mxu0
    %v2658 = vadd.f32 %v2369, %v2657
    %v2659 = vpop.f32.mrb[0].mxu0
    %v2660 = vpop.f32.mrb[0].mxu0
    %v2661 = vadd.f32 %v2372, %v2660
    %v2662 = vpop.f32.mrb[0].mxu0
    %2663 = vmatprep.mubr.bf16.mxu0 %v2069
    %2664 = vmatmul.mubr.bf16.gmra.mrb[0].mxu0 %v2068
    %v2665 = vpop.f32.mrb[0].mxu0
    %v2666 = vadd.f32 %v2377, %v2665
    %v2667 = vpop.f32.mrb[0].mxu0
    %v2668 = vpop.f32.mrb[0].mxu0
    %v2669 = vadd.f32 %v2380, %v2668
    %v2670 = vpop.f32.mrb[0].mxu0
    %2671 = vmatprep.mubr.bf16.mxu0 %v2073
    %2672 = vmatmul.mubr.bf16.gmra.mrb[0].mxu0 %v2072
    %v2673 = vpop.f32.mrb[0].mxu0
    %v2674 = vadd.f32 %v2385, %v2673
    %v2675 = vpop.f32.mrb[0].mxu0
    %v2676 = vpop.f32.mrb[0].mxu0
    %v2677 = vadd.f32 %v2388, %v2676
    %v2678 = vpop.f32.mrb[0].mxu0
    %2679 = vmatprep.mubr.bf16.mxu0 %v2077
    %2680 = vmatmul.mubr.bf16.gmra.mrb[0].mxu0 %v2076
    %v2681 = vpop.f32.mrb[0].mxu0
    %v2682 = vadd.f32 %v2393, %v2681
    %v2683 = vpop.f32.mrb[0].mxu0
    %v2684 = vpop.f32.mrb[0].mxu0
    %v2685 = vadd.f32 %v2396, %v2684
    %v2686 = vpop.f32.mrb[0].mxu0
    %2687 = vmatprep.mubr.bf16.mxu0 %v2081
    %2688 = vmatmul.mubr.bf16.gmra.mrb[0].mxu0 %v2080
    %v2689 = vpop.f32.mrb[0].mxu0
    %v2690 = vadd.f32 %v2401, %v2689
    %v2691 = vpop.f32.mrb[0].mxu0
    %v2692 = vpop.f32.mrb[0].mxu0
    %v2693 = vadd.f32 %v2404, %v2692
    %v2694 = vpop.f32.mrb[0].mxu0
    %2695 = vmatprep.mubr.bf16.mxu0 %v2085
    %2696 = vmatmul.mubr.bf16.gmra.mrb[0].mxu0 %v2084
    %v2697 = vpop.f32.mrb[0].mxu0
    %v2698 = vadd.f32 %v2409, %v2697
    %v2699 = vpop.f32.mrb[0].mxu0
    %v2700 = vpop.f32.mrb[0].mxu0
    %v2701 = vadd.f32 %v2412, %v2700
    %v2702 = vpop.f32.mrb[0].mxu0
    %2703 = vmatprep.mubr.bf16.mxu0 %v2089
    %2704 = vmatmul.mubr.bf16.gmra.mrb[0].mxu0 %v2088
    %v2705 = vpop.f32.mrb[0].mxu0
    %v2706 = vadd.f32 %v2417, %v2705
    %v2707 = vpop.f32.mrb[0].mxu0
    %v2708 = vpop.f32.mrb[0].mxu0
    %v2709 = vadd.f32 %v2420, %v2708
    %v2710 = vpop.f32.mrb[0].mxu0
    %2711 = vmatprep.mubr.bf16.mxu0 %v2093
    %2712 = vmatmul.mubr.bf16.gmra.mrb[0].mxu0 %v2092
    %v2713 = vpop.f32.mrb[0].mxu0
    %v2714 = vadd.f32 %v2425, %v2713
    %v2715 = vpop.f32.mrb[0].mxu0
    %v2716 = vpop.f32.mrb[0].mxu0
    %v2717 = vadd.f32 %v2428, %v2716
    %v2718 = vpop.f32.mrb[0].mxu0
    %2719 = vmatprep.mubr.bf16.mxu0 %v2097
    %2720 = vmatmul.mubr.bf16.gmra.mrb[0].mxu0 %v2096
    %v2721 = vpop.f32.mrb[0].mxu0
    %v2722 = vadd.f32 %v2433, %v2721
    %v2723 = vpop.f32.mrb[0].mxu0
    %v2724 = vpop.f32.mrb[0].mxu0
    %v2725 = vadd.f32 %v2436, %v2724
    %v2726 = vpop.f32.mrb[0].mxu0
    %2727 = vmatprep.mubr.bf16.mxu0 %v2101
    %2728 = vmatmul.mubr.bf16.gmra.mrb[0].mxu0 %v2100
    %v2729 = vpop.f32.mrb[0].mxu0
    %v2730 = vadd.f32 %v2441, %v2729
    %v2731 = vpop.f32.mrb[0].mxu0
    %v2732 = vpop.f32.mrb[0].mxu0
    %v2733 = vadd.f32 %v2444, %v2732
    %v2734 = vpop.f32.mrb[0].mxu0
    %2735 = vmatprep.mubr.bf16.mxu0 %v2105
    %2736 = vmatmul.mubr.bf16.gmra.mrb[0].mxu0 %v2104
    %v2737 = vpop.f32.mrb[0].mxu0
    %v2738 = vadd.f32 %v2449, %v2737
    %v2739 = vpop.f32.mrb[0].mxu0
    %v2740 = vpop.f32.mrb[0].mxu0
    %v2741 = vadd.f32 %v2452, %v2740
    %v2742 = vpop.f32.mrb[0].mxu0
    %2743 = vmatprep.mubr.bf16.mxu0 %v2109
    %2744 = vmatmul.mubr.bf16.gmra.mrb[0].mxu0 %v2108
    %v2745 = vpop.f32.mrb[0].mxu0
    %v2746 = vadd.f32 %v2457, %v2745
    %v2747 = vpop.f32.mrb[0].mxu0
    %v2748 = vpop.f32.mrb[0].mxu0
    %v2749 = vadd.f32 %v2460, %v2748
    %v2750 = vpop.f32.mrb[0].mxu0
    %2751 = vmatprep.mubr.bf16.mxu0 %v2113
    %2752 = vmatmul.mubr.bf16.gmra.mrb[0].mxu0 %v2112
    %v2753 = vpop.f32.mrb[0].mxu0
    %v2754 = vadd.f32 %v2465, %v2753
    %v2755 = vpop.f32.mrb[0].mxu0
    %v2756 = vpop.f32.mrb[0].mxu0
    %v2757 = vadd.f32 %v2468, %v2756
    %v2758 = vpop.f32.mrb[0].mxu0
    %2759 = vmatprep.mubr.bf16.mxu0 %v2117
    %2760 = vmatmul.mubr.bf16.gmra.mrb[0].mxu0 %v2116
    %v2761 = vpop.f32.mrb[0].mxu0
    %v2762 = vadd.f32 %v2473, %v2761
    %v2763 = vpop.f32.mrb[0].mxu0
    %v2764 = vpop.f32.mrb[0].mxu0
    %v2765 = vadd.f32 %v2476, %v2764
    %v2766 = vpop.f32.mrb[0].mxu0
    %2767 = vmatprep.mubr.bf16.mxu0 %v2121
    %2768 = vmatmul.mubr.bf16.gmra.mrb[0].mxu0 %v2120
    %v2769 = vpop.f32.mrb[0].mxu0
    %v2770 = vadd.f32 %v2481, %v2769
    %v2771 = vpop.f32.mrb[0].mxu0
    %v2772 = vpop.f32.mrb[0].mxu0
    %v2773 = vadd.f32 %v2484, %v2772
    %v2774 = vpop.f32.mrb[0].mxu0
    %2775 = vmatprep.mubr.bf16.mxu0 %v2125
    %2776 = vmatmul.mubr.bf16.gmra.mrb[0].mxu0 %v2124
    %v2777 = vpop.f32.mrb[0].mxu0
    %v2778 = vadd.f32 %v2489, %v2777
    %v2779 = vpop.f32.mrb[0].mxu0
    %v2780 = vpop.f32.mrb[0].mxu0
    %v2781 = vadd.f32 %v2492, %v2780
    %v2782 = vpop.f32.mrb[0].mxu0
    %2783 = vmatprep.mubr.bf16.mxu0 %v2129
    %2784 = vmatmul.mubr.bf16.gmra.mrb[0].mxu0 %v2128
    %v2785 = vpop.f32.mrb[0].mxu0
    %v2786 = vadd.f32 %v2497, %v2785
    %v2787 = vpop.f32.mrb[0].mxu0
    %v2788 = vpop.f32.mrb[0].mxu0
    %v2789 = vadd.f32 %v2500, %v2788
    %v2790 = vpop.f32.mrb[0].mxu0
    %2791 = vmatprep.mubr.bf16.mxu0 %v2133
    %2792 = vmatmul.mubr.bf16.gmra.mrb[0].mxu0 %v2132
    %v2793 = vpop.f32.mrb[0].mxu0
    %v2794 = vadd.f32 %v2505, %v2793
    %v2795 = vpop.f32.mrb[0].mxu0
    %v2796 = vpop.f32.mrb[0].mxu0
    %v2797 = vadd.f32 %v2508, %v2796
    %v2798 = vpop.f32.mrb[0].mxu0
    %2799 = vmatprep.mubr.bf16.mxu0 %v2137
    %2800 = vmatmul.mubr.bf16.gmra.mrb[0].mxu0 %v2136
    %v2801 = vpop.f32.mrb[0].mxu0
    %v2802 = vadd.f32 %v2513, %v2801
    %v2803 = vpop.f32.mrb[0].mxu0
    %v2804 = vpop.f32.mrb[0].mxu0
    %v2805 = vadd.f32 %v2516, %v2804
    %v2806 = vpop.f32.mrb[0].mxu0
    %2807 = vmatprep.mubr.bf16.mxu0 %v2141
    %2808 = vmatmul.mubr.bf16.gmra.mrb[0].mxu0 %v2140
    %v2809 = vpop.f32.mrb[0].mxu0
    %v2810 = vadd.f32 %v2521, %v2809
    %v2811 = vpop.f32.mrb[0].mxu0
    %v2812 = vpop.f32.mrb[0].mxu0
    %v2813 = vadd.f32 %v2524, %v2812
    %v2814 = vpop.f32.mrb[0].mxu0
    %2815 = vmatprep.mubr.bf16.mxu0 %v2145
    %2816 = vmatmul.mubr.bf16.gmra.mrb[0].mxu0 %v2144
    %v2817 = vpop.f32.mrb[0].mxu0
    %v2818 = vadd.f32 %v2529, %v2817
    %v2819 = vpop.f32.mrb[0].mxu0
    %v2820 = vpop.f32.mrb[0].mxu0
    %v2821 = vadd.f32 %v2532, %v2820
    %v2822 = vpop.f32.mrb[0].mxu0
    %2823 = vmatprep.mubr.bf16.mxu0 %v2149
    %2824 = vmatmul.mubr.bf16.gmra.mrb[0].mxu0 %v2148
    %v2825 = vpop.f32.mrb[0].mxu0
    %v2826 = vadd.f32 %v2537, %v2825
    %v2827 = vpop.f32.mrb[0].mxu0
    %v2828 = vpop.f32.mrb[0].mxu0
    %v2829 = vadd.f32 %v2540, %v2828
    %v2830 = vpop.f32.mrb[0].mxu0
    %2831 = vmatprep.mubr.bf16.mxu0 %v2153
    %2832 = vmatmul.mubr.bf16.gmra.mrb[0].mxu0 %v2152
    %v2833 = vpop.f32.mrb[0].mxu0
    %v2834 = vadd.f32 %v2545, %v2833
    %v2835 = vpop.f32.mrb[0].mxu0
    %v2836 = vpop.f32.mrb[0].mxu0
    %v2837 = vadd.f32 %v2548, %v2836
    %v2838 = vpop.f32.mrb[0].mxu0
    %2839 = vmatprep.mubr.bf16.mxu0 %v2157
    %2840 = vmatmul.mubr.bf16.gmra.mrb[0].mxu0 %v2156
    %v2841 = vpop.f32.mrb[0].mxu0
    %v2842 = vadd.f32 %v2553, %v2841
    %v2843 = vpop.f32.mrb[0].mxu0
    %v2844 = vpop.f32.mrb[0].mxu0
    %v2845 = vadd.f32 %v2556, %v2844
    %v2846 = vpop.f32.mrb[0].mxu0
    %2847 = vmatprep.mubr.bf16.mxu0 %v2161
    %2848 = vmatmul.mubr.bf16.gmra.mrb[0].mxu0 %v2160
    %v2849 = vpop.f32.mrb[0].mxu0
    %v2850 = vadd.f32 %v2561, %v2849
    %v2851 = vpop.f32.mrb[0].mxu0
    %v2852 = vpop.f32.mrb[0].mxu0
    %v2853 = vadd.f32 %v2564, %v2852
    %v2854 = vpop.f32.mrb[0].mxu0
    %2855 = vmatprep.mubr.bf16.mxu0 %v2165
    %2856 = vmatmul.mubr.bf16.gmra.mrb[0].mxu0 %v2164
    %v2857 = vpop.f32.mrb[0].mxu0
    %v2858 = vadd.f32 %v2569, %v2857
    %v2859 = vpop.f32.mrb[0].mxu0
    %v2860 = vpop.f32.mrb[0].mxu0
    %v2861 = vadd.f32 %v2572, %v2860
    %v2862 = vpop.f32.mrb[0].mxu0
    %2863 = vmatprep.mubr.bf16.mxu0 %v2169
    %2864 = vmatmul.mubr.bf16.gmra.mrb[0].mxu0 %v2168
    %v2865 = vpop.f32.mrb[0].mxu0
    %v2866 = vadd.f32 %v2577, %v2865
    %v2867 = vpop.f32.mrb[0].mxu0
    %v2868 = vpop.f32.mrb[0].mxu0
    %v2869 = vadd.f32 %v2580, %v2868
    %v2870 = vpop.f32.mrb[0].mxu0
    %2871 = vmatprep.mubr.bf16.mxu0 %v2173
    %2872 = vmatmul.mubr.bf16.gmra.mrb[0].mxu0 %v2172
    %v2873 = vpop.f32.mrb[0].mxu0
    %v2874 = vadd.f32 %v2585, %v2873
    %v2875 = vpop.f32.mrb[0].mxu0
    %v2876 = vpop.f32.mrb[0].mxu0
    %v2877 = vadd.f32 %v2588, %v2876
    %v2878 = vpop.f32.mrb[0].mxu0
    %2879 = vdwg.mxu0
    %v2880 = vmax.f32 %v2626, 0.0
    %v2881 = vmax.f32 %v2629, 0.0
    %v2882 = vmax.f32 %v2634, 0.0
    %v2883 = vmax.f32 %v2637, 0.0
    %v2884 = vmax.f32 %v2642, 0.0
    %v2885 = vmax.f32 %v2645, 0.0
    %v2886 = vmax.f32 %v2650, 0.0
    %v2887 = vmax.f32 %v2653, 0.0
    %v2888 = vmax.f32 %v2658, 0.0
    %v2889 = vmax.f32 %v2661, 0.0
    %v2890 = vmax.f32 %v2666, 0.0
    %v2891 = vmax.f32 %v2669, 0.0
    %v2892 = vmax.f32 %v2674, 0.0
    %v2893 = vmax.f32 %v2677, 0.0
    %v2894 = vmax.f32 %v2682, 0.0
    %v2895 = vmax.f32 %v2685, 0.0
    %v2896 = vmax.f32 %v2690, 0.0
    %v2897 = vmax.f32 %v2693, 0.0
    %v2898 = vmax.f32 %v2698, 0.0
    %v2899 = vmax.f32 %v2701, 0.0
    %v2900 = vmax.f32 %v2706, 0.0
    %v2901 = vmax.f32 %v2709, 0.0
    %v2902 = vmax.f32 %v2714, 0.0
    %v2903 = vmax.f32 %v2717, 0.0
    %v2904 = vmax.f32 %v2722, 0.0
    %v2905 = vmax.f32 %v2725, 0.0
    %v2906 = vmax.f32 %v2730, 0.0
    %v2907 = vmax.f32 %v2733, 0.0
    %v2908 = vmax.f32 %v2738, 0.0
    %v2909 = vmax.f32 %v2741, 0.0
    %v2910 = vmax.f32 %v2746, 0.0
    %v2911 = vmax.f32 %v2749, 0.0
    %v2912 = vmax.f32 %v2754, 0.0
    %v2913 = vmax.f32 %v2757, 0.0
    %v2914 = vmax.f32 %v2762, 0.0
    %v2915 = vmax.f32 %v2765, 0.0
    %v2916 = vmax.f32 %v2770, 0.0
    %v2917 = vmax.f32 %v2773, 0.0
    %v2918 = vmax.f32 %v2778, 0.0
    %v2919 = vmax.f32 %v2781, 0.0
    %v2920 = vmax.f32 %v2786, 0.0
    %v2921 = vmax.f32 %v2789, 0.0
    %v2922 = vmax.f32 %v2794, 0.0
    %v2923 = vmax.f32 %v2797, 0.0
    %v2924 = vmax.f32 %v2802, 0.0
    %v2925 = vmax.f32 %v2805, 0.0
    %v2926 = vmax.f32 %v2810, 0.0
    %v2927 = vmax.f32 %v2813, 0.0
    %v2928 = vmax.f32 %v2818, 0.0
    %v2929 = vmax.f32 %v2821, 0.0
    %v2930 = vmax.f32 %v2826, 0.0
    %v2931 = vmax.f32 %v2829, 0.0
    %v2932 = vmax.f32 %v2834, 0.0
    %v2933 = vmax.f32 %v2837, 0.0
    %v2934 = vmax.f32 %v2842, 0.0
    %v2935 = vmax.f32 %v2845, 0.0
    %v2936 = vmax.f32 %v2850, 0.0
    %v2937 = vmax.f32 %v2853, 0.0
    %v2938 = vmax.f32 %v2858, 0.0
    %v2939 = vmax.f32 %v2861, 0.0
    %v2940 = vmax.f32 %v2866, 0.0
    %v2941 = vmax.f32 %v2869, 0.0
    %v2942 = vmax.f32 %v2874, 0.0
    %v2943 = vmax.f32 %v2877, 0.0
    %v2944 = vpack.c.bf16 %v2881, %v2880
    %v2945 = vpack.c.bf16 %v2883, %v2882
    %v2946 = vpack.c.bf16 %v2885, %v2884
    %v2947 = vpack.c.bf16 %v2887, %v2886
    %v2948 = vpack.c.bf16 %v2889, %v2888
    %v2949 = vpack.c.bf16 %v2891, %v2890
    %v2950 = vpack.c.bf16 %v2893, %v2892
    %v2951 = vpack.c.bf16 %v2895, %v2894
    %v2952 = vpack.c.bf16 %v2897, %v2896
    %v2953 = vpack.c.bf16 %v2899, %v2898
    %v2954 = vpack.c.bf16 %v2901, %v2900
    %v2955 = vpack.c.bf16 %v2903, %v2902
    %v2956 = vpack.c.bf16 %v2905, %v2904
    %v2957 = vpack.c.bf16 %v2907, %v2906
    %v2958 = vpack.c.bf16 %v2909, %v2908
    %v2959 = vpack.c.bf16 %v2911, %v2910
    %v2960 = vpack.c.bf16 %v2913, %v2912
    %v2961 = vpack.c.bf16 %v2915, %v2914
    %v2962 = vpack.c.bf16 %v2917, %v2916
    %v2963 = vpack.c.bf16 %v2919, %v2918
    %v2964 = vpack.c.bf16 %v2921, %v2920
    %v2965 = vpack.c.bf16 %v2923, %v2922
    %v2966 = vpack.c.bf16 %v2925, %v2924
    %v2967 = vpack.c.bf16 %v2927, %v2926
    %v2968 = vpack.c.bf16 %v2929, %v2928
    %v2969 = vpack.c.bf16 %v2931, %v2930
    %v2970 = vpack.c.bf16 %v2933, %v2932
    %v2971 = vpack.c.bf16 %v2935, %v2934
    %v2972 = vpack.c.bf16 %v2937, %v2936
    %v2973 = vpack.c.bf16 %v2939, %v2938
    %v2974 = vpack.c.bf16 %v2941, %v2940
    %v2975 = vpack.c.bf16 %v2943, %v2942
    %v2976 = vld [vmem:[#allocation2] sm:$0xff]
    %v2977 = vld [vmem:[#allocation2 + $0x8] sm:$0xff]
    %v2978 = vld [vmem:[#allocation2 + $0x10] sm:$0xff]
    %v2979 = vld [vmem:[#allocation2 + $0x18] sm:$0xff]
    %v2980 = vld [vmem:[#allocation2 + $0x20] sm:$0xff]
    %v2981 = vld [vmem:[#allocation2 + $0x28] sm:$0xff]
    %v2982 = vld [vmem:[#allocation2 + $0x30] sm:$0xff]
    %v2983 = vld [vmem:[#allocation2 + $0x38] sm:$0xff]
    %v2984 = vld [vmem:[#allocation2 + $0x40] sm:$0xff]
    %v2985 = vld [vmem:[#allocation2 + $0x48] sm:$0xff]
    %v2986 = vld [vmem:[#allocation2 + $0x50] sm:$0xff]
    %v2987 = vld [vmem:[#allocation2 + $0x58] sm:$0xff]
    %v2988 = vld [vmem:[#allocation2 + $0x60] sm:$0xff]
    %v2989 = vld [vmem:[#allocation2 + $0x68] sm:$0xff]
    %v2990 = vld [vmem:[#allocation2 + $0x70] sm:$0xff]
    %v2991 = vld [vmem:[#allocation2 + $0x78] sm:$0xff]
    %v2992 = vld [vmem:[#allocation2 + $0x80] sm:$0xff]
    %v2993 = vld [vmem:[#allocation2 + $0x88] sm:$0xff]
    %v2994 = vld [vmem:[#allocation2 + $0x90] sm:$0xff]
    %v2995 = vld [vmem:[#allocation2 + $0x98] sm:$0xff]
    %v2996 = vld [vmem:[#allocation2 + $0xa0] sm:$0xff]
    %v2997 = vld [vmem:[#allocation2 + $0xa8] sm:$0xff]
    %v2998 = vld [vmem:[#allocation2 + $0xb0] sm:$0xff]
    %v2999 = vld [vmem:[#allocation2 + $0xb8] sm:$0xff]
    %v3000 = vld [vmem:[#allocation2 + $0xc0] sm:$0xff]
    %v3001 = vld [vmem:[#allocation2 + $0xc8] sm:$0xff]
    %v3002 = vld [vmem:[#allocation2 + $0xd0] sm:$0xff]
    %v3003 = vld [vmem:[#allocation2 + $0xd8] sm:$0xff]
    %v3004 = vld [vmem:[#allocation2 + $0xe0] sm:$0xff]
    %v3005 = vld [vmem:[#allocation2 + $0xe8] sm:$0xff]
    %v3006 = vld [vmem:[#allocation2 + $0xf0] sm:$0xff]
    %v3007 = vld [vmem:[#allocation2 + $0xf8] sm:$0xff]
    %v3008 = vld [vmem:[#allocation2 + $0x100] sm:$0xff]
    %v3009 = vld [vmem:[#allocation2 + $0x108] sm:$0xff]
    %v3010 = vld [vmem:[#allocation2 + $0x110] sm:$0xff]
    %v3011 = vld [vmem:[#allocation2 + $0x118] sm:$0xff]
    %v3012 = vld [vmem:[#allocation2 + $0x120] sm:$0xff]
    %v3013 = vld [vmem:[#allocation2 + $0x128] sm:$0xff]
    %v3014 = vld [vmem:[#allocation2 + $0x130] sm:$0xff]
    %v3015 = vld [vmem:[#allocation2 + $0x138] sm:$0xff]
    %v3016 = vld [vmem:[#allocation2 + $0x140] sm:$0xff]
    %v3017 = vld [vmem:[#allocation2 + $0x148] sm:$0xff]
    %v3018 = vld [vmem:[#allocation2 + $0x150] sm:$0xff]
    %v3019 = vld [vmem:[#allocation2 + $0x158] sm:$0xff]
    %v3020 = vld [vmem:[#allocation2 + $0x160] sm:$0xff]
    %v3021 = vld [vmem:[#allocation2 + $0x168] sm:$0xff]
    %v3022 = vld [vmem:[#allocation2 + $0x170] sm:$0xff]
    %v3023 = vld [vmem:[#allocation2 + $0x178] sm:$0xff]
    %v3024 = vld [vmem:[#allocation2 + $0x180] sm:$0xff]
    %v3025 = vld [vmem:[#allocation2 + $0x188] sm:$0xff]
    %v3026 = vld [vmem:[#allocation2 + $0x190] sm:$0xff]
    %v3027 = vld [vmem:[#allocation2 + $0x198] sm:$0xff]
    %v3028 = vld [vmem:[#allocation2 + $0x1a0] sm:$0xff]
    %v3029 = vld [vmem:[#allocation2 + $0x1a8] sm:$0xff]
    %v3030 = vld [vmem:[#allocation2 + $0x1b0] sm:$0xff]
    %v3031 = vld [vmem:[#allocation2 + $0x1b8] sm:$0xff]
    %v3032 = vld [vmem:[#allocation2 + $0x1c0] sm:$0xff]
    %v3033 = vld [vmem:[#allocation2 + $0x1c8] sm:$0xff]
    %v3034 = vld [vmem:[#allocation2 + $0x1d0] sm:$0xff]
    %v3035 = vld [vmem:[#allocation2 + $0x1d8] sm:$0xff]
    %v3036 = vld [vmem:[#allocation2 + $0x1e0] sm:$0xff]
    %v3037 = vld [vmem:[#allocation2 + $0x1e8] sm:$0xff]
    %v3038 = vld [vmem:[#allocation2 + $0x1f0] sm:$0xff]
    %v3039 = vld [vmem:[#allocation2 + $0x1f8] sm:$0xff]
    %v3040 = vld [vmem:[#allocation2 + $0x200] sm:$0xff]
    %v3041 = vld [vmem:[#allocation2 + $0x208] sm:$0xff]
    %v3042 = vld [vmem:[#allocation2 + $0x210] sm:$0xff]
    %v3043 = vld [vmem:[#allocation2 + $0x218] sm:$0xff]
    %v3044 = vld [vmem:[#allocation2 + $0x220] sm:$0xff]
    %v3045 = vld [vmem:[#allocation2 + $0x228] sm:$0xff]
    %v3046 = vld [vmem:[#allocation2 + $0x230] sm:$0xff]
    %v3047 = vld [vmem:[#allocation2 + $0x238] sm:$0xff]
    %v3048 = vld [vmem:[#allocation2 + $0x240] sm:$0xff]
    %v3049 = vld [vmem:[#allocation2 + $0x248] sm:$0xff]
    %v3050 = vld [vmem:[#allocation2 + $0x250] sm:$0xff]
    %v3051 = vld [vmem:[#allocation2 + $0x258] sm:$0xff]
    %v3052 = vld [vmem:[#allocation2 + $0x260] sm:$0xff]
    %v3053 = vld [vmem:[#allocation2 + $0x268] sm:$0xff]
    %v3054 = vld [vmem:[#allocation2 + $0x270] sm:$0xff]
    %v3055 = vld [vmem:[#allocation2 + $0x278] sm:$0xff]
    %v3056 = vld [vmem:[#allocation2 + $0x280] sm:$0xff]
    %v3057 = vld [vmem:[#allocation2 + $0x288] sm:$0xff]
    %v3058 = vld [vmem:[#allocation2 + $0x290] sm:$0xff]
    %v3059 = vld [vmem:[#allocation2 + $0x298] sm:$0xff]
    %v3060 = vld [vmem:[#allocation2 + $0x2a0] sm:$0xff]
    %v3061 = vld [vmem:[#allocation2 + $0x2a8] sm:$0xff]
    %v3062 = vld [vmem:[#allocation2 + $0x2b0] sm:$0xff]
    %v3063 = vld [vmem:[#allocation2 + $0x2b8] sm:$0xff]
    %v3064 = vld [vmem:[#allocation2 + $0x2c0] sm:$0xff]
    %v3065 = vld [vmem:[#allocation2 + $0x2c8] sm:$0xff]
    %v3066 = vld [vmem:[#allocation2 + $0x2d0] sm:$0xff]
    %v3067 = vld [vmem:[#allocation2 + $0x2d8] sm:$0xff]
    %v3068 = vld [vmem:[#allocation2 + $0x2e0] sm:$0xff]
    %v3069 = vld [vmem:[#allocation2 + $0x2e8] sm:$0xff]
    %v3070 = vld [vmem:[#allocation2 + $0x2f0] sm:$0xff]
    %v3071 = vld [vmem:[#allocation2 + $0x2f8] sm:$0xff]
    %v3072 = vld [vmem:[#allocation2 + $0x300] sm:$0xff]
    %v3073 = vld [vmem:[#allocation2 + $0x308] sm:$0xff]
    %v3074 = vld [vmem:[#allocation2 + $0x310] sm:$0xff]
    %v3075 = vld [vmem:[#allocation2 + $0x318] sm:$0xff]
    %v3076 = vld [vmem:[#allocation2 + $0x320] sm:$0xff]
    %v3077 = vld [vmem:[#allocation2 + $0x328] sm:$0xff]
    %v3078 = vld [vmem:[#allocation2 + $0x330] sm:$0xff]
    %v3079 = vld [vmem:[#allocation2 + $0x338] sm:$0xff]
    %v3080 = vld [vmem:[#allocation2 + $0x340] sm:$0xff]
    %v3081 = vld [vmem:[#allocation2 + $0x348] sm:$0xff]
    %v3082 = vld [vmem:[#allocation2 + $0x350] sm:$0xff]
    %v3083 = vld [vmem:[#allocation2 + $0x358] sm:$0xff]
    %v3084 = vld [vmem:[#allocation2 + $0x360] sm:$0xff]
    %v3085 = vld [vmem:[#allocation2 + $0x368] sm:$0xff]
    %v3086 = vld [vmem:[#allocation2 + $0x370] sm:$0xff]
    %v3087 = vld [vmem:[#allocation2 + $0x378] sm:$0xff]
    %v3088 = vld [vmem:[#allocation2 + $0x380] sm:$0xff]
    %v3089 = vld [vmem:[#allocation2 + $0x388] sm:$0xff]
    %v3090 = vld [vmem:[#allocation2 + $0x390] sm:$0xff]
    %v3091 = vld [vmem:[#allocation2 + $0x398] sm:$0xff]
    %v3092 = vld [vmem:[#allocation2 + $0x3a0] sm:$0xff]
    %v3093 = vld [vmem:[#allocation2 + $0x3a8] sm:$0xff]
    %v3094 = vld [vmem:[#allocation2 + $0x3b0] sm:$0xff]
    %v3095 = vld [vmem:[#allocation2 + $0x3b8] sm:$0xff]
    %v3096 = vld [vmem:[#allocation2 + $0x3c0] sm:$0xff]
    %v3097 = vld [vmem:[#allocation2 + $0x3c8] sm:$0xff]
    %v3098 = vld [vmem:[#allocation2 + $0x3d0] sm:$0xff]
    %v3099 = vld [vmem:[#allocation2 + $0x3d8] sm:$0xff]
    %v3100 = vld [vmem:[#allocation2 + $0x3e0] sm:$0xff]
    %v3101 = vld [vmem:[#allocation2 + $0x3e8] sm:$0xff]
    %v3102 = vld [vmem:[#allocation2 + $0x3f0] sm:$0xff]
    %v3103 = vld [vmem:[#allocation2 + $0x3f8] sm:$0xff]
    %v3104 = vld [vmem:[%s6] sm:$0xff]
    %v3105 = vld [vmem:[%s6 + $0x8] sm:$0xff]
    %v3106 = vld [vmem:[%s6 + $0x10] sm:$0xff]
    %v3107 = vld [vmem:[%s6 + $0x18] sm:$0xff]
    %v3108 = vld [vmem:[%s6 + $0x20] sm:$0xff]
    %v3109 = vld [vmem:[%s6 + $0x28] sm:$0xff]
    %v3110 = vld [vmem:[%s6 + $0x30] sm:$0xff]
    %v3111 = vld [vmem:[%s6 + $0x38] sm:$0xff]
    %v3112 = vld [vmem:[%s6 + $0x40] sm:$0xff]
    %v3113 = vld [vmem:[%s6 + $0x48] sm:$0xff]
    %v3114 = vld [vmem:[%s6 + $0x50] sm:$0xff]
    %v3115 = vld [vmem:[%s6 + $0x58] sm:$0xff]
    %v3116 = vld [vmem:[%s6 + $0x60] sm:$0xff]
    %v3117 = vld [vmem:[%s6 + $0x68] sm:$0xff]
    %v3118 = vld [vmem:[%s6 + $0x70] sm:$0xff]
    %v3119 = vld [vmem:[%s6 + $0x78] sm:$0xff]
    %v3120 = vld [vmem:[%s6 + $0x80] sm:$0xff]
    %v3121 = vld [vmem:[%s6 + $0x88] sm:$0xff]
    %v3122 = vld [vmem:[%s6 + $0x90] sm:$0xff]
    %v3123 = vld [vmem:[%s6 + $0x98] sm:$0xff]
    %v3124 = vld [vmem:[%s6 + $0xa0] sm:$0xff]
    %v3125 = vld [vmem:[%s6 + $0xa8] sm:$0xff]
    %v3126 = vld [vmem:[%s6 + $0xb0] sm:$0xff]
    %v3127 = vld [vmem:[%s6 + $0xb8] sm:$0xff]
    %v3128 = vld [vmem:[%s6 + $0xc0] sm:$0xff]
    %v3129 = vld [vmem:[%s6 + $0xc8] sm:$0xff]
    %v3130 = vld [vmem:[%s6 + $0xd0] sm:$0xff]
    %v3131 = vld [vmem:[%s6 + $0xd8] sm:$0xff]
    %v3132 = vld [vmem:[%s6 + $0xe0] sm:$0xff]
    %v3133 = vld [vmem:[%s6 + $0xe8] sm:$0xff]
    %v3134 = vld [vmem:[%s6 + $0xf0] sm:$0xff]
    %v3135 = vld [vmem:[%s6 + $0xf8] sm:$0xff]
    %v3136 = vld [vmem:[%s6 + $0x100] sm:$0xff]
    %v3137 = vld [vmem:[%s6 + $0x108] sm:$0xff]
    %v3138 = vld [vmem:[%s6 + $0x110] sm:$0xff]
    %v3139 = vld [vmem:[%s6 + $0x118] sm:$0xff]
    %v3140 = vld [vmem:[%s6 + $0x120] sm:$0xff]
    %v3141 = vld [vmem:[%s6 + $0x128] sm:$0xff]
    %v3142 = vld [vmem:[%s6 + $0x130] sm:$0xff]
    %v3143 = vld [vmem:[%s6 + $0x138] sm:$0xff]
    %v3144 = vld [vmem:[%s6 + $0x140] sm:$0xff]
    %v3145 = vld [vmem:[%s6 + $0x148] sm:$0xff]
    %v3146 = vld [vmem:[%s6 + $0x150] sm:$0xff]
    %v3147 = vld [vmem:[%s6 + $0x158] sm:$0xff]
    %v3148 = vld [vmem:[%s6 + $0x160] sm:$0xff]
    %v3149 = vld [vmem:[%s6 + $0x168] sm:$0xff]
    %v3150 = vld [vmem:[%s6 + $0x170] sm:$0xff]
    %v3151 = vld [vmem:[%s6 + $0x178] sm:$0xff]
    %v3152 = vld [vmem:[%s6 + $0x180] sm:$0xff]
    %v3153 = vld [vmem:[%s6 + $0x188] sm:$0xff]
    %v3154 = vld [vmem:[%s6 + $0x190] sm:$0xff]
    %v3155 = vld [vmem:[%s6 + $0x198] sm:$0xff]
    %v3156 = vld [vmem:[%s6 + $0x1a0] sm:$0xff]
    %v3157 = vld [vmem:[%s6 + $0x1a8] sm:$0xff]
    %v3158 = vld [vmem:[%s6 + $0x1b0] sm:$0xff]
    %v3159 = vld [vmem:[%s6 + $0x1b8] sm:$0xff]
    %v3160 = vld [vmem:[%s6 + $0x1c0] sm:$0xff]
    %v3161 = vld [vmem:[%s6 + $0x1c8] sm:$0xff]
    %v3162 = vld [vmem:[%s6 + $0x1d0] sm:$0xff]
    %v3163 = vld [vmem:[%s6 + $0x1d8] sm:$0xff]
    %v3164 = vld [vmem:[%s6 + $0x1e0] sm:$0xff]
    %v3165 = vld [vmem:[%s6 + $0x1e8] sm:$0xff]
    %v3166 = vld [vmem:[%s6 + $0x1f0] sm:$0xff]
    %v3167 = vld [vmem:[%s6 + $0x1f8] sm:$0xff]
    %3169 = vset.pattern.permute.xlu0 0
    %3170 = vperm.xlu0 %3169, %v3104
    %v3171 = vpop.permute.xlu0 %3170
    %3174 = vset.pattern.permute.xlu0 0
    %3175 = vperm.xlu0 %3174, %v3105
    %v3176 = vpop.permute.xlu0 %3175
    %3179 = vset.pattern.permute.xlu0 0
    %3180 = vperm.xlu0 %3179, %v3106
    %v3181 = vpop.permute.xlu0 %3180
    %3184 = vset.pattern.permute.xlu0 0
    %3185 = vperm.xlu0 %3184, %v3107
    %v3186 = vpop.permute.xlu0 %3185
    %3189 = vset.pattern.permute.xlu0 0
    %3190 = vperm.xlu0 %3189, %v3108
    %v3191 = vpop.permute.xlu0 %3190
    %3194 = vset.pattern.permute.xlu0 0
    %3195 = vperm.xlu0 %3194, %v3109
    %v3196 = vpop.permute.xlu0 %3195
    %3199 = vset.pattern.permute.xlu0 0
    %3200 = vperm.xlu0 %3199, %v3110
    %v3201 = vpop.permute.xlu0 %3200
    %3204 = vset.pattern.permute.xlu0 0
    %3205 = vperm.xlu0 %3204, %v3111
    %v3206 = vpop.permute.xlu0 %3205
    %3209 = vset.pattern.permute.xlu0 0
    %3210 = vperm.xlu0 %3209, %v3112
    %v3211 = vpop.permute.xlu0 %3210
    %3214 = vset.pattern.permute.xlu0 0
    %3215 = vperm.xlu0 %3214, %v3113
    %v3216 = vpop.permute.xlu0 %3215
    %3219 = vset.pattern.permute.xlu0 0
    %3220 = vperm.xlu0 %3219, %v3114
    %v3221 = vpop.permute.xlu0 %3220
    %3224 = vset.pattern.permute.xlu0 0
    %3225 = vperm.xlu0 %3224, %v3115
    %v3226 = vpop.permute.xlu0 %3225
    %3229 = vset.pattern.permute.xlu0 0
    %3230 = vperm.xlu0 %3229, %v3116
    %v3231 = vpop.permute.xlu0 %3230
    %3234 = vset.pattern.permute.xlu0 0
    %3235 = vperm.xlu0 %3234, %v3117
    %v3236 = vpop.permute.xlu0 %3235
    %3239 = vset.pattern.permute.xlu0 0
    %3240 = vperm.xlu0 %3239, %v3118
    %v3241 = vpop.permute.xlu0 %3240
    %3244 = vset.pattern.permute.xlu0 0
    %3245 = vperm.xlu0 %3244, %v3119
    %v3246 = vpop.permute.xlu0 %3245
    %3249 = vset.pattern.permute.xlu0 0
    %3250 = vperm.xlu0 %3249, %v3120
    %v3251 = vpop.permute.xlu0 %3250
    %3254 = vset.pattern.permute.xlu0 0
    %3255 = vperm.xlu0 %3254, %v3121
    %v3256 = vpop.permute.xlu0 %3255
    %3259 = vset.pattern.permute.xlu0 0
    %3260 = vperm.xlu0 %3259, %v3122
    %v3261 = vpop.permute.xlu0 %3260
    %3264 = vset.pattern.permute.xlu0 0
    %3265 = vperm.xlu0 %3264, %v3123
    %v3266 = vpop.permute.xlu0 %3265
    %3269 = vset.pattern.permute.xlu0 0
    %3270 = vperm.xlu0 %3269, %v3124
    %v3271 = vpop.permute.xlu0 %3270
    %3274 = vset.pattern.permute.xlu0 0
    %3275 = vperm.xlu0 %3274, %v3125
    %v3276 = vpop.permute.xlu0 %3275
    %3279 = vset.pattern.permute.xlu0 0
    %3280 = vperm.xlu0 %3279, %v3126
    %v3281 = vpop.permute.xlu0 %3280
    %3284 = vset.pattern.permute.xlu0 0
    %3285 = vperm.xlu0 %3284, %v3127
    %v3286 = vpop.permute.xlu0 %3285
    %3289 = vset.pattern.permute.xlu0 0
    %3290 = vperm.xlu0 %3289, %v3128
    %v3291 = vpop.permute.xlu0 %3290
    %3294 = vset.pattern.permute.xlu0 0
    %3295 = vperm.xlu0 %3294, %v3129
    %v3296 = vpop.permute.xlu0 %3295
    %3299 = vset.pattern.permute.xlu0 0
    %3300 = vperm.xlu0 %3299, %v3130
    %v3301 = vpop.permute.xlu0 %3300
    %3304 = vset.pattern.permute.xlu0 0
    %3305 = vperm.xlu0 %3304, %v3131
    %v3306 = vpop.permute.xlu0 %3305
    %3309 = vset.pattern.permute.xlu0 0
    %3310 = vperm.xlu0 %3309, %v3132
    %v3311 = vpop.permute.xlu0 %3310
    %3314 = vset.pattern.permute.xlu0 0
    %3315 = vperm.xlu0 %3314, %v3133
    %v3316 = vpop.permute.xlu0 %3315
    %3319 = vset.pattern.permute.xlu0 0
    %3320 = vperm.xlu0 %3319, %v3134
    %v3321 = vpop.permute.xlu0 %3320
    %3324 = vset.pattern.permute.xlu0 0
    %3325 = vperm.xlu0 %3324, %v3135
    %v3326 = vpop.permute.xlu0 %3325
    %3329 = vset.pattern.permute.xlu0 0
    %3330 = vperm.xlu0 %3329, %v3136
    %v3331 = vpop.permute.xlu0 %3330
    %3334 = vset.pattern.permute.xlu0 0
    %3335 = vperm.xlu0 %3334, %v3137
    %v3336 = vpop.permute.xlu0 %3335
    %3339 = vset.pattern.permute.xlu0 0
    %3340 = vperm.xlu0 %3339, %v3138
    %v3341 = vpop.permute.xlu0 %3340
    %3344 = vset.pattern.permute.xlu0 0
    %3345 = vperm.xlu0 %3344, %v3139
    %v3346 = vpop.permute.xlu0 %3345
    %3349 = vset.pattern.permute.xlu0 0
    %3350 = vperm.xlu0 %3349, %v3140
    %v3351 = vpop.permute.xlu0 %3350
    %3354 = vset.pattern.permute.xlu0 0
    %3355 = vperm.xlu0 %3354, %v3141
    %v3356 = vpop.permute.xlu0 %3355
    %3359 = vset.pattern.permute.xlu0 0
    %3360 = vperm.xlu0 %3359, %v3142
    %v3361 = vpop.permute.xlu0 %3360
    %3364 = vset.pattern.permute.xlu0 0
    %3365 = vperm.xlu0 %3364, %v3143
    %v3366 = vpop.permute.xlu0 %3365
    %3369 = vset.pattern.permute.xlu0 0
    %3370 = vperm.xlu0 %3369, %v3144
    %v3371 = vpop.permute.xlu0 %3370
    %3374 = vset.pattern.permute.xlu0 0
    %3375 = vperm.xlu0 %3374, %v3145
    %v3376 = vpop.permute.xlu0 %3375
    %3379 = vset.pattern.permute.xlu0 0
    %3380 = vperm.xlu0 %3379, %v3146
    %v3381 = vpop.permute.xlu0 %3380
    %3384 = vset.pattern.permute.xlu0 0
    %3385 = vperm.xlu0 %3384, %v3147
    %v3386 = vpop.permute.xlu0 %3385
    %3389 = vset.pattern.permute.xlu0 0
    %3390 = vperm.xlu0 %3389, %v3148
    %v3391 = vpop.permute.xlu0 %3390
    %3394 = vset.pattern.permute.xlu0 0
    %3395 = vperm.xlu0 %3394, %v3149
    %v3396 = vpop.permute.xlu0 %3395
    %3399 = vset.pattern.permute.xlu0 0
    %3400 = vperm.xlu0 %3399, %v3150
    %v3401 = vpop.permute.xlu0 %3400
    %3404 = vset.pattern.permute.xlu0 0
    %3405 = vperm.xlu0 %3404, %v3151
    %v3406 = vpop.permute.xlu0 %3405
    %3409 = vset.pattern.permute.xlu0 0
    %3410 = vperm.xlu0 %3409, %v3152
    %v3411 = vpop.permute.xlu0 %3410
    %3414 = vset.pattern.permute.xlu0 0
    %3415 = vperm.xlu0 %3414, %v3153
    %v3416 = vpop.permute.xlu0 %3415
    %3419 = vset.pattern.permute.xlu0 0
    %3420 = vperm.xlu0 %3419, %v3154
    %v3421 = vpop.permute.xlu0 %3420
    %3424 = vset.pattern.permute.xlu0 0
    %3425 = vperm.xlu0 %3424, %v3155
    %v3426 = vpop.permute.xlu0 %3425
    %3429 = vset.pattern.permute.xlu0 0
    %3430 = vperm.xlu0 %3429, %v3156
    %v3431 = vpop.permute.xlu0 %3430
    %3434 = vset.pattern.permute.xlu0 0
    %3435 = vperm.xlu0 %3434, %v3157
    %v3436 = vpop.permute.xlu0 %3435
    %3439 = vset.pattern.permute.xlu0 0
    %3440 = vperm.xlu0 %3439, %v3158
    %v3441 = vpop.permute.xlu0 %3440
    %3444 = vset.pattern.permute.xlu0 0
    %3445 = vperm.xlu0 %3444, %v3159
    %v3446 = vpop.permute.xlu0 %3445
    %3449 = vset.pattern.permute.xlu0 0
    %3450 = vperm.xlu0 %3449, %v3160
    %v3451 = vpop.permute.xlu0 %3450
    %3454 = vset.pattern.permute.xlu0 0
    %3455 = vperm.xlu0 %3454, %v3161
    %v3456 = vpop.permute.xlu0 %3455
    %3459 = vset.pattern.permute.xlu0 0
    %3460 = vperm.xlu0 %3459, %v3162
    %v3461 = vpop.permute.xlu0 %3460
    %3464 = vset.pattern.permute.xlu0 0
    %3465 = vperm.xlu0 %3464, %v3163
    %v3466 = vpop.permute.xlu0 %3465
    %3469 = vset.pattern.permute.xlu0 0
    %3470 = vperm.xlu0 %3469, %v3164
    %v3471 = vpop.permute.xlu0 %3470
    %3474 = vset.pattern.permute.xlu0 0
    %3475 = vperm.xlu0 %3474, %v3165
    %v3476 = vpop.permute.xlu0 %3475
    %3479 = vset.pattern.permute.xlu0 0
    %3480 = vperm.xlu0 %3479, %v3166
    %v3481 = vpop.permute.xlu0 %3480
    %3484 = vset.pattern.permute.xlu0 0
    %3485 = vperm.xlu0 %3484, %v3167
    %v3486 = vpop.permute.xlu0 %3485
    %v3616 = vunpack.c.l.b16 %v2976
    %v3617 = vunpack.c.h.b16 %v2976
    %v3618 = vunpack.c.l.b16 %v2977
    %v3619 = vunpack.c.h.b16 %v2977
    %v3620 = vunpack.c.l.b16 %v2978
    %v3621 = vunpack.c.h.b16 %v2978
    %v3622 = vunpack.c.l.b16 %v2979
    %v3623 = vunpack.c.h.b16 %v2979
    %v3624 = vunpack.c.l.b16 %v2980
    %v3625 = vunpack.c.h.b16 %v2980
    %v3626 = vunpack.c.l.b16 %v2981
    %v3627 = vunpack.c.h.b16 %v2981
    %v3628 = vunpack.c.l.b16 %v2982
    %v3629 = vunpack.c.h.b16 %v2982
    %v3630 = vunpack.c.l.b16 %v2983
    %v3631 = vunpack.c.h.b16 %v2983
    %v3632 = vunpack.c.l.b16 %v2984
    %v3633 = vunpack.c.h.b16 %v2984
    %v3634 = vunpack.c.l.b16 %v2985
    %v3635 = vunpack.c.h.b16 %v2985
    %v3636 = vunpack.c.l.b16 %v2986
    %v3637 = vunpack.c.h.b16 %v2986
    %v3638 = vunpack.c.l.b16 %v2987
    %v3639 = vunpack.c.h.b16 %v2987
    %v3640 = vunpack.c.l.b16 %v2988
    %v3641 = vunpack.c.h.b16 %v2988
    %v3642 = vunpack.c.l.b16 %v2989
    %v3643 = vunpack.c.h.b16 %v2989
    %v3644 = vunpack.c.l.b16 %v2990
    %v3645 = vunpack.c.h.b16 %v2990
    %v3646 = vunpack.c.l.b16 %v2991
    %v3647 = vunpack.c.h.b16 %v2991
    %v3648 = vunpack.c.l.b16 %v2992
    %v3649 = vunpack.c.h.b16 %v2992
    %v3650 = vunpack.c.l.b16 %v2993
    %v3651 = vunpack.c.h.b16 %v2993
    %v3652 = vunpack.c.l.b16 %v2994
    %v3653 = vunpack.c.h.b16 %v2994
    %v3654 = vunpack.c.l.b16 %v2995
    %v3655 = vunpack.c.h.b16 %v2995
    %v3656 = vunpack.c.l.b16 %v2996
    %v3657 = vunpack.c.h.b16 %v2996
    %v3658 = vunpack.c.l.b16 %v2997
    %v3659 = vunpack.c.h.b16 %v2997
    %v3660 = vunpack.c.l.b16 %v2998
    %v3661 = vunpack.c.h.b16 %v2998
    %v3662 = vunpack.c.l.b16 %v2999
    %v3663 = vunpack.c.h.b16 %v2999
    %v3664 = vunpack.c.l.b16 %v3000
    %v3665 = vunpack.c.h.b16 %v3000
    %v3666 = vunpack.c.l.b16 %v3001
    %v3667 = vunpack.c.h.b16 %v3001
    %v3668 = vunpack.c.l.b16 %v3002
    %v3669 = vunpack.c.h.b16 %v3002
    %v3670 = vunpack.c.l.b16 %v3003
    %v3671 = vunpack.c.h.b16 %v3003
    %v3672 = vunpack.c.l.b16 %v3004
    %v3673 = vunpack.c.h.b16 %v3004
    %v3674 = vunpack.c.l.b16 %v3005
    %v3675 = vunpack.c.h.b16 %v3005
    %v3676 = vunpack.c.l.b16 %v3006
    %v3677 = vunpack.c.h.b16 %v3006
    %v3678 = vunpack.c.l.b16 %v3007
    %v3679 = vunpack.c.h.b16 %v3007
    %v3680 = vunpack.c.l.b16 %v3008
    %v3681 = vunpack.c.h.b16 %v3008
    %v3682 = vunpack.c.l.b16 %v3009
    %v3683 = vunpack.c.h.b16 %v3009
    %v3684 = vunpack.c.l.b16 %v3010
    %v3685 = vunpack.c.h.b16 %v3010
    %v3686 = vunpack.c.l.b16 %v3011
    %v3687 = vunpack.c.h.b16 %v3011
    %v3688 = vunpack.c.l.b16 %v3012
    %v3689 = vunpack.c.h.b16 %v3012
    %v3690 = vunpack.c.l.b16 %v3013
    %v3691 = vunpack.c.h.b16 %v3013
    %v3692 = vunpack.c.l.b16 %v3014
    %v3693 = vunpack.c.h.b16 %v3014
    %v3694 = vunpack.c.l.b16 %v3015
    %v3695 = vunpack.c.h.b16 %v3015
    %v3696 = vunpack.c.l.b16 %v3016
    %v3697 = vunpack.c.h.b16 %v3016
    %v3698 = vunpack.c.l.b16 %v3017
    %v3699 = vunpack.c.h.b16 %v3017
    %v3700 = vunpack.c.l.b16 %v3018
    %v3701 = vunpack.c.h.b16 %v3018
    %v3702 = vunpack.c.l.b16 %v3019
    %v3703 = vunpack.c.h.b16 %v3019
    %v3704 = vunpack.c.l.b16 %v3020
    %v3705 = vunpack.c.h.b16 %v3020
    %v3706 = vunpack.c.l.b16 %v3021
    %v3707 = vunpack.c.h.b16 %v3021
    %v3708 = vunpack.c.l.b16 %v3022
    %v3709 = vunpack.c.h.b16 %v3022
    %v3710 = vunpack.c.l.b16 %v3023
    %v3711 = vunpack.c.h.b16 %v3023
    %v3712 = vunpack.c.l.b16 %v3024
    %v3713 = vunpack.c.h.b16 %v3024
    %v3714 = vunpack.c.l.b16 %v3025
    %v3715 = vunpack.c.h.b16 %v3025
    %v3716 = vunpack.c.l.b16 %v3026
    %v3717 = vunpack.c.h.b16 %v3026
    %v3718 = vunpack.c.l.b16 %v3027
    %v3719 = vunpack.c.h.b16 %v3027
    %v3720 = vunpack.c.l.b16 %v3028
    %v3721 = vunpack.c.h.b16 %v3028
    %v3722 = vunpack.c.l.b16 %v3029
    %v3723 = vunpack.c.h.b16 %v3029
    %v3724 = vunpack.c.l.b16 %v3030
    %v3725 = vunpack.c.h.b16 %v3030
    %v3726 = vunpack.c.l.b16 %v3031
    %v3727 = vunpack.c.h.b16 %v3031
    %v3728 = vunpack.c.l.b16 %v3032
    %v3729 = vunpack.c.h.b16 %v3032
    %v3730 = vunpack.c.l.b16 %v3033
    %v3731 = vunpack.c.h.b16 %v3033
    %v3732 = vunpack.c.l.b16 %v3034
    %v3733 = vunpack.c.h.b16 %v3034
    %v3734 = vunpack.c.l.b16 %v3035
    %v3735 = vunpack.c.h.b16 %v3035
    %v3736 = vunpack.c.l.b16 %v3036
    %v3737 = vunpack.c.h.b16 %v3036
    %v3738 = vunpack.c.l.b16 %v3037
    %v3739 = vunpack.c.h.b16 %v3037
    %v3740 = vunpack.c.l.b16 %v3038
    %v3741 = vunpack.c.h.b16 %v3038
    %v3742 = vunpack.c.l.b16 %v3039
    %v3743 = vunpack.c.h.b16 %v3039
    %v3744 = vunpack.c.l.b16 %v3040
    %v3745 = vunpack.c.h.b16 %v3040
    %v3746 = vunpack.c.l.b16 %v3041
    %v3747 = vunpack.c.h.b16 %v3041
    %v3748 = vunpack.c.l.b16 %v3042
    %v3749 = vunpack.c.h.b16 %v3042
    %v3750 = vunpack.c.l.b16 %v3043
    %v3751 = vunpack.c.h.b16 %v3043
    %v3752 = vunpack.c.l.b16 %v3044
    %v3753 = vunpack.c.h.b16 %v3044
    %v3754 = vunpack.c.l.b16 %v3045
    %v3755 = vunpack.c.h.b16 %v3045
    %v3756 = vunpack.c.l.b16 %v3046
    %v3757 = vunpack.c.h.b16 %v3046
    %v3758 = vunpack.c.l.b16 %v3047
    %v3759 = vunpack.c.h.b16 %v3047
    %v3760 = vunpack.c.l.b16 %v3048
    %v3761 = vunpack.c.h.b16 %v3048
    %v3762 = vunpack.c.l.b16 %v3049
    %v3763 = vunpack.c.h.b16 %v3049
    %v3764 = vunpack.c.l.b16 %v3050
    %v3765 = vunpack.c.h.b16 %v3050
    %v3766 = vunpack.c.l.b16 %v3051
    %v3767 = vunpack.c.h.b16 %v3051
    %v3768 = vunpack.c.l.b16 %v3052
    %v3769 = vunpack.c.h.b16 %v3052
    %v3770 = vunpack.c.l.b16 %v3053
    %v3771 = vunpack.c.h.b16 %v3053
    %v3772 = vunpack.c.l.b16 %v3054
    %v3773 = vunpack.c.h.b16 %v3054
    %v3774 = vunpack.c.l.b16 %v3055
    %v3775 = vunpack.c.h.b16 %v3055
    %v3776 = vunpack.c.l.b16 %v3056
    %v3777 = vunpack.c.h.b16 %v3056
    %v3778 = vunpack.c.l.b16 %v3057
    %v3779 = vunpack.c.h.b16 %v3057
    %v3780 = vunpack.c.l.b16 %v3058
    %v3781 = vunpack.c.h.b16 %v3058
    %v3782 = vunpack.c.l.b16 %v3059
    %v3783 = vunpack.c.h.b16 %v3059
    %v3784 = vunpack.c.l.b16 %v3060
    %v3785 = vunpack.c.h.b16 %v3060
    %v3786 = vunpack.c.l.b16 %v3061
    %v3787 = vunpack.c.h.b16 %v3061
    %v3788 = vunpack.c.l.b16 %v3062
    %v3789 = vunpack.c.h.b16 %v3062
    %v3790 = vunpack.c.l.b16 %v3063
    %v3791 = vunpack.c.h.b16 %v3063
    %v3792 = vunpack.c.l.b16 %v3064
    %v3793 = vunpack.c.h.b16 %v3064
    %v3794 = vunpack.c.l.b16 %v3065
    %v3795 = vunpack.c.h.b16 %v3065
    %v3796 = vunpack.c.l.b16 %v3066
    %v3797 = vunpack.c.h.b16 %v3066
    %v3798 = vunpack.c.l.b16 %v3067
    %v3799 = vunpack.c.h.b16 %v3067
    %v3800 = vunpack.c.l.b16 %v3068
    %v3801 = vunpack.c.h.b16 %v3068
    %v3802 = vunpack.c.l.b16 %v3069
    %v3803 = vunpack.c.h.b16 %v3069
    %v3804 = vunpack.c.l.b16 %v3070
    %v3805 = vunpack.c.h.b16 %v3070
    %v3806 = vunpack.c.l.b16 %v3071
    %v3807 = vunpack.c.h.b16 %v3071
    %v3808 = vunpack.c.l.b16 %v3072
    %v3809 = vunpack.c.h.b16 %v3072
    %v3810 = vunpack.c.l.b16 %v3073
    %v3811 = vunpack.c.h.b16 %v3073
    %v3812 = vunpack.c.l.b16 %v3074
    %v3813 = vunpack.c.h.b16 %v3074
    %v3814 = vunpack.c.l.b16 %v3075
    %v3815 = vunpack.c.h.b16 %v3075
    %v3816 = vunpack.c.l.b16 %v3076
    %v3817 = vunpack.c.h.b16 %v3076
    %v3818 = vunpack.c.l.b16 %v3077
    %v3819 = vunpack.c.h.b16 %v3077
    %v3820 = vunpack.c.l.b16 %v3078
    %v3821 = vunpack.c.h.b16 %v3078
    %v3822 = vunpack.c.l.b16 %v3079
    %v3823 = vunpack.c.h.b16 %v3079
    %v3824 = vunpack.c.l.b16 %v3080
    %v3825 = vunpack.c.h.b16 %v3080
    %v3826 = vunpack.c.l.b16 %v3081
    %v3827 = vunpack.c.h.b16 %v3081
    %v3828 = vunpack.c.l.b16 %v3082
    %v3829 = vunpack.c.h.b16 %v3082
    %v3830 = vunpack.c.l.b16 %v3083
    %v3831 = vunpack.c.h.b16 %v3083
    %v3832 = vunpack.c.l.b16 %v3084
    %v3833 = vunpack.c.h.b16 %v3084
    %v3834 = vunpack.c.l.b16 %v3085
    %v3835 = vunpack.c.h.b16 %v3085
    %v3836 = vunpack.c.l.b16 %v3086
    %v3837 = vunpack.c.h.b16 %v3086
    %v3838 = vunpack.c.l.b16 %v3087
    %v3839 = vunpack.c.h.b16 %v3087
    %v3840 = vunpack.c.l.b16 %v3088
    %v3841 = vunpack.c.h.b16 %v3088
    %v3842 = vunpack.c.l.b16 %v3089
    %v3843 = vunpack.c.h.b16 %v3089
    %v3844 = vunpack.c.l.b16 %v3090
    %v3845 = vunpack.c.h.b16 %v3090
    %v3846 = vunpack.c.l.b16 %v3091
    %v3847 = vunpack.c.h.b16 %v3091
    %v3848 = vunpack.c.l.b16 %v3092
    %v3849 = vunpack.c.h.b16 %v3092
    %v3850 = vunpack.c.l.b16 %v3093
    %v3851 = vunpack.c.h.b16 %v3093
    %v3852 = vunpack.c.l.b16 %v3094
    %v3853 = vunpack.c.h.b16 %v3094
    %v3854 = vunpack.c.l.b16 %v3095
    %v3855 = vunpack.c.h.b16 %v3095
    %v3856 = vunpack.c.l.b16 %v3096
    %v3857 = vunpack.c.h.b16 %v3096
    %v3858 = vunpack.c.l.b16 %v3097
    %v3859 = vunpack.c.h.b16 %v3097
    %v3860 = vunpack.c.l.b16 %v3098
    %v3861 = vunpack.c.h.b16 %v3098
    %v3862 = vunpack.c.l.b16 %v3099
    %v3863 = vunpack.c.h.b16 %v3099
    %v3864 = vunpack.c.l.b16 %v3100
    %v3865 = vunpack.c.h.b16 %v3100
    %v3866 = vunpack.c.l.b16 %v3101
    %v3867 = vunpack.c.h.b16 %v3101
    %v3868 = vunpack.c.l.b16 %v3102
    %v3869 = vunpack.c.h.b16 %v3102
    %v3870 = vunpack.c.l.b16 %v3103
    %v3871 = vunpack.c.h.b16 %v3103
    %v3872 = vpack.c.b16 %v3620, %v3616
    %v3873 = vpack.c.b16 %v3621, %v3617
    %v3874 = vpack.c.b16 %v3622, %v3618
    %v3875 = vpack.c.b16 %v3623, %v3619
    %v3876 = vpack.c.b16 %v3628, %v3624
    %v3877 = vpack.c.b16 %v3629, %v3625
    %v3878 = vpack.c.b16 %v3630, %v3626
    %v3879 = vpack.c.b16 %v3631, %v3627
    %v3880 = vpack.c.b16 %v3636, %v3632
    %v3881 = vpack.c.b16 %v3637, %v3633
    %v3882 = vpack.c.b16 %v3638, %v3634
    %v3883 = vpack.c.b16 %v3639, %v3635
    %v3884 = vpack.c.b16 %v3644, %v3640
    %v3885 = vpack.c.b16 %v3645, %v3641
    %v3886 = vpack.c.b16 %v3646, %v3642
    %v3887 = vpack.c.b16 %v3647, %v3643
    %v3888 = vpack.c.b16 %v3652, %v3648
    %v3889 = vpack.c.b16 %v3653, %v3649
    %v3890 = vpack.c.b16 %v3654, %v3650
    %v3891 = vpack.c.b16 %v3655, %v3651
    %v3892 = vpack.c.b16 %v3660, %v3656
    %v3893 = vpack.c.b16 %v3661, %v3657
    %v3894 = vpack.c.b16 %v3662, %v3658
    %v3895 = vpack.c.b16 %v3663, %v3659
    %v3896 = vpack.c.b16 %v3668, %v3664
    %v3897 = vpack.c.b16 %v3669, %v3665
    %v3898 = vpack.c.b16 %v3670, %v3666
    %v3899 = vpack.c.b16 %v3671, %v3667
    %v3900 = vpack.c.b16 %v3676, %v3672
    %v3901 = vpack.c.b16 %v3677, %v3673
    %v3902 = vpack.c.b16 %v3678, %v3674
    %v3903 = vpack.c.b16 %v3679, %v3675
    %v3904 = vpack.c.b16 %v3684, %v3680
    %v3905 = vpack.c.b16 %v3685, %v3681
    %v3906 = vpack.c.b16 %v3686, %v3682
    %v3907 = vpack.c.b16 %v3687, %v3683
    %v3908 = vpack.c.b16 %v3692, %v3688
    %v3909 = vpack.c.b16 %v3693, %v3689
    %v3910 = vpack.c.b16 %v3694, %v3690
    %v3911 = vpack.c.b16 %v3695, %v3691
    %v3912 = vpack.c.b16 %v3700, %v3696
    %v3913 = vpack.c.b16 %v3701, %v3697
    %v3914 = vpack.c.b16 %v3702, %v3698
    %v3915 = vpack.c.b16 %v3703, %v3699
    %v3916 = vpack.c.b16 %v3708, %v3704
    %v3917 = vpack.c.b16 %v3709, %v3705
    %v3918 = vpack.c.b16 %v3710, %v3706
    %v3919 = vpack.c.b16 %v3711, %v3707
    %v3920 = vpack.c.b16 %v3716, %v3712
    %v3921 = vpack.c.b16 %v3717, %v3713
    %v3922 = vpack.c.b16 %v3718, %v3714
    %v3923 = vpack.c.b16 %v3719, %v3715
    %v3924 = vpack.c.b16 %v3724, %v3720
    %v3925 = vpack.c.b16 %v3725, %v3721
    %v3926 = vpack.c.b16 %v3726, %v3722
    %v3927 = vpack.c.b16 %v3727, %v3723
    %v3928 = vpack.c.b16 %v3732, %v3728
    %v3929 = vpack.c.b16 %v3733, %v3729
    %v3930 = vpack.c.b16 %v3734, %v3730
    %v3931 = vpack.c.b16 %v3735, %v3731
    %v3932 = vpack.c.b16 %v3740, %v3736
    %v3933 = vpack.c.b16 %v3741, %v3737
    %v3934 = vpack.c.b16 %v3742, %v3738
    %v3935 = vpack.c.b16 %v3743, %v3739
    %v3936 = vpack.c.b16 %v3748, %v3744
    %v3937 = vpack.c.b16 %v3749, %v3745
    %v3938 = vpack.c.b16 %v3750, %v3746
    %v3939 = vpack.c.b16 %v3751, %v3747
    %v3940 = vpack.c.b16 %v3756, %v3752
    %v3941 = vpack.c.b16 %v3757, %v3753
    %v3942 = vpack.c.b16 %v3758, %v3754
    %v3943 = vpack.c.b16 %v3759, %v3755
    %v3944 = vpack.c.b16 %v3764, %v3760
    %v3945 = vpack.c.b16 %v3765, %v3761
    %v3946 = vpack.c.b16 %v3766, %v3762
    %v3947 = vpack.c.b16 %v3767, %v3763
    %v3948 = vpack.c.b16 %v3772, %v3768
    %v3949 = vpack.c.b16 %v3773, %v3769
    %v3950 = vpack.c.b16 %v3774, %v3770
    %v3951 = vpack.c.b16 %v3775, %v3771
    %v3952 = vpack.c.b16 %v3780, %v3776
    %v3953 = vpack.c.b16 %v3781, %v3777
    %v3954 = vpack.c.b16 %v3782, %v3778
    %v3955 = vpack.c.b16 %v3783, %v3779
    %v3956 = vpack.c.b16 %v3788, %v3784
    %v3957 = vpack.c.b16 %v3789, %v3785
    %v3958 = vpack.c.b16 %v3790, %v3786
    %v3959 = vpack.c.b16 %v3791, %v3787
    %v3960 = vpack.c.b16 %v3796, %v3792
    %v3961 = vpack.c.b16 %v3797, %v3793
    %v3962 = vpack.c.b16 %v3798, %v3794
    %v3963 = vpack.c.b16 %v3799, %v3795
    %v3964 = vpack.c.b16 %v3804, %v3800
    %v3965 = vpack.c.b16 %v3805, %v3801
    %v3966 = vpack.c.b16 %v3806, %v3802
    %v3967 = vpack.c.b16 %v3807, %v3803
    %v3968 = vpack.c.b16 %v3812, %v3808
    %v3969 = vpack.c.b16 %v3813, %v3809
    %v3970 = vpack.c.b16 %v3814, %v3810
    %v3971 = vpack.c.b16 %v3815, %v3811
    %v3972 = vpack.c.b16 %v3820, %v3816
    %v3973 = vpack.c.b16 %v3821, %v3817
    %v3974 = vpack.c.b16 %v3822, %v3818
    %v3975 = vpack.c.b16 %v3823, %v3819
    %v3976 = vpack.c.b16 %v3828, %v3824
    %v3977 = vpack.c.b16 %v3829, %v3825
    %v3978 = vpack.c.b16 %v3830, %v3826
    %v3979 = vpack.c.b16 %v3831, %v3827
    %v3980 = vpack.c.b16 %v3836, %v3832
    %v3981 = vpack.c.b16 %v3837, %v3833
    %v3982 = vpack.c.b16 %v3838, %v3834
    %v3983 = vpack.c.b16 %v3839, %v3835
    %v3984 = vpack.c.b16 %v3844, %v3840
    %v3985 = vpack.c.b16 %v3845, %v3841
    %v3986 = vpack.c.b16 %v3846, %v3842
    %v3987 = vpack.c.b16 %v3847, %v3843
    %v3988 = vpack.c.b16 %v3852, %v3848
    %v3989 = vpack.c.b16 %v3853, %v3849
    %v3990 = vpack.c.b16 %v3854, %v3850
    %v3991 = vpack.c.b16 %v3855, %v3851
    %v3992 = vpack.c.b16 %v3860, %v3856
    %v3993 = vpack.c.b16 %v3861, %v3857
    %v3994 = vpack.c.b16 %v3862, %v3858
    %v3995 = vpack.c.b16 %v3863, %v3859
    %v3996 = vpack.c.b16 %v3868, %v3864
    %v3997 = vpack.c.b16 %v3869, %v3865
    %v3998 = vpack.c.b16 %v3870, %v3866
    %v3999 = vpack.c.b16 %v3871, %v3867
    %4128 = vmatprep.subr.bf16.mxu0 0
    %4129 = vmatpush1.bf16.msra.mxu0 %v2944
    %4130 = vmatprep.subr.bf16.mxu0 0
    %4131 = vmatpush1.bf16.msra.mxu0 %v2945
    %4132 = vmatprep.subr.bf16.mxu0 0
    %4133 = vmatpush1.bf16.msra.mxu0 %v2946
    %4134 = vmatprep.subr.bf16.mxu0 0
    %4135 = vmatpush1.bf16.msra.mxu0 %v2947
    %4136 = vmatprep.subr.bf16.mxu0 0
    %4137 = vmatpush1.bf16.msra.mxu0 %v2948
    %4138 = vmatprep.subr.bf16.mxu0 0
    %4139 = vmatpush1.bf16.msra.mxu0 %v2949
    %4140 = vmatprep.subr.bf16.mxu0 0
    %4141 = vmatpush1.bf16.msra.mxu0 %v2950
    %4142 = vmatprep.subr.bf16.mxu0 0
    %4143 = vmatpush1.bf16.msra.mxu0 %v2951
    %4144 = vmatprep.subr.bf16.mxu0 0
    %4145 = vmatpush1.bf16.msra.mxu0 %v2952
    %4146 = vmatprep.subr.bf16.mxu0 0
    %4147 = vmatpush1.bf16.msra.mxu0 %v2953
    %4148 = vmatprep.subr.bf16.mxu0 0
    %4149 = vmatpush1.bf16.msra.mxu0 %v2954
    %4150 = vmatprep.subr.bf16.mxu0 0
    %4151 = vmatpush1.bf16.msra.mxu0 %v2955
    %4152 = vmatprep.subr.bf16.mxu0 0
    %4153 = vmatpush1.bf16.msra.mxu0 %v2956
    %4154 = vmatprep.subr.bf16.mxu0 0
    %4155 = vmatpush1.bf16.msra.mxu0 %v2957
    %4156 = vmatprep.subr.bf16.mxu0 0
    %4157 = vmatpush1.bf16.msra.mxu0 %v2958
    %4158 = vmatprep.subr.bf16.mxu0 0
    %4159 = vmatpush1.bf16.msra.mxu0 %v2959
    %4160 = vmatprep.mubr.bf16.mxu0 %v3873
    %4161 = vmatmul.mubr.bf16.gmra.mrb[0].mxu0 %v3872
    %v4162 = vpop.f32.mrb[0].mxu0
    %v4163 = vadd.f32 %v3171, %v4162
    %v4164 = vpop.f32.mrb[0].mxu0
    %v4165 = vpop.f32.mrb[0].mxu0
    %v4166 = vadd.f32 %v3176, %v4165
    %v4167 = vpop.f32.mrb[0].mxu0
    %4168 = vmatprep.mubr.bf16.mxu0 %v3877
    %4169 = vmatmul.mubr.bf16.gmra.mrb[0].mxu0 %v3876
    %v4170 = vpop.f32.mrb[0].mxu0
    %v4171 = vadd.f32 %v3181, %v4170
    %v4172 = vpop.f32.mrb[0].mxu0
    %v4173 = vpop.f32.mrb[0].mxu0
    %v4174 = vadd.f32 %v3186, %v4173
    %v4175 = vpop.f32.mrb[0].mxu0
    %4176 = vmatprep.mubr.bf16.mxu0 %v3881
    %4177 = vmatmul.mubr.bf16.gmra.mrb[0].mxu0 %v3880
    %v4178 = vpop.f32.mrb[0].mxu0
    %v4179 = vadd.f32 %v3191, %v4178
    %v4180 = vpop.f32.mrb[0].mxu0
    %v4181 = vpop.f32.mrb[0].mxu0
    %v4182 = vadd.f32 %v3196, %v4181
    %v4183 = vpop.f32.mrb[0].mxu0
    %4184 = vmatprep.mubr.bf16.mxu0 %v3885
    %4185 = vmatmul.mubr.bf16.gmra.mrb[0].mxu0 %v3884
    %v4186 = vpop.f32.mrb[0].mxu0
    %v4187 = vadd.f32 %v3201, %v4186
    %v4188 = vpop.f32.mrb[0].mxu0
    %v4189 = vpop.f32.mrb[0].mxu0
    %v4190 = vadd.f32 %v3206, %v4189
    %v4191 = vpop.f32.mrb[0].mxu0
    %4192 = vmatprep.mubr.bf16.mxu0 %v3889
    %4193 = vmatmul.mubr.bf16.gmra.mrb[0].mxu0 %v3888
    %v4194 = vpop.f32.mrb[0].mxu0
    %v4195 = vadd.f32 %v3211, %v4194
    %v4196 = vpop.f32.mrb[0].mxu0
    %v4197 = vpop.f32.mrb[0].mxu0
    %v4198 = vadd.f32 %v3216, %v4197
    %v4199 = vpop.f32.mrb[0].mxu0
    %4200 = vmatprep.mubr.bf16.mxu0 %v3893
    %4201 = vmatmul.mubr.bf16.gmra.mrb[0].mxu0 %v3892
    %v4202 = vpop.f32.mrb[0].mxu0
    %v4203 = vadd.f32 %v3221, %v4202
    %v4204 = vpop.f32.mrb[0].mxu0
    %v4205 = vpop.f32.mrb[0].mxu0
    %v4206 = vadd.f32 %v3226, %v4205
    %v4207 = vpop.f32.mrb[0].mxu0
    %4208 = vmatprep.mubr.bf16.mxu0 %v3897
    %4209 = vmatmul.mubr.bf16.gmra.mrb[0].mxu0 %v3896
    %v4210 = vpop.f32.mrb[0].mxu0
    %v4211 = vadd.f32 %v3231, %v4210
    %v4212 = vpop.f32.mrb[0].mxu0
    %v4213 = vpop.f32.mrb[0].mxu0
    %v4214 = vadd.f32 %v3236, %v4213
    %v4215 = vpop.f32.mrb[0].mxu0
    %4216 = vmatprep.mubr.bf16.mxu0 %v3901
    %4217 = vmatmul.mubr.bf16.gmra.mrb[0].mxu0 %v3900
    %v4218 = vpop.f32.mrb[0].mxu0
    %v4219 = vadd.f32 %v3241, %v4218
    %v4220 = vpop.f32.mrb[0].mxu0
    %v4221 = vpop.f32.mrb[0].mxu0
    %v4222 = vadd.f32 %v3246, %v4221
    %v4223 = vpop.f32.mrb[0].mxu0
    %4224 = vmatprep.mubr.bf16.mxu0 %v3905
    %4225 = vmatmul.mubr.bf16.gmra.mrb[0].mxu0 %v3904
    %v4226 = vpop.f32.mrb[0].mxu0
    %v4227 = vadd.f32 %v3251, %v4226
    %v4228 = vpop.f32.mrb[0].mxu0
    %v4229 = vpop.f32.mrb[0].mxu0
    %v4230 = vadd.f32 %v3256, %v4229
    %v4231 = vpop.f32.mrb[0].mxu0
    %4232 = vmatprep.mubr.bf16.mxu0 %v3909
    %4233 = vmatmul.mubr.bf16.gmra.mrb[0].mxu0 %v3908
    %v4234 = vpop.f32.mrb[0].mxu0
    %v4235 = vadd.f32 %v3261, %v4234
    %v4236 = vpop.f32.mrb[0].mxu0
    %v4237 = vpop.f32.mrb[0].mxu0
    %v4238 = vadd.f32 %v3266, %v4237
    %v4239 = vpop.f32.mrb[0].mxu0
    %4240 = vmatprep.mubr.bf16.mxu0 %v3913
    %4241 = vmatmul.mubr.bf16.gmra.mrb[0].mxu0 %v3912
    %v4242 = vpop.f32.mrb[0].mxu0
    %v4243 = vadd.f32 %v3271, %v4242
    %v4244 = vpop.f32.mrb[0].mxu0
    %v4245 = vpop.f32.mrb[0].mxu0
    %v4246 = vadd.f32 %v3276, %v4245
    %v4247 = vpop.f32.mrb[0].mxu0
    %4248 = vmatprep.mubr.bf16.mxu0 %v3917
    %4249 = vmatmul.mubr.bf16.gmra.mrb[0].mxu0 %v3916
    %v4250 = vpop.f32.mrb[0].mxu0
    %v4251 = vadd.f32 %v3281, %v4250
    %v4252 = vpop.f32.mrb[0].mxu0
    %v4253 = vpop.f32.mrb[0].mxu0
    %v4254 = vadd.f32 %v3286, %v4253
    %v4255 = vpop.f32.mrb[0].mxu0
    %4256 = vmatprep.mubr.bf16.mxu0 %v3921
    %4257 = vmatmul.mubr.bf16.gmra.mrb[0].mxu0 %v3920
    %v4258 = vpop.f32.mrb[0].mxu0
    %v4259 = vadd.f32 %v3291, %v4258
    %v4260 = vpop.f32.mrb[0].mxu0
    %v4261 = vpop.f32.mrb[0].mxu0
    %v4262 = vadd.f32 %v3296, %v4261
    %v4263 = vpop.f32.mrb[0].mxu0
    %4264 = vmatprep.mubr.bf16.mxu0 %v3925
    %4265 = vmatmul.mubr.bf16.gmra.mrb[0].mxu0 %v3924
    %v4266 = vpop.f32.mrb[0].mxu0
    %v4267 = vadd.f32 %v3301, %v4266
    %v4268 = vpop.f32.mrb[0].mxu0
    %v4269 = vpop.f32.mrb[0].mxu0
    %v4270 = vadd.f32 %v3306, %v4269
    %v4271 = vpop.f32.mrb[0].mxu0
    %4272 = vmatprep.mubr.bf16.mxu0 %v3929
    %4273 = vmatmul.mubr.bf16.gmra.mrb[0].mxu0 %v3928
    %v4274 = vpop.f32.mrb[0].mxu0
    %v4275 = vadd.f32 %v3311, %v4274
    %v4276 = vpop.f32.mrb[0].mxu0
    %v4277 = vpop.f32.mrb[0].mxu0
    %v4278 = vadd.f32 %v3316, %v4277
    %v4279 = vpop.f32.mrb[0].mxu0
    %4280 = vmatprep.mubr.bf16.mxu0 %v3933
    %4281 = vmatmul.mubr.bf16.gmra.mrb[0].mxu0 %v3932
    %v4282 = vpop.f32.mrb[0].mxu0
    %v4283 = vadd.f32 %v3321, %v4282
    %v4284 = vpop.f32.mrb[0].mxu0
    %v4285 = vpop.f32.mrb[0].mxu0
    %v4286 = vadd.f32 %v3326, %v4285
    %v4287 = vpop.f32.mrb[0].mxu0
    %4288 = vmatprep.mubr.bf16.mxu0 %v3937
    %4289 = vmatmul.mubr.bf16.gmra.mrb[0].mxu0 %v3936
    %v4290 = vpop.f32.mrb[0].mxu0
    %v4291 = vadd.f32 %v3331, %v4290
    %v4292 = vpop.f32.mrb[0].mxu0
    %v4293 = vpop.f32.mrb[0].mxu0
    %v4294 = vadd.f32 %v3336, %v4293
    %v4295 = vpop.f32.mrb[0].mxu0
    %4296 = vmatprep.mubr.bf16.mxu0 %v3941
    %4297 = vmatmul.mubr.bf16.gmra.mrb[0].mxu0 %v3940
    %v4298 = vpop.f32.mrb[0].mxu0
    %v4299 = vadd.f32 %v3341, %v4298
    %v4300 = vpop.f32.mrb[0].mxu0
    %v4301 = vpop.f32.mrb[0].mxu0
    %v4302 = vadd.f32 %v3346, %v4301
    %v4303 = vpop.f32.mrb[0].mxu0
    %4304 = vmatprep.mubr.bf16.mxu0 %v3945
    %4305 = vmatmul.mubr.bf16.gmra.mrb[0].mxu0 %v3944
    %v4306 = vpop.f32.mrb[0].mxu0
    %v4307 = vadd.f32 %v3351, %v4306
    %v4308 = vpop.f32.mrb[0].mxu0
    %v4309 = vpop.f32.mrb[0].mxu0
    %v4310 = vadd.f32 %v3356, %v4309
    %v4311 = vpop.f32.mrb[0].mxu0
    %4312 = vmatprep.mubr.bf16.mxu0 %v3949
    %4313 = vmatmul.mubr.bf16.gmra.mrb[0].mxu0 %v3948
    %v4314 = vpop.f32.mrb[0].mxu0
    %v4315 = vadd.f32 %v3361, %v4314
    %v4316 = vpop.f32.mrb[0].mxu0
    %v4317 = vpop.f32.mrb[0].mxu0
    %v4318 = vadd.f32 %v3366, %v4317
    %v4319 = vpop.f32.mrb[0].mxu0
    %4320 = vmatprep.mubr.bf16.mxu0 %v3953
    %4321 = vmatmul.mubr.bf16.gmra.mrb[0].mxu0 %v3952
    %v4322 = vpop.f32.mrb[0].mxu0
    %v4323 = vadd.f32 %v3371, %v4322
    %v4324 = vpop.f32.mrb[0].mxu0
    %v4325 = vpop.f32.mrb[0].mxu0
    %v4326 = vadd.f32 %v3376, %v4325
    %v4327 = vpop.f32.mrb[0].mxu0
    %4328 = vmatprep.mubr.bf16.mxu0 %v3957
    %4329 = vmatmul.mubr.bf16.gmra.mrb[0].mxu0 %v3956
    %v4330 = vpop.f32.mrb[0].mxu0
    %v4331 = vadd.f32 %v3381, %v4330
    %v4332 = vpop.f32.mrb[0].mxu0
    %v4333 = vpop.f32.mrb[0].mxu0
    %v4334 = vadd.f32 %v3386, %v4333
    %v4335 = vpop.f32.mrb[0].mxu0
    %4336 = vmatprep.mubr.bf16.mxu0 %v3961
    %4337 = vmatmul.mubr.bf16.gmra.mrb[0].mxu0 %v3960
    %v4338 = vpop.f32.mrb[0].mxu0
    %v4339 = vadd.f32 %v3391, %v4338
    %v4340 = vpop.f32.mrb[0].mxu0
    %v4341 = vpop.f32.mrb[0].mxu0
    %v4342 = vadd.f32 %v3396, %v4341
    %v4343 = vpop.f32.mrb[0].mxu0
    %4344 = vmatprep.mubr.bf16.mxu0 %v3965
    %4345 = vmatmul.mubr.bf16.gmra.mrb[0].mxu0 %v3964
    %v4346 = vpop.f32.mrb[0].mxu0
    %v4347 = vadd.f32 %v3401, %v4346
    %v4348 = vpop.f32.mrb[0].mxu0
    %v4349 = vpop.f32.mrb[0].mxu0
    %v4350 = vadd.f32 %v3406, %v4349
    %v4351 = vpop.f32.mrb[0].mxu0
    %4352 = vmatprep.mubr.bf16.mxu0 %v3969
    %4353 = vmatmul.mubr.bf16.gmra.mrb[0].mxu0 %v3968
    %v4354 = vpop.f32.mrb[0].mxu0
    %v4355 = vadd.f32 %v3411, %v4354
    %v4356 = vpop.f32.mrb[0].mxu0
    %v4357 = vpop.f32.mrb[0].mxu0
    %v4358 = vadd.f32 %v3416, %v4357
    %v4359 = vpop.f32.mrb[0].mxu0
    %4360 = vmatprep.mubr.bf16.mxu0 %v3973
    %4361 = vmatmul.mubr.bf16.gmra.mrb[0].mxu0 %v3972
    %v4362 = vpop.f32.mrb[0].mxu0
    %v4363 = vadd.f32 %v3421, %v4362
    %v4364 = vpop.f32.mrb[0].mxu0
    %v4365 = vpop.f32.mrb[0].mxu0
    %v4366 = vadd.f32 %v3426, %v4365
    %v4367 = vpop.f32.mrb[0].mxu0
    %4368 = vmatprep.mubr.bf16.mxu0 %v3977
    %4369 = vmatmul.mubr.bf16.gmra.mrb[0].mxu0 %v3976
    %v4370 = vpop.f32.mrb[0].mxu0
    %v4371 = vadd.f32 %v3431, %v4370
    %v4372 = vpop.f32.mrb[0].mxu0
    %v4373 = vpop.f32.mrb[0].mxu0
    %v4374 = vadd.f32 %v3436, %v4373
    %v4375 = vpop.f32.mrb[0].mxu0
    %4376 = vmatprep.mubr.bf16.mxu0 %v3981
    %4377 = vmatmul.mubr.bf16.gmra.mrb[0].mxu0 %v3980
    %v4378 = vpop.f32.mrb[0].mxu0
    %v4379 = vadd.f32 %v3441, %v4378
    %v4380 = vpop.f32.mrb[0].mxu0
    %v4381 = vpop.f32.mrb[0].mxu0
    %v4382 = vadd.f32 %v3446, %v4381
    %v4383 = vpop.f32.mrb[0].mxu0
    %4384 = vmatprep.mubr.bf16.mxu0 %v3985
    %4385 = vmatmul.mubr.bf16.gmra.mrb[0].mxu0 %v3984
    %v4386 = vpop.f32.mrb[0].mxu0
    %v4387 = vadd.f32 %v3451, %v4386
    %v4388 = vpop.f32.mrb[0].mxu0
    %v4389 = vpop.f32.mrb[0].mxu0
    %v4390 = vadd.f32 %v3456, %v4389
    %v4391 = vpop.f32.mrb[0].mxu0
    %4392 = vmatprep.mubr.bf16.mxu0 %v3989
    %4393 = vmatmul.mubr.bf16.gmra.mrb[0].mxu0 %v3988
    %v4394 = vpop.f32.mrb[0].mxu0
    %v4395 = vadd.f32 %v3461, %v4394
    %v4396 = vpop.f32.mrb[0].mxu0
    %v4397 = vpop.f32.mrb[0].mxu0
    %v4398 = vadd.f32 %v3466, %v4397
    %v4399 = vpop.f32.mrb[0].mxu0
    %4400 = vmatprep.mubr.bf16.mxu0 %v3993
    %4401 = vmatmul.mubr.bf16.gmra.mrb[0].mxu0 %v3992
    %v4402 = vpop.f32.mrb[0].mxu0
    %v4403 = vadd.f32 %v3471, %v4402
    %v4404 = vpop.f32.mrb[0].mxu0
    %v4405 = vpop.f32.mrb[0].mxu0
    %v4406 = vadd.f32 %v3476, %v4405
    %v4407 = vpop.f32.mrb[0].mxu0
    %4408 = vmatprep.mubr.bf16.mxu0 %v3997
    %4409 = vmatmul.mubr.bf16.gmra.mrb[0].mxu0 %v3996
    %v4410 = vpop.f32.mrb[0].mxu0
    %v4411 = vadd.f32 %v3481, %v4410
    %v4412 = vpop.f32.mrb[0].mxu0
    %v4413 = vpop.f32.mrb[0].mxu0
    %v4414 = vadd.f32 %v3486, %v4413
    %v4415 = vpop.f32.mrb[0].mxu0
    %4416 = vdwg.mxu0
    %4417 = vmatprep.subr.bf16.mxu0 0
    %4418 = vmatpush1.bf16.msra.mxu0 %v2960
    %4419 = vmatprep.subr.bf16.mxu0 0
    %4420 = vmatpush1.bf16.msra.mxu0 %v2961
    %4421 = vmatprep.subr.bf16.mxu0 0
    %4422 = vmatpush1.bf16.msra.mxu0 %v2962
    %4423 = vmatprep.subr.bf16.mxu0 0
    %4424 = vmatpush1.bf16.msra.mxu0 %v2963
    %4425 = vmatprep.subr.bf16.mxu0 0
    %4426 = vmatpush1.bf16.msra.mxu0 %v2964
    %4427 = vmatprep.subr.bf16.mxu0 0
    %4428 = vmatpush1.bf16.msra.mxu0 %v2965
    %4429 = vmatprep.subr.bf16.mxu0 0
    %4430 = vmatpush1.bf16.msra.mxu0 %v2966
    %4431 = vmatprep.subr.bf16.mxu0 0
    %4432 = vmatpush1.bf16.msra.mxu0 %v2967
    %4433 = vmatprep.subr.bf16.mxu0 0
    %4434 = vmatpush1.bf16.msra.mxu0 %v2968
    %4435 = vmatprep.subr.bf16.mxu0 0
    %4436 = vmatpush1.bf16.msra.mxu0 %v2969
    %4437 = vmatprep.subr.bf16.mxu0 0
    %4438 = vmatpush1.bf16.msra.mxu0 %v2970
    %4439 = vmatprep.subr.bf16.mxu0 0
    %4440 = vmatpush1.bf16.msra.mxu0 %v2971
    %4441 = vmatprep.subr.bf16.mxu0 0
    %4442 = vmatpush1.bf16.msra.mxu0 %v2972
    %4443 = vmatprep.subr.bf16.mxu0 0
    %4444 = vmatpush1.bf16.msra.mxu0 %v2973
    %4445 = vmatprep.subr.bf16.mxu0 0
    %4446 = vmatpush1.bf16.msra.mxu0 %v2974
    %4447 = vmatprep.subr.bf16.mxu0 0
    %4448 = vmatpush1.bf16.msra.mxu0 %v2975
    %4449 = vmatprep.mubr.bf16.mxu0 %v3875
    %4450 = vmatmul.mubr.bf16.gmra.mrb[0].mxu0 %v3874
    %v4451 = vpop.f32.mrb[0].mxu0
    %v4452 = vadd.f32 %v4163, %v4451
    %v4453 = vpop.f32.mrb[0].mxu0
    %v4454 = vpop.f32.mrb[0].mxu0
    %v4455 = vadd.f32 %v4166, %v4454
    %v4456 = vpop.f32.mrb[0].mxu0
    %4457 = vmatprep.mubr.bf16.mxu0 %v3879
    %4458 = vmatmul.mubr.bf16.gmra.mrb[0].mxu0 %v3878
    %v4459 = vpop.f32.mrb[0].mxu0
    %v4460 = vadd.f32 %v4171, %v4459
    %v4461 = vpop.f32.mrb[0].mxu0
    %v4462 = vpop.f32.mrb[0].mxu0
    %v4463 = vadd.f32 %v4174, %v4462
    %v4464 = vpop.f32.mrb[0].mxu0
    %4465 = vmatprep.mubr.bf16.mxu0 %v3883
    %4466 = vmatmul.mubr.bf16.gmra.mrb[0].mxu0 %v3882
    %v4467 = vpop.f32.mrb[0].mxu0
    %v4468 = vadd.f32 %v4179, %v4467
    %v4469 = vpop.f32.mrb[0].mxu0
    %v4470 = vpop.f32.mrb[0].mxu0
    %v4471 = vadd.f32 %v4182, %v4470
    %v4472 = vpop.f32.mrb[0].mxu0
    %4473 = vmatprep.mubr.bf16.mxu0 %v3887
    %4474 = vmatmul.mubr.bf16.gmra.mrb[0].mxu0 %v3886
    %v4475 = vpop.f32.mrb[0].mxu0
    %v4476 = vadd.f32 %v4187, %v4475
    %v4477 = vpop.f32.mrb[0].mxu0
    %v4478 = vpop.f32.mrb[0].mxu0
    %v4479 = vadd.f32 %v4190, %v4478
    %v4480 = vpop.f32.mrb[0].mxu0
    %4481 = vmatprep.mubr.bf16.mxu0 %v3891
    %4482 = vmatmul.mubr.bf16.gmra.mrb[0].mxu0 %v3890
    %v4483 = vpop.f32.mrb[0].mxu0
    %v4484 = vadd.f32 %v4195, %v4483
    %v4485 = vpop.f32.mrb[0].mxu0
    %v4486 = vpop.f32.mrb[0].mxu0
    %v4487 = vadd.f32 %v4198, %v4486
    %v4488 = vpop.f32.mrb[0].mxu0
    %4489 = vmatprep.mubr.bf16.mxu0 %v3895
    %4490 = vmatmul.mubr.bf16.gmra.mrb[0].mxu0 %v3894
    %v4491 = vpop.f32.mrb[0].mxu0
    %v4492 = vadd.f32 %v4203, %v4491
    %v4493 = vpop.f32.mrb[0].mxu0
    %v4494 = vpop.f32.mrb[0].mxu0
    %v4495 = vadd.f32 %v4206, %v4494
    %v4496 = vpop.f32.mrb[0].mxu0
    %4497 = vmatprep.mubr.bf16.mxu0 %v3899
    %4498 = vmatmul.mubr.bf16.gmra.mrb[0].mxu0 %v3898
    %v4499 = vpop.f32.mrb[0].mxu0
    %v4500 = vadd.f32 %v4211, %v4499
    %v4501 = vpop.f32.mrb[0].mxu0
    %v4502 = vpop.f32.mrb[0].mxu0
    %v4503 = vadd.f32 %v4214, %v4502
    %v4504 = vpop.f32.mrb[0].mxu0
    %4505 = vmatprep.mubr.bf16.mxu0 %v3903
    %4506 = vmatmul.mubr.bf16.gmra.mrb[0].mxu0 %v3902
    %v4507 = vpop.f32.mrb[0].mxu0
    %v4508 = vadd.f32 %v4219, %v4507
    %v4509 = vpop.f32.mrb[0].mxu0
    %v4510 = vpop.f32.mrb[0].mxu0
    %v4511 = vadd.f32 %v4222, %v4510
    %v4512 = vpop.f32.mrb[0].mxu0
    %4513 = vmatprep.mubr.bf16.mxu0 %v3907
    %4514 = vmatmul.mubr.bf16.gmra.mrb[0].mxu0 %v3906
    %v4515 = vpop.f32.mrb[0].mxu0
    %v4516 = vadd.f32 %v4227, %v4515
    %v4517 = vpop.f32.mrb[0].mxu0
    %v4518 = vpop.f32.mrb[0].mxu0
    %v4519 = vadd.f32 %v4230, %v4518
    %v4520 = vpop.f32.mrb[0].mxu0
    %4521 = vmatprep.mubr.bf16.mxu0 %v3911
    %4522 = vmatmul.mubr.bf16.gmra.mrb[0].mxu0 %v3910
    %v4523 = vpop.f32.mrb[0].mxu0
    %v4524 = vadd.f32 %v4235, %v4523
    %v4525 = vpop.f32.mrb[0].mxu0
    %v4526 = vpop.f32.mrb[0].mxu0
    %v4527 = vadd.f32 %v4238, %v4526
    %v4528 = vpop.f32.mrb[0].mxu0
    %4529 = vmatprep.mubr.bf16.mxu0 %v3915
    %4530 = vmatmul.mubr.bf16.gmra.mrb[0].mxu0 %v3914
    %v4531 = vpop.f32.mrb[0].mxu0
    %v4532 = vadd.f32 %v4243, %v4531
    %v4533 = vpop.f32.mrb[0].mxu0
    %v4534 = vpop.f32.mrb[0].mxu0
    %v4535 = vadd.f32 %v4246, %v4534
    %v4536 = vpop.f32.mrb[0].mxu0
    %4537 = vmatprep.mubr.bf16.mxu0 %v3919
    %4538 = vmatmul.mubr.bf16.gmra.mrb[0].mxu0 %v3918
    %v4539 = vpop.f32.mrb[0].mxu0
    %v4540 = vadd.f32 %v4251, %v4539
    %v4541 = vpop.f32.mrb[0].mxu0
    %v4542 = vpop.f32.mrb[0].mxu0
    %v4543 = vadd.f32 %v4254, %v4542
    %v4544 = vpop.f32.mrb[0].mxu0
    %4545 = vmatprep.mubr.bf16.mxu0 %v3923
    %4546 = vmatmul.mubr.bf16.gmra.mrb[0].mxu0 %v3922
    %v4547 = vpop.f32.mrb[0].mxu0
    %v4548 = vadd.f32 %v4259, %v4547
    %v4549 = vpop.f32.mrb[0].mxu0
    %v4550 = vpop.f32.mrb[0].mxu0
    %v4551 = vadd.f32 %v4262, %v4550
    %v4552 = vpop.f32.mrb[0].mxu0
    %4553 = vmatprep.mubr.bf16.mxu0 %v3927
    %4554 = vmatmul.mubr.bf16.gmra.mrb[0].mxu0 %v3926
    %v4555 = vpop.f32.mrb[0].mxu0
    %v4556 = vadd.f32 %v4267, %v4555
    %v4557 = vpop.f32.mrb[0].mxu0
    %v4558 = vpop.f32.mrb[0].mxu0
    %v4559 = vadd.f32 %v4270, %v4558
    %v4560 = vpop.f32.mrb[0].mxu0
    %4561 = vmatprep.mubr.bf16.mxu0 %v3931
    %4562 = vmatmul.mubr.bf16.gmra.mrb[0].mxu0 %v3930
    %v4563 = vpop.f32.mrb[0].mxu0
    %v4564 = vadd.f32 %v4275, %v4563
    %v4565 = vpop.f32.mrb[0].mxu0
    %v4566 = vpop.f32.mrb[0].mxu0
    %v4567 = vadd.f32 %v4278, %v4566
    %v4568 = vpop.f32.mrb[0].mxu0
    %4569 = vmatprep.mubr.bf16.mxu0 %v3935
    %4570 = vmatmul.mubr.bf16.gmra.mrb[0].mxu0 %v3934
    %v4571 = vpop.f32.mrb[0].mxu0
    %v4572 = vadd.f32 %v4283, %v4571
    %v4573 = vpop.f32.mrb[0].mxu0
    %v4574 = vpop.f32.mrb[0].mxu0
    %v4575 = vadd.f32 %v4286, %v4574
    %v4576 = vpop.f32.mrb[0].mxu0
    %4577 = vmatprep.mubr.bf16.mxu0 %v3939
    %4578 = vmatmul.mubr.bf16.gmra.mrb[0].mxu0 %v3938
    %v4579 = vpop.f32.mrb[0].mxu0
    %v4580 = vadd.f32 %v4291, %v4579
    %v4581 = vpop.f32.mrb[0].mxu0
    %v4582 = vpop.f32.mrb[0].mxu0
    %v4583 = vadd.f32 %v4294, %v4582
    %v4584 = vpop.f32.mrb[0].mxu0
    %4585 = vmatprep.mubr.bf16.mxu0 %v3943
    %4586 = vmatmul.mubr.bf16.gmra.mrb[0].mxu0 %v3942
    %v4587 = vpop.f32.mrb[0].mxu0
    %v4588 = vadd.f32 %v4299, %v4587
    %v4589 = vpop.f32.mrb[0].mxu0
    %v4590 = vpop.f32.mrb[0].mxu0
    %v4591 = vadd.f32 %v4302, %v4590
    %v4592 = vpop.f32.mrb[0].mxu0
    %4593 = vmatprep.mubr.bf16.mxu0 %v3947
    %4594 = vmatmul.mubr.bf16.gmra.mrb[0].mxu0 %v3946
    %v4595 = vpop.f32.mrb[0].mxu0
    %v4596 = vadd.f32 %v4307, %v4595
    %v4597 = vpop.f32.mrb[0].mxu0
    %v4598 = vpop.f32.mrb[0].mxu0
    %v4599 = vadd.f32 %v4310, %v4598
    %v4600 = vpop.f32.mrb[0].mxu0
    %4601 = vmatprep.mubr.bf16.mxu0 %v3951
    %4602 = vmatmul.mubr.bf16.gmra.mrb[0].mxu0 %v3950
    %v4603 = vpop.f32.mrb[0].mxu0
    %v4604 = vadd.f32 %v4315, %v4603
    %v4605 = vpop.f32.mrb[0].mxu0
    %v4606 = vpop.f32.mrb[0].mxu0
    %v4607 = vadd.f32 %v4318, %v4606
    %v4608 = vpop.f32.mrb[0].mxu0
    %4609 = vmatprep.mubr.bf16.mxu0 %v3955
    %4610 = vmatmul.mubr.bf16.gmra.mrb[0].mxu0 %v3954
    %v4611 = vpop.f32.mrb[0].mxu0
    %v4612 = vadd.f32 %v4323, %v4611
    %v4613 = vpop.f32.mrb[0].mxu0
    %v4614 = vpop.f32.mrb[0].mxu0
    %v4615 = vadd.f32 %v4326, %v4614
    %v4616 = vpop.f32.mrb[0].mxu0
    %4617 = vmatprep.mubr.bf16.mxu0 %v3959
    %4618 = vmatmul.mubr.bf16.gmra.mrb[0].mxu0 %v3958
    %v4619 = vpop.f32.mrb[0].mxu0
    %v4620 = vadd.f32 %v4331, %v4619
    %v4621 = vpop.f32.mrb[0].mxu0
    %v4622 = vpop.f32.mrb[0].mxu0
    %v4623 = vadd.f32 %v4334, %v4622
    %v4624 = vpop.f32.mrb[0].mxu0
    %4625 = vmatprep.mubr.bf16.mxu0 %v3963
    %4626 = vmatmul.mubr.bf16.gmra.mrb[0].mxu0 %v3962
    %v4627 = vpop.f32.mrb[0].mxu0
    %v4628 = vadd.f32 %v4339, %v4627
    %v4629 = vpop.f32.mrb[0].mxu0
    %v4630 = vpop.f32.mrb[0].mxu0
    %v4631 = vadd.f32 %v4342, %v4630
    %v4632 = vpop.f32.mrb[0].mxu0
    %4633 = vmatprep.mubr.bf16.mxu0 %v3967
    %4634 = vmatmul.mubr.bf16.gmra.mrb[0].mxu0 %v3966
    %v4635 = vpop.f32.mrb[0].mxu0
    %v4636 = vadd.f32 %v4347, %v4635
    %v4637 = vpop.f32.mrb[0].mxu0
    %v4638 = vpop.f32.mrb[0].mxu0
    %v4639 = vadd.f32 %v4350, %v4638
    %v4640 = vpop.f32.mrb[0].mxu0
    %4641 = vmatprep.mubr.bf16.mxu0 %v3971
    %4642 = vmatmul.mubr.bf16.gmra.mrb[0].mxu0 %v3970
    %v4643 = vpop.f32.mrb[0].mxu0
    %v4644 = vadd.f32 %v4355, %v4643
    %v4645 = vpop.f32.mrb[0].mxu0
    %v4646 = vpop.f32.mrb[0].mxu0
    %v4647 = vadd.f32 %v4358, %v4646
    %v4648 = vpop.f32.mrb[0].mxu0
    %4649 = vmatprep.mubr.bf16.mxu0 %v3975
    %4650 = vmatmul.mubr.bf16.gmra.mrb[0].mxu0 %v3974
    %v4651 = vpop.f32.mrb[0].mxu0
    %v4652 = vadd.f32 %v4363, %v4651
    %v4653 = vpop.f32.mrb[0].mxu0
    %v4654 = vpop.f32.mrb[0].mxu0
    %v4655 = vadd.f32 %v4366, %v4654
    %v4656 = vpop.f32.mrb[0].mxu0
    %4657 = vmatprep.mubr.bf16.mxu0 %v3979
    %4658 = vmatmul.mubr.bf16.gmra.mrb[0].mxu0 %v3978
    %v4659 = vpop.f32.mrb[0].mxu0
    %v4660 = vadd.f32 %v4371, %v4659
    %v4661 = vpop.f32.mrb[0].mxu0
    %v4662 = vpop.f32.mrb[0].mxu0
    %v4663 = vadd.f32 %v4374, %v4662
    %v4664 = vpop.f32.mrb[0].mxu0
    %4665 = vmatprep.mubr.bf16.mxu0 %v3983
    %4666 = vmatmul.mubr.bf16.gmra.mrb[0].mxu0 %v3982
    %v4667 = vpop.f32.mrb[0].mxu0
    %v4668 = vadd.f32 %v4379, %v4667
    %v4669 = vpop.f32.mrb[0].mxu0
    %v4670 = vpop.f32.mrb[0].mxu0
    %v4671 = vadd.f32 %v4382, %v4670
    %v4672 = vpop.f32.mrb[0].mxu0
    %4673 = vmatprep.mubr.bf16.mxu0 %v3987
    %4674 = vmatmul.mubr.bf16.gmra.mrb[0].mxu0 %v3986
    %v4675 = vpop.f32.mrb[0].mxu0
    %v4676 = vadd.f32 %v4387, %v4675
    %v4677 = vpop.f32.mrb[0].mxu0
    %v4678 = vpop.f32.mrb[0].mxu0
    %v4679 = vadd.f32 %v4390, %v4678
    %v4680 = vpop.f32.mrb[0].mxu0
    %4681 = vmatprep.mubr.bf16.mxu0 %v3991
    %4682 = vmatmul.mubr.bf16.gmra.mrb[0].mxu0 %v3990
    %v4683 = vpop.f32.mrb[0].mxu0
    %v4684 = vadd.f32 %v4395, %v4683
    %v4685 = vpop.f32.mrb[0].mxu0
    %v4686 = vpop.f32.mrb[0].mxu0
    %v4687 = vadd.f32 %v4398, %v4686
    %v4688 = vpop.f32.mrb[0].mxu0
    %4689 = vmatprep.mubr.bf16.mxu0 %v3995
    %4690 = vmatmul.mubr.bf16.gmra.mrb[0].mxu0 %v3994
    %v4691 = vpop.f32.mrb[0].mxu0
    %v4692 = vadd.f32 %v4403, %v4691
    %v4693 = vpop.f32.mrb[0].mxu0
    %v4694 = vpop.f32.mrb[0].mxu0
    %v4695 = vadd.f32 %v4406, %v4694
    %v4696 = vpop.f32.mrb[0].mxu0
    %4697 = vmatprep.mubr.bf16.mxu0 %v3999
    %4698 = vmatmul.mubr.bf16.gmra.mrb[0].mxu0 %v3998
    %v4699 = vpop.f32.mrb[0].mxu0
    %v4700 = vadd.f32 %v4411, %v4699
    %v4701 = vpop.f32.mrb[0].mxu0
    %v4702 = vpop.f32.mrb[0].mxu0
    %v4703 = vadd.f32 %v4414, %v4702
    %v4704 = vpop.f32.mrb[0].mxu0
    %4705 = vdwg.mxu0
    %v4706 = vmax.f32 %v4452, 0.0
    %v4707 = vmax.f32 %v4455, 0.0
    %v4708 = vmax.f32 %v4460, 0.0
    %v4709 = vmax.f32 %v4463, 0.0
    %v4710 = vmax.f32 %v4468, 0.0
    %v4711 = vmax.f32 %v4471, 0.0
    %v4712 = vmax.f32 %v4476, 0.0
    %v4713 = vmax.f32 %v4479, 0.0
    %v4714 = vmax.f32 %v4484, 0.0
    %v4715 = vmax.f32 %v4487, 0.0
    %v4716 = vmax.f32 %v4492, 0.0
    %v4717 = vmax.f32 %v4495, 0.0
    %v4718 = vmax.f32 %v4500, 0.0
    %v4719 = vmax.f32 %v4503, 0.0
    %v4720 = vmax.f32 %v4508, 0.0
    %v4721 = vmax.f32 %v4511, 0.0
    %v4722 = vmax.f32 %v4516, 0.0
    %v4723 = vmax.f32 %v4519, 0.0
    %v4724 = vmax.f32 %v4524, 0.0
    %v4725 = vmax.f32 %v4527, 0.0
    %v4726 = vmax.f32 %v4532, 0.0
    %v4727 = vmax.f32 %v4535, 0.0
    %v4728 = vmax.f32 %v4540, 0.0
    %v4729 = vmax.f32 %v4543, 0.0
    %v4730 = vmax.f32 %v4548, 0.0
    %v4731 = vmax.f32 %v4551, 0.0
    %v4732 = vmax.f32 %v4556, 0.0
    %v4733 = vmax.f32 %v4559, 0.0
    %v4734 = vmax.f32 %v4564, 0.0
    %v4735 = vmax.f32 %v4567, 0.0
    %v4736 = vmax.f32 %v4572, 0.0
    %v4737 = vmax.f32 %v4575, 0.0
    %v4738 = vmax.f32 %v4580, 0.0
    %v4739 = vmax.f32 %v4583, 0.0
    %v4740 = vmax.f32 %v4588, 0.0
    %v4741 = vmax.f32 %v4591, 0.0
    %v4742 = vmax.f32 %v4596, 0.0
    %v4743 = vmax.f32 %v4599, 0.0
    %v4744 = vmax.f32 %v4604, 0.0
    %v4745 = vmax.f32 %v4607, 0.0
    %v4746 = vmax.f32 %v4612, 0.0
    %v4747 = vmax.f32 %v4615, 0.0
    %v4748 = vmax.f32 %v4620, 0.0
    %v4749 = vmax.f32 %v4623, 0.0
    %v4750 = vmax.f32 %v4628, 0.0
    %v4751 = vmax.f32 %v4631, 0.0
    %v4752 = vmax.f32 %v4636, 0.0
    %v4753 = vmax.f32 %v4639, 0.0
    %v4754 = vmax.f32 %v4644, 0.0
    %v4755 = vmax.f32 %v4647, 0.0
    %v4756 = vmax.f32 %v4652, 0.0
    %v4757 = vmax.f32 %v4655, 0.0
    %v4758 = vmax.f32 %v4660, 0.0
    %v4759 = vmax.f32 %v4663, 0.0
    %v4760 = vmax.f32 %v4668, 0.0
    %v4761 = vmax.f32 %v4671, 0.0
    %v4762 = vmax.f32 %v4676, 0.0
    %v4763 = vmax.f32 %v4679, 0.0
    %v4764 = vmax.f32 %v4684, 0.0
    %v4765 = vmax.f32 %v4687, 0.0
    %v4766 = vmax.f32 %v4692, 0.0
    %v4767 = vmax.f32 %v4695, 0.0
    %v4768 = vmax.f32 %v4700, 0.0
    %v4769 = vmax.f32 %v4703, 0.0
    %v4770 = vpack.c.bf16 %v4707, %v4706
    %v4771 = vpack.c.bf16 %v4709, %v4708
    %v4772 = vpack.c.bf16 %v4711, %v4710
    %v4773 = vpack.c.bf16 %v4713, %v4712
    %v4774 = vpack.c.bf16 %v4715, %v4714
    %v4775 = vpack.c.bf16 %v4717, %v4716
    %v4776 = vpack.c.bf16 %v4719, %v4718
    %v4777 = vpack.c.bf16 %v4721, %v4720
    %v4778 = vpack.c.bf16 %v4723, %v4722
    %v4779 = vpack.c.bf16 %v4725, %v4724
    %v4780 = vpack.c.bf16 %v4727, %v4726
    %v4781 = vpack.c.bf16 %v4729, %v4728
    %v4782 = vpack.c.bf16 %v4731, %v4730
    %v4783 = vpack.c.bf16 %v4733, %v4732
    %v4784 = vpack.c.bf16 %v4735, %v4734
    %v4785 = vpack.c.bf16 %v4737, %v4736
    %v4786 = vpack.c.bf16 %v4739, %v4738
    %v4787 = vpack.c.bf16 %v4741, %v4740
    %v4788 = vpack.c.bf16 %v4743, %v4742
    %v4789 = vpack.c.bf16 %v4745, %v4744
    %v4790 = vpack.c.bf16 %v4747, %v4746
    %v4791 = vpack.c.bf16 %v4749, %v4748
    %v4792 = vpack.c.bf16 %v4751, %v4750
    %v4793 = vpack.c.bf16 %v4753, %v4752
    %v4794 = vpack.c.bf16 %v4755, %v4754
    %v4795 = vpack.c.bf16 %v4757, %v4756
    %v4796 = vpack.c.bf16 %v4759, %v4758
    %v4797 = vpack.c.bf16 %v4761, %v4760
    %v4798 = vpack.c.bf16 %v4763, %v4762
    %v4799 = vpack.c.bf16 %v4765, %v4764
    %v4800 = vpack.c.bf16 %v4767, %v4766
    %v4801 = vpack.c.bf16 %v4769, %v4768
    %v4802 = vld [vmem:[%s7] sm:$0xf]
    %v4803 = vld [vmem:[%s8] sm:$0x3]
    %4805 = vset.pattern.permute.xlu0 0
    %4806 = vperm.xlu0 %4805, %v4803
    %v4807 = vpop.permute.xlu0 %4806
    %v4811 = vunpack.c.l.s4 1966171168
    %v4812 = vunpack.c.0.s8 %v4811
    %v4813 = vlaneseq
    %v4814 = vshrl.u32 %v4813, 7
    %v4815 = vsub.s32 %v4812, %v4814
    %v4816 = vrot.slane %v4802, %v4815
    %v4817 = vcombine.high %v4816, %v4816
    %v4819 = vunpack.c.l.s4 1966171168
    %v4820 = vunpack.c.0.s8 %v4819
    %v4821 = vlaneseq
    %v4822 = vshrl.u32 %v4821, 7
    %v4823 = vsub.s32 %v4820, %v4822
    %v4824 = vrot.slane %v4816, %v4823
    %v4826 = vunpack.c.l.s4 1966171168
    %v4827 = vunpack.c.0.s8 %v4826
    %v4828 = vlaneseq
    %v4829 = vshrl.u32 %v4828, 7
    %v4830 = vsub.s32 %v4827, %v4829
    %v4831 = vrot.slane %v4817, %v4830
    %v4832 = vcombine.high %v4824, %v4824
    %v4833 = vcombine.high %v4831, %v4831
    %4838 = vmatprep.subr.bf16.mxu0 0
    %4839 = vmatpush1.bf16.msra.mxu0 %v4770
    %4840 = vmatprep.subr.bf16.mxu0 0
    %4841 = vmatpush1.bf16.msra.mxu0 %v4771
    %4842 = vmatprep.subr.bf16.mxu0 0
    %4843 = vmatpush1.bf16.msra.mxu0 %v4772
    %4844 = vmatprep.subr.bf16.mxu0 0
    %4845 = vmatpush1.bf16.msra.mxu0 %v4773
    %4846 = vmatprep.subr.bf16.mxu0 0
    %4847 = vmatpush1.bf16.msra.mxu0 %v4774
    %4848 = vmatprep.subr.bf16.mxu0 0
    %4849 = vmatpush1.bf16.msra.mxu0 %v4775
    %4850 = vmatprep.subr.bf16.mxu0 0
    %4851 = vmatpush1.bf16.msra.mxu0 %v4776
    %4852 = vmatprep.subr.bf16.mxu0 0
    %4853 = vmatpush1.bf16.msra.mxu0 %v4777
    %4854 = vmatprep.subr.bf16.mxu0 0
    %4855 = vmatpush1.bf16.msra.mxu0 %v4778
    %4856 = vmatprep.subr.bf16.mxu0 0
    %4857 = vmatpush1.bf16.msra.mxu0 %v4779
    %4858 = vmatprep.subr.bf16.mxu0 0
    %4859 = vmatpush1.bf16.msra.mxu0 %v4780
    %4860 = vmatprep.subr.bf16.mxu0 0
    %4861 = vmatpush1.bf16.msra.mxu0 %v4781
    %4862 = vmatprep.subr.bf16.mxu0 0
    %4863 = vmatpush1.bf16.msra.mxu0 %v4782
    %4864 = vmatprep.subr.bf16.mxu0 0
    %4865 = vmatpush1.bf16.msra.mxu0 %v4783
    %4866 = vmatprep.subr.bf16.mxu0 0
    %4867 = vmatpush1.bf16.msra.mxu0 %v4784
    %4868 = vmatprep.subr.bf16.mxu0 0
    %4869 = vmatpush1.bf16.msra.mxu0 %v4785
    %4870 = vmatprep.mubr.bf16.mxu0 %v4831
    %4871 = vmatmul.mubr.bf16.gmra.mrb[0].mxu0 %v4824
    %v4872 = vpop.f32.mrb[0].mxu0
    %v4873 = vadd.f32 %v4807, %v4872
    %v4874 = vpop.f32.mrb[0].mxu0
    %v4875 = vpop.f32.mrb[0].mxu0
    %v4876 = vpop.f32.mrb[0].mxu0
    %4877 = vdwg.mxu0
    %4878 = vmatprep.subr.bf16.mxu0 0
    %4879 = vmatpush1.bf16.msra.mxu0 %v4786
    %4880 = vmatprep.subr.bf16.mxu0 0
    %4881 = vmatpush1.bf16.msra.mxu0 %v4787
    %4882 = vmatprep.subr.bf16.mxu0 0
    %4883 = vmatpush1.bf16.msra.mxu0 %v4788
    %4884 = vmatprep.subr.bf16.mxu0 0
    %4885 = vmatpush1.bf16.msra.mxu0 %v4789
    %4886 = vmatprep.subr.bf16.mxu0 0
    %4887 = vmatpush1.bf16.msra.mxu0 %v4790
    %4888 = vmatprep.subr.bf16.mxu0 0
    %4889 = vmatpush1.bf16.msra.mxu0 %v4791
    %4890 = vmatprep.subr.bf16.mxu0 0
    %4891 = vmatpush1.bf16.msra.mxu0 %v4792
    %4892 = vmatprep.subr.bf16.mxu0 0
    %4893 = vmatpush1.bf16.msra.mxu0 %v4793
    %4894 = vmatprep.subr.bf16.mxu0 0
    %4895 = vmatpush1.bf16.msra.mxu0 %v4794
    %4896 = vmatprep.subr.bf16.mxu0 0
    %4897 = vmatpush1.bf16.msra.mxu0 %v4795
    %4898 = vmatprep.subr.bf16.mxu0 0
    %4899 = vmatpush1.bf16.msra.mxu0 %v4796
    %4900 = vmatprep.subr.bf16.mxu0 0
    %4901 = vmatpush1.bf16.msra.mxu0 %v4797
    %4902 = vmatprep.subr.bf16.mxu0 0
    %4903 = vmatpush1.bf16.msra.mxu0 %v4798
    %4904 = vmatprep.subr.bf16.mxu0 0
    %4905 = vmatpush1.bf16.msra.mxu0 %v4799
    %4906 = vmatprep.subr.bf16.mxu0 0
    %4907 = vmatpush1.bf16.msra.mxu0 %v4800
    %4908 = vmatprep.subr.bf16.mxu0 0
    %4909 = vmatpush1.bf16.msra.mxu0 %v4801
    %4910 = vmatprep.mubr.bf16.mxu0 %v4833
    %4911 = vmatmul.mubr.bf16.gmra.mrb[0].mxu0 %v4832
    %v4912 = vpop.f32.mrb[0].mxu0
    %v4913 = vadd.f32 %v4873, %v4912
    %v4914 = vpop.f32.mrb[0].mxu0
    %v4915 = vpop.f32.mrb[0].mxu0
    %v4916 = vpop.f32.mrb[0].mxu0
    %4917 = vdwg.mxu0
    %v4918 = vtanh.pop %v4913
    %4919 = vst [vmem:[#allocation5] sm:$0x3] %v4918
    // Predicated region
    $region42: #{tpu_custom_call.1} parent=1 // pred_check
      _
    $region43: #{tpu_custom_call.1} parent=1 // pred_check_branch
      %4921 = sbr.rel (0) target = $region45
    $region44: #{tpu_custom_call.1} parent=1 // pred_region
      %s4923 = ssub.s32 32, 32
      %4924 = vsyncadd [#allocation4], %s4923
      %s4926 = sshll.u32 [#allocation5], 4
      %s4927 = int_to_ptr.vmem [resolvable:$true] %s4926
      %4929 = dma.vmem_to_hbm [thread:$0]  %s4927, 32, %s9, [#allocation4]
    $region45: #{tpu_custom_call.1} parent=1 // pred_fallthru
      _
    // Predicated region
    $region46: #{tpu_custom_call.1} parent=1 // pred_check
      _
    $region47: #{tpu_custom_call.1} parent=1 // pred_check_branch
      %4931 = sbr.rel (0) target = $region49
    $region48: #{tpu_custom_call.1} parent=1 // pred_region
      %4932 = dma.done [#allocation4], 32
    $region49: #{tpu_custom_call.1} parent=1 // pred_fallthru
      _
    %4933 = vsyncpa [#allocation3], 1
    %4934 = vsyncpa [#allocation4], 1

</llo_original>
